<compile_context>
chip_gen: v7x
topology: tpu7x:2x2x1
jax: 0.10.0
libtpu: 0.0.40
codegen_flags: <defaults>
</compile_context>

<pallas_src>
import functools

import jax
import jax.numpy as jnp
from jax.experimental import pallas as pl
from jax.experimental.pallas import tpu as pltpu


# ----------------------------------------------------------------------------
# Fused kernel: one grid step per batch block of TB sentence pairs.
# ----------------------------------------------------------------------------
def _make_kernel(L1, L2, hidden, label):
    Lt = L1 + L2
    small_h = (2 * hidden) <= 128   # lane-concat 2H input fits one lane tile

    def kernel(x_ref,
               wf1, bf1, wf2, bf2,
               wg1, bg1, wg2, bg2,
               wh1, bh1, wh2, bh2,
               wfin, bfin,
               out_ref):
        TB = x_ref.shape[0]
        H = hidden
        bf16 = jnp.bfloat16
        f32 = jnp.float32

        def dot32(a, b):
            return jnp.dot(a, b, preferred_element_type=f32)

        x = x_ref[...]                          # (TB, Lt, H) bf16 (stacked s1;s2)
        x2d = x.reshape(TB * Lt, H)             # row-stack for shared MLPs

        # ---- attend: shared mlp_f over all rows of both sentences ----
        hf = jnp.maximum(dot32(x2d, wf1[...]) + bf1[...], 0.0)
        f = jnp.maximum(dot32(hf.astype(bf16), wf2[...]) + bf2[...], 0.0)
        f3 = f.astype(bf16).reshape(TB, Lt, H)

        # Stacked score matrix; same-sentence blocks masked so ONE softmax pass
        # yields prob1 (rows < L1, attending s2) and prob2 (rows >= L1, attending s1).
        score = jnp.einsum("bld,bmd->blm", f3, f3, preferred_element_type=f32)
        row = jax.lax.broadcasted_iota(jnp.int32, (Lt, Lt), 0)
        col = jax.lax.broadcasted_iota(jnp.int32, (Lt, Lt), 1)
        cross = (row < L1) != (col < L1)        # True where attention is allowed
        score = jnp.where(cross[None, :, :], score, jnp.float32(-1e30))

        m = jnp.max(score, axis=-1, keepdims=True)
        e = jnp.exp(score - m)                  # masked entries -> 0
        a = e * pl.reciprocal(jnp.sum(e, axis=-1, keepdims=True), approx=True)

        # Both context tensors in one batched matmul (mask guarantees the block
        # structure), so no transpose and no concatenate of c1/c2.
        ctx = jnp.einsum("blm,bmd->bld", a.astype(bf16), x,
                         preferred_element_type=f32)        # (TB, Lt, H)
        ctx2d = ctx.reshape(TB * Lt, H).astype(bf16)

        # ---- compare: mlp_g on [sentence | context] ----
        if small_h:
            xg = jnp.concatenate([x2d, ctx2d], axis=-1)      # (rows, 2H) bf16
            hg = jnp.maximum(dot32(xg, wg1[...]) + bg1[...], 0.0)
        else:
            hg = jnp.maximum(dot32(x2d, wg1[:H, :]) + dot32(ctx2d, wg1[H:, :])
                             + bg1[...], 0.0)
        g = jnp.maximum(dot32(hg.astype(bf16), wg2[...]) + bg2[...], 0.0)

        g3 = g.reshape(TB, Lt, H)
        o1 = jnp.sum(g3[:, :L1, :], axis=1)                  # (TB, H)
        o2 = jnp.sum(g3[:, L1:, :], axis=1)                  # (TB, H)

        # ---- aggregate head (batched over TB) ----
        if small_h:
            oc = jnp.concatenate([o1, o2], axis=-1).astype(bf16)
            hh = jnp.maximum(dot32(oc, wh1[...]) + bh1[...], 0.0)
        else:
            hh = jnp.maximum(dot32(o1.astype(bf16), wh1[:H, :])
                             + dot32(o2.astype(bf16), wh1[H:, :]) + bh1[...], 0.0)
        hh2 = jnp.maximum(dot32(hh.astype(bf16), wh2[...]) + bh2[...], 0.0)

        # Final linear into a lane-dense (TB, label_p) slab; pad columns masked.
        logits = dot32(hh2.astype(bf16), wfin[...]) + bfin[...]
        label_p = out_ref.shape[-1]
        lcol = jax.lax.broadcasted_iota(jnp.int32, (TB, label_p), 1)
        logits = jnp.where(lcol < label, logits, jnp.float32(-1e30))

        mx = jnp.max(logits, axis=-1, keepdims=True)
        lse = jnp.log(jnp.sum(jnp.exp(logits - mx), axis=-1, keepdims=True)) + mx
        out_ref[...] = logits - lse

    return kernel


# ----------------------------------------------------------------------------
# Generation-aware block sizing
# ----------------------------------------------------------------------------
def _tpu_vmem_bytes():
    try:
        info = pltpu.get_tpu_info()
        cap = getattr(info, "vmem_capacity_bytes", None)
        if cap:
            return int(cap)
    except Exception:
        pass
    return 64 * 1024 * 1024   # conservative fallback (v7x per-TensorCore)


def _num_tensorcores():
    try:
        kind = jax.devices()[0].device_kind.lower()
        if "v7" in kind:
            return 2
    except Exception:
        pass
    return 1


def _choose_block_b(B, L1, L2, H, label_p, vmem_cap, n_cores):
    Lt = L1 + L2
    Hp = -(-H // 128) * 128            # lane padding of every (rows, H) VMEM tile
    Ltp = -(-Lt // 128) * 128          # lane padding of (Lt, Lt) score/prob tiles

    def wbytes(r, c, itemsize):
        return (-(-r // 8) * 8) * (-(-c // 128) * 128) * itemsize

    # Constant (weight/bias) residency, double-buffered by the pipeline.
    weight_bytes = 2 * (4 * wbytes(H, H, 2) + 2 * wbytes(2 * H, H, 2)
                        + wbytes(H, label_p, 2)
                        + 6 * wbytes(1, H, 4) + wbytes(1, label_p, 4))

    # Per-pair live bytes: bf16 input (x2 double-buffer), ~8 f32 row activations,
    # score + prob tensors, lane-dense f32 output (x2 double-buffer).
    per_pair = (2 * Lt * Hp * 2
                + 8 * Lt * Hp * 4
                + 2 * Lt * Ltp * 4
                + 2 * label_p * 4)

    budget = max(vmem_cap // 2 - weight_bytes, 4 * 1024 * 1024)
    tb = max(8, budget // max(per_pair, 1))

    b_pad8 = -(-B // 8) * 8
    tb = min(tb, b_pad8)

    if n_cores > 1 and b_pad8 > 8:
        # v7x: give each TensorCore at least one block.
        tb = min(tb, -(-b_pad8 // (2 * 8)) * 8)

    tb = max(8, (tb // 8) * 8)          # (8,128): batch block dim multiple of 8
    return int(tb)


# ----------------------------------------------------------------------------
# Wrapper
# ----------------------------------------------------------------------------
def atten_forward(sent1, sent2, params, *, block_b=None):
    """sent1: (B, L1, H), sent2: (B, L2, H) -> log-probs (B, label)."""
    B, L1, H = sent1.shape
    _, L2, _ = sent2.shape
    label = params["wfin"].shape[1]
    label_p = -(-label // 128) * 128           # lane-dense output width
    Lt = L1 + L2

    vmem_cap = _tpu_vmem_bytes()
    n_cores = _num_tensorcores()
    if block_b is None:
        block_b = _choose_block_b(B, L1, L2, H, label_p, vmem_cap, n_cores)

    n_blocks = pl.cdiv(B, block_b)
    if n_cores > 1 and n_blocks > 1 and (n_blocks % 2 == 1):
        n_blocks += 1                           # keep both v7x TensorCores busy
    Bp = n_blocks * block_b

    bf16 = jnp.bfloat16
    # bf16 + length-stacked input: single (B, L1+L2, H) bf16 DMA source.
    x = jnp.concatenate([sent1.astype(bf16), sent2.astype(bf16)], axis=1)
    if Bp != B:
        x = jnp.pad(x, ((0, Bp - B), (0, 0), (0, 0)))

    # Weights go to the MXU in bf16; biases stay f32. Final layer padded lane-dense.
    wfin = jnp.pad(params["wfin"], ((0, 0), (0, label_p - label))).astype(bf16)
    bfin = jnp.pad(params["bfin"], ((0, 0), (0, label_p - label)))
    weight_args = [
        params["wf1"].astype(bf16), params["bf1"],
        params["wf2"].astype(bf16), params["bf2"],
        params["wg1"].astype(bf16), params["bg1"],
        params["wg2"].astype(bf16), params["bg2"],
        params["wh1"].astype(bf16), params["bh1"],
        params["wh2"].astype(bf16), params["bh2"],
        wfin, bfin,
    ]

    def full_spec(arr):
        n = arr.ndim
        return pl.BlockSpec(arr.shape, lambda b, _n=n: (0,) * _n)

    weight_specs = [full_spec(a) for a in weight_args]

    grid_spec = pltpu.PrefetchScalarGridSpec(
        num_scalar_prefetch=0,
        grid=(n_blocks,),
        in_specs=[
            pl.BlockSpec((block_b, Lt, H), lambda b: (b, 0, 0)),
            *weight_specs,
        ],
        out_specs=pl.BlockSpec((block_b, label_p), lambda b: (b, 0)),
    )

    kernel = _make_kernel(L1, L2, H, label)
    vmem_limit = max(32 * 1024 * 1024, (vmem_cap * 3) // 4)

    out = pl.pallas_call(
        kernel,
        out_shape=jax.ShapeDtypeStruct((Bp, label_p), jnp.float32),
        grid_spec=grid_spec,
        compiler_params=pltpu.CompilerParams(
            dimension_semantics=("parallel",),
            vmem_limit_bytes=int(vmem_limit),
        ),
    )(x, *weight_args)
    return out[:B, :label]


# ----------------------------------------------------------------------------
# Deterministic parameter init (matches nn.Linear shapes; weights ~ N(0, para_init))
# ----------------------------------------------------------------------------
def init_params(key, hidden, label, para_init):
    def linear(k, din, dout):
        kw, kb = jax.random.split(k)
        w = para_init * jax.random.normal(kw, (din, dout), jnp.float32)
        b = para_init * jax.random.normal(kb, (1, dout), jnp.float32)
        return w, b

    ks = jax.random.split(key, 7)
    wf1, bf1 = linear(ks[0], hidden, hidden)          # mlp_f layer 1
    wf2, bf2 = linear(ks[1], hidden, hidden)          # mlp_f layer 2
    wg1, bg1 = linear(ks[2], 2 * hidden, hidden)      # mlp_g layer 1
    wg2, bg2 = linear(ks[3], hidden, hidden)          # mlp_g layer 2
    wh1, bh1 = linear(ks[4], 2 * hidden, hidden)      # mlp_h layer 1
    wh2, bh2 = linear(ks[5], hidden, hidden)          # mlp_h layer 2
    wfin, bfin = linear(ks[6], hidden, label)         # final_linear
    return dict(wf1=wf1, bf1=bf1, wf2=wf2, bf2=bf2,
                wg1=wg1, bg1=bg1, wg2=wg2, bg2=bg2,
                wh1=wh1, bh1=bh1, wh2=wh2, bh2=bh2,
                wfin=wfin, bfin=bfin)


# ----------------------------------------------------------------------------
# Pure-JAX reference (eval-mode, f32), used to sanity-check the kernel output
# ----------------------------------------------------------------------------
def atten_reference(sent1, sent2, p):
    def mlp2(x, w1, b1, w2, b2):
        h = jnp.maximum(x @ w1 + b1, 0.0)
        return jnp.maximum(h @ w2 + b2, 0.0)

    f1 = mlp2(sent1, p["wf1"], p["bf1"], p["wf2"], p["bf2"])
    f2 = mlp2(sent2, p["wf1"], p["bf1"], p["wf2"], p["bf2"])
    score1 = jnp.einsum("bld,bmd->blm", f1, f2)
    prob1 = jax.nn.softmax(score1, axis=-1)
    prob2 = jax.nn.softmax(jnp.swapaxes(score1, 1, 2), axis=-1)
    c1 = jnp.einsum("blm,bmd->bld", prob1, sent2)
    c2 = jnp.einsum("bml,bld->bmd", prob2, sent1)
    comb1 = jnp.concatenate([sent1, c1], axis=-1)
    comb2 = jnp.concatenate([sent2, c2], axis=-1)
    g1 = mlp2(comb1, p["wg1"], p["bg1"], p["wg2"], p["bg2"])
    g2 = mlp2(comb2, p["wg1"], p["bg1"], p["wg2"], p["bg2"])
    ic = jnp.concatenate([g1.sum(axis=1), g2.sum(axis=1)], axis=-1)
    h = mlp2(ic, p["wh1"], p["bh1"], p["wh2"], p["bh2"])
    logits = h @ p["wfin"] + p["bfin"]
    return jax.nn.log_softmax(logits, axis=-1)


if __name__ == "__main__":
    B, L1, L2, H, LABEL = 16, 8, 8, 32, 4
    PARA_INIT = 0.01

    root = jax.random.PRNGKey(0)
    k_p, k_s1, k_s2 = jax.random.split(root, 3)

    params = init_params(k_p, H, LABEL, PARA_INIT)
    sent1 = jax.random.normal(k_s1, (B, L1, H), jnp.float32)
    sent2 = jax.random.normal(k_s2, (B, L2, H), jnp.float32)

    out = atten_forward(sent1, sent2, params)
    out = jax.block_until_ready(out)

    ref = atten_reference(sent1, sent2, params)
    assert out.shape == (B, LABEL)
    # bf16 MXU operands + approx reciprocal in the softmax -> slightly relaxed tolerance.
    assert jnp.allclose(out, ref, rtol=2e-2, atol=2e-3), "kernel/reference mismatch"

    print("KERNEL_OK")
</pallas_src>

<mosaic_0001>
module attributes {stable_mosaic.version = 11 : i64} {
  func.func @kernel(%arg0: i32, %arg1: memref<16x16x32xbf16, #tpu.memory_space<vmem>>, %arg2: memref<32x32xbf16, #tpu.memory_space<vmem>>, %arg3: memref<1x32xf32, #tpu.memory_space<vmem>>, %arg4: memref<32x32xbf16, #tpu.memory_space<vmem>>, %arg5: memref<1x32xf32, #tpu.memory_space<vmem>>, %arg6: memref<64x32xbf16, #tpu.memory_space<vmem>>, %arg7: memref<1x32xf32, #tpu.memory_space<vmem>>, %arg8: memref<32x32xbf16, #tpu.memory_space<vmem>>, %arg9: memref<1x32xf32, #tpu.memory_space<vmem>>, %arg10: memref<64x32xbf16, #tpu.memory_space<vmem>>, %arg11: memref<1x32xf32, #tpu.memory_space<vmem>>, %arg12: memref<32x32xbf16, #tpu.memory_space<vmem>>, %arg13: memref<1x32xf32, #tpu.memory_space<vmem>>, %arg14: memref<32x128xbf16, #tpu.memory_space<vmem>>, %arg15: memref<1x128xf32, #tpu.memory_space<vmem>>, %arg16: memref<16x128xf32, #tpu.memory_space<vmem>>) attributes {dimension_semantics = [#tpu.dimension_semantics<parallel>], iteration_bounds = array<i64: 1>, scalar_prefetch = 0 : i64, scratch_operands = 0 : i64, tpu.core_type = #tpu.core_type<tc>, window_params = [{transform_indices = @transform_0, window_bounds = array<i64: 16, 16, 32>}, {pipeline_mode = #tpu.pipeline_mode<synchronous>, transform_indices = @transform_1, window_bounds = array<i64: 32, 32>}, {pipeline_mode = #tpu.pipeline_mode<synchronous>, transform_indices = @transform_2, window_bounds = array<i64: 1, 32>}, {pipeline_mode = #tpu.pipeline_mode<synchronous>, transform_indices = @transform_3, window_bounds = array<i64: 32, 32>}, {pipeline_mode = #tpu.pipeline_mode<synchronous>, transform_indices = @transform_4, window_bounds = array<i64: 1, 32>}, {pipeline_mode = #tpu.pipeline_mode<synchronous>, transform_indices = @transform_5, window_bounds = array<i64: 64, 32>}, {pipeline_mode = #tpu.pipeline_mode<synchronous>, transform_indices = @transform_6, window_bounds = array<i64: 1, 32>}, {pipeline_mode = #tpu.pipeline_mode<synchronous>, transform_indices = @transform_7, window_bounds = array<i64: 32, 32>}, {pipeline_mode = #tpu.pipeline_mode<synchronous>, transform_indices = @transform_8, window_bounds = array<i64: 1, 32>}, {pipeline_mode = #tpu.pipeline_mode<synchronous>, transform_indices = @transform_9, window_bounds = array<i64: 64, 32>}, {pipeline_mode = #tpu.pipeline_mode<synchronous>, transform_indices = @transform_10, window_bounds = array<i64: 1, 32>}, {pipeline_mode = #tpu.pipeline_mode<synchronous>, transform_indices = @transform_11, window_bounds = array<i64: 32, 32>}, {pipeline_mode = #tpu.pipeline_mode<synchronous>, transform_indices = @transform_12, window_bounds = array<i64: 1, 32>}, {pipeline_mode = #tpu.pipeline_mode<synchronous>, transform_indices = @transform_13, window_bounds = array<i64: 32, 128>}, {pipeline_mode = #tpu.pipeline_mode<synchronous>, transform_indices = @transform_14, window_bounds = array<i64: 1, 128>}, {transform_indices = @transform_15, window_bounds = array<i64: 16, 128>}]} {
    %c0 = arith.constant 0 : index
    %c0_0 = arith.constant 0 : index
    %c0_1 = arith.constant 0 : index
    %0 = vector.load %arg1[%c0, %c0_0, %c0_1] : memref<16x16x32xbf16, #tpu.memory_space<vmem>>, vector<16x16x32xbf16>
    %1 = vector.shape_cast %0 : vector<16x16x32xbf16> to vector<256x32xbf16>
    %c0_2 = arith.constant 0 : index
    %c0_3 = arith.constant 0 : index
    %2 = vector.load %arg2[%c0_2, %c0_3] : memref<32x32xbf16, #tpu.memory_space<vmem>>, vector<32x32xbf16>
    %cst = arith.constant dense<0.000000e+00> : vector<256x32xf32>
    %3 = tpu.matmul %1, %2, %cst {dimension_numbers = #tpu.dot_dimension_numbers<[1], [0], [0], [1], [0, 0, 1, 1], [], []>} : vector<256x32xbf16>, vector<32x32xbf16>, vector<256x32xf32> -> vector<256x32xf32>
    %c0_4 = arith.constant 0 : index
    %c0_5 = arith.constant 0 : index
    %4 = vector.load %arg3[%c0_4, %c0_5] : memref<1x32xf32, #tpu.memory_space<vmem>>, vector<1x32xf32>
    %5 = vector.broadcast %4 : vector<1x32xf32> to vector<256x32xf32>
    %6 = arith.addf %3, %5 : vector<256x32xf32>
    %cst_6 = arith.constant 0.000000e+00 : f32
    %7 = vector.broadcast %cst_6 : f32 to vector<256x32xf32>
    %8 = arith.maximumf %6, %7 : vector<256x32xf32>
    %9 = arith.truncf %8 : vector<256x32xf32> to vector<256x32xbf16>
    %c0_7 = arith.constant 0 : index
    %c0_8 = arith.constant 0 : index
    %10 = vector.load %arg4[%c0_7, %c0_8] : memref<32x32xbf16, #tpu.memory_space<vmem>>, vector<32x32xbf16>
    %cst_9 = arith.constant dense<0.000000e+00> : vector<256x32xf32>
    %11 = tpu.matmul %9, %10, %cst_9 {dimension_numbers = #tpu.dot_dimension_numbers<[1], [0], [0], [1], [0, 0, 1, 1], [], []>} : vector<256x32xbf16>, vector<32x32xbf16>, vector<256x32xf32> -> vector<256x32xf32>
    %c0_10 = arith.constant 0 : index
    %c0_11 = arith.constant 0 : index
    %12 = vector.load %arg5[%c0_10, %c0_11] : memref<1x32xf32, #tpu.memory_space<vmem>>, vector<1x32xf32>
    %13 = vector.broadcast %12 : vector<1x32xf32> to vector<256x32xf32>
    %14 = arith.addf %11, %13 : vector<256x32xf32>
    %cst_12 = arith.constant 0.000000e+00 : f32
    %15 = vector.broadcast %cst_12 : f32 to vector<256x32xf32>
    %16 = arith.maximumf %14, %15 : vector<256x32xf32>
    %17 = arith.truncf %16 : vector<256x32xf32> to vector<256x32xbf16>
    %18 = vector.shape_cast %17 : vector<256x32xbf16> to vector<16x16x32xbf16>
    "tpu.trace_start"() <{level = 10 : i32, message = "bld,bmd->blm"}> : () -> ()
    %cst_13 = arith.constant dense<0.000000e+00> : vector<16x16x16xf32>
    %19 = tpu.matmul %18, %18, %cst_13 {dimension_numbers = #tpu.dot_dimension_numbers<[2], [2], [1], [1], [0, 0, 0, 1, 1, 1], [0], [0]>} : vector<16x16x32xbf16>, vector<16x16x32xbf16>, vector<16x16x16xf32> -> vector<16x16x16xf32>
    "tpu.trace_stop"() : () -> ()
    %20 = tpu.iota {dimensions = array<i32: 0>} : vector<16x16xi32>
    %21 = tpu.iota {dimensions = array<i32: 1>} : vector<16x16xi32>
    %c8_i32 = arith.constant 8 : i32
    %22 = vector.broadcast %c8_i32 : i32 to vector<16x16xi32>
    %23 = arith.cmpi slt, %20, %22 : vector<16x16xi32>
    %c8_i32_14 = arith.constant 8 : i32
    %24 = vector.broadcast %c8_i32_14 : i32 to vector<16x16xi32>
    %25 = arith.cmpi slt, %21, %24 : vector<16x16xi32>
    %26 = arith.xori %23, %25 : vector<16x16xi1>
    %27 = vector.shape_cast %26 : vector<16x16xi1> to vector<1x16x16xi1>
    %cst_15 = arith.constant -1.000000e+30 : f32
    %28 = vector.shape_cast %27 : vector<1x16x16xi1> to vector<1x16x16xi1>
    %29 = vector.broadcast %28 : vector<1x16x16xi1> to vector<16x16x16xi1>
    %30 = vector.broadcast %cst_15 : f32 to vector<16x16x16xf32>
    %31 = arith.select %29, %19, %30 : vector<16x16x16xi1>, vector<16x16x16xf32>
    %cst_16 = arith.constant dense<0xFF800000> : vector<16x16xf32>
    %32 = vector.multi_reduction <maximumf>, %31, %cst_16 [2] : vector<16x16x16xf32> to vector<16x16xf32>
    %33 = vector.shape_cast %32 : vector<16x16xf32> to vector<16x16x1xf32>
    %34 = vector.broadcast %33 : vector<16x16x1xf32> to vector<16x16x16xf32>
    %35 = arith.subf %31, %34 : vector<16x16x16xf32>
    %36 = math.exp %35 : vector<16x16x16xf32>
    %cst_17 = arith.constant dense<0.000000e+00> : vector<16x16xf32>
    %37 = vector.multi_reduction <add>, %36, %cst_17 [2] : vector<16x16x16xf32> to vector<16x16xf32>
    %38 = vector.shape_cast %37 : vector<16x16xf32> to vector<16x16x1xf32>
    %39 = tpu.reciprocal %38 {approx = true} : vector<16x16x1xf32> -> vector<16x16x1xf32>
    %40 = vector.broadcast %39 : vector<16x16x1xf32> to vector<16x16x16xf32>
    %41 = arith.mulf %36, %40 : vector<16x16x16xf32>
    %42 = arith.truncf %41 : vector<16x16x16xf32> to vector<16x16x16xbf16>
    "tpu.trace_start"() <{level = 10 : i32, message = "blm,bmd->bld"}> : () -> ()
    %cst_18 = arith.constant dense<0.000000e+00> : vector<16x16x32xf32>
    %43 = tpu.matmul %42, %0, %cst_18 {dimension_numbers = #tpu.dot_dimension_numbers<[2], [1], [1], [2], [0, 0, 0, 1, 1, 2], [0], [0]>} : vector<16x16x16xbf16>, vector<16x16x32xbf16>, vector<16x16x32xf32> -> vector<16x16x32xf32>
    "tpu.trace_stop"() : () -> ()
    %44 = vector.shape_cast %43 : vector<16x16x32xf32> to vector<256x32xf32>
    %45 = arith.truncf %44 : vector<256x32xf32> to vector<256x32xbf16>
    %46 = tpu.concatenate %1, %45 in 1 : vector<256x32xbf16>, vector<256x32xbf16> -> vector<256x64xbf16>
    %c0_19 = arith.constant 0 : index
    %c0_20 = arith.constant 0 : index
    %47 = vector.load %arg6[%c0_19, %c0_20] : memref<64x32xbf16, #tpu.memory_space<vmem>>, vector<64x32xbf16>
    %cst_21 = arith.constant dense<0.000000e+00> : vector<256x32xf32>
    %48 = tpu.matmul %46, %47, %cst_21 {dimension_numbers = #tpu.dot_dimension_numbers<[1], [0], [0], [1], [0, 0, 1, 1], [], []>} : vector<256x64xbf16>, vector<64x32xbf16>, vector<256x32xf32> -> vector<256x32xf32>
    %c0_22 = arith.constant 0 : index
    %c0_23 = arith.constant 0 : index
    %49 = vector.load %arg7[%c0_22, %c0_23] : memref<1x32xf32, #tpu.memory_space<vmem>>, vector<1x32xf32>
    %50 = vector.broadcast %49 : vector<1x32xf32> to vector<256x32xf32>
    %51 = arith.addf %48, %50 : vector<256x32xf32>
    %cst_24 = arith.constant 0.000000e+00 : f32
    %52 = vector.broadcast %cst_24 : f32 to vector<256x32xf32>
    %53 = arith.maximumf %51, %52 : vector<256x32xf32>
    %54 = arith.truncf %53 : vector<256x32xf32> to vector<256x32xbf16>
    %c0_25 = arith.constant 0 : index
    %c0_26 = arith.constant 0 : index
    %55 = vector.load %arg8[%c0_25, %c0_26] : memref<32x32xbf16, #tpu.memory_space<vmem>>, vector<32x32xbf16>
    %cst_27 = arith.constant dense<0.000000e+00> : vector<256x32xf32>
    %56 = tpu.matmul %54, %55, %cst_27 {dimension_numbers = #tpu.dot_dimension_numbers<[1], [0], [0], [1], [0, 0, 1, 1], [], []>} : vector<256x32xbf16>, vector<32x32xbf16>, vector<256x32xf32> -> vector<256x32xf32>
    %c0_28 = arith.constant 0 : index
    %c0_29 = arith.constant 0 : index
    %57 = vector.load %arg9[%c0_28, %c0_29] : memref<1x32xf32, #tpu.memory_space<vmem>>, vector<1x32xf32>
    %58 = vector.broadcast %57 : vector<1x32xf32> to vector<256x32xf32>
    %59 = arith.addf %56, %58 : vector<256x32xf32>
    %cst_30 = arith.constant 0.000000e+00 : f32
    %60 = vector.broadcast %cst_30 : f32 to vector<256x32xf32>
    %61 = arith.maximumf %59, %60 : vector<256x32xf32>
    %62 = vector.shape_cast %61 : vector<256x32xf32> to vector<16x16x32xf32>
    %63 = vector.extract_strided_slice %62 {offsets = [0, 0, 0], sizes = [16, 8, 32], strides = [1, 1, 1]} : vector<16x16x32xf32> to vector<16x8x32xf32>
    %cst_31 = arith.constant dense<0.000000e+00> : vector<16x32xf32>
    %64 = vector.multi_reduction <add>, %63, %cst_31 [1] : vector<16x8x32xf32> to vector<16x32xf32>
    %65 = vector.extract_strided_slice %62 {offsets = [0, 8, 0], sizes = [16, 8, 32], strides = [1, 1, 1]} : vector<16x16x32xf32> to vector<16x8x32xf32>
    %cst_32 = arith.constant dense<0.000000e+00> : vector<16x32xf32>
    %66 = vector.multi_reduction <add>, %65, %cst_32 [1] : vector<16x8x32xf32> to vector<16x32xf32>
    %67 = tpu.concatenate %64, %66 in 1 : vector<16x32xf32>, vector<16x32xf32> -> vector<16x64xf32>
    %68 = arith.truncf %67 : vector<16x64xf32> to vector<16x64xbf16>
    %c0_33 = arith.constant 0 : index
    %c0_34 = arith.constant 0 : index
    %69 = vector.load %arg10[%c0_33, %c0_34] : memref<64x32xbf16, #tpu.memory_space<vmem>>, vector<64x32xbf16>
    %cst_35 = arith.constant dense<0.000000e+00> : vector<16x32xf32>
    %70 = tpu.matmul %68, %69, %cst_35 {dimension_numbers = #tpu.dot_dimension_numbers<[1], [0], [0], [1], [0, 0, 1, 1], [], []>} : vector<16x64xbf16>, vector<64x32xbf16>, vector<16x32xf32> -> vector<16x32xf32>
    %c0_36 = arith.constant 0 : index
    %c0_37 = arith.constant 0 : index
    %71 = vector.load %arg11[%c0_36, %c0_37] : memref<1x32xf32, #tpu.memory_space<vmem>>, vector<1x32xf32>
    %72 = vector.broadcast %71 : vector<1x32xf32> to vector<16x32xf32>
    %73 = arith.addf %70, %72 : vector<16x32xf32>
    %cst_38 = arith.constant 0.000000e+00 : f32
    %74 = vector.broadcast %cst_38 : f32 to vector<16x32xf32>
    %75 = arith.maximumf %73, %74 : vector<16x32xf32>
    %76 = arith.truncf %75 : vector<16x32xf32> to vector<16x32xbf16>
    %c0_39 = arith.constant 0 : index
    %c0_40 = arith.constant 0 : index
    %77 = vector.load %arg12[%c0_39, %c0_40] : memref<32x32xbf16, #tpu.memory_space<vmem>>, vector<32x32xbf16>
    %cst_41 = arith.constant dense<0.000000e+00> : vector<16x32xf32>
    %78 = tpu.matmul %76, %77, %cst_41 {dimension_numbers = #tpu.dot_dimension_numbers<[1], [0], [0], [1], [0, 0, 1, 1], [], []>} : vector<16x32xbf16>, vector<32x32xbf16>, vector<16x32xf32> -> vector<16x32xf32>
    %c0_42 = arith.constant 0 : index
    %c0_43 = arith.constant 0 : index
    %79 = vector.load %arg13[%c0_42, %c0_43] : memref<1x32xf32, #tpu.memory_space<vmem>>, vector<1x32xf32>
    %80 = vector.broadcast %79 : vector<1x32xf32> to vector<16x32xf32>
    %81 = arith.addf %78, %80 : vector<16x32xf32>
    %cst_44 = arith.constant 0.000000e+00 : f32
    %82 = vector.broadcast %cst_44 : f32 to vector<16x32xf32>
    %83 = arith.maximumf %81, %82 : vector<16x32xf32>
    %84 = arith.truncf %83 : vector<16x32xf32> to vector<16x32xbf16>
    %c0_45 = arith.constant 0 : index
    %c0_46 = arith.constant 0 : index
    %85 = vector.load %arg14[%c0_45, %c0_46] : memref<32x128xbf16, #tpu.memory_space<vmem>>, vector<32x128xbf16>
    %cst_47 = arith.constant dense<0.000000e+00> : vector<16x128xf32>
    %86 = tpu.matmul %84, %85, %cst_47 {dimension_numbers = #tpu.dot_dimension_numbers<[1], [0], [0], [1], [0, 0, 1, 1], [], []>} : vector<16x32xbf16>, vector<32x128xbf16>, vector<16x128xf32> -> vector<16x128xf32>
    %c0_48 = arith.constant 0 : index
    %c0_49 = arith.constant 0 : index
    %87 = vector.load %arg15[%c0_48, %c0_49] : memref<1x128xf32, #tpu.memory_space<vmem>>, vector<1x128xf32>
    %88 = vector.broadcast %87 : vector<1x128xf32> to vector<16x128xf32>
    %89 = arith.addf %86, %88 : vector<16x128xf32>
    %90 = tpu.iota {dimensions = array<i32: 1>} : vector<16x128xi32>
    %c4_i32 = arith.constant 4 : i32
    %91 = vector.broadcast %c4_i32 : i32 to vector<16x128xi32>
    %92 = arith.cmpi slt, %90, %91 : vector<16x128xi32>
    %cst_50 = arith.constant -1.000000e+30 : f32
    %93 = vector.broadcast %cst_50 : f32 to vector<16x128xf32>
    %94 = arith.select %92, %89, %93 : vector<16x128xi1>, vector<16x128xf32>
    %cst_51 = arith.constant dense<0xFF800000> : vector<16xf32>
    %95 = vector.multi_reduction <maximumf>, %94, %cst_51 [1] : vector<16x128xf32> to vector<16xf32>
    %96 = vector.shape_cast %95 : vector<16xf32> to vector<16x1xf32>
    %97 = vector.broadcast %96 : vector<16x1xf32> to vector<16x128xf32>
    %98 = arith.subf %94, %97 : vector<16x128xf32>
    %99 = math.exp %98 : vector<16x128xf32>
    %cst_52 = arith.constant dense<0.000000e+00> : vector<16xf32>
    %100 = vector.multi_reduction <add>, %99, %cst_52 [1] : vector<16x128xf32> to vector<16xf32>
    %101 = vector.shape_cast %100 : vector<16xf32> to vector<16x1xf32>
    %102 = math.log %101 : vector<16x1xf32>
    %103 = arith.addf %102, %96 : vector<16x1xf32>
    %104 = vector.broadcast %103 : vector<16x1xf32> to vector<16x128xf32>
    %105 = arith.subf %94, %104 : vector<16x128xf32>
    %c0_53 = arith.constant 0 : index
    %c0_54 = arith.constant 0 : index
    %106 = vector.load %arg16[%c0_53, %c0_54] : memref<16x128xf32, #tpu.memory_space<vmem>>, vector<16x128xf32>
    tpu.vector_store %arg16[%c0_53, %c0_54], %105 {strides = array<i32>} : memref<16x128xf32, #tpu.memory_space<vmem>>, vector<16x128xf32>,
    return
  }
  func.func @transform_0(%arg0: i32) -> (i32, i32, i32) {
    %c0_i32 = arith.constant 0 : i32
    %c0_i32_0 = arith.constant 0 : i32
    %c0_i32_1 = arith.constant 0 : i32
    return %arg0, %c0_i32, %c0_i32_0 : i32, i32, i32
  }
  func.func @transform_1(%arg0: i32) -> (i32, i32) {
    %c0_i32 = arith.constant 0 : i32
    %c0_i32_0 = arith.constant 0 : i32
    %c0_i32_1 = arith.constant 0 : i32
    return %c0_i32, %c0_i32_0 : i32, i32
  }
  func.func @transform_2(%arg0: i32) -> (i32, i32) {
    %c0_i32 = arith.constant 0 : i32
    %c0_i32_0 = arith.constant 0 : i32
    %c0_i32_1 = arith.constant 0 : i32
    return %c0_i32, %c0_i32_0 : i32, i32
  }
  func.func @transform_3(%arg0: i32) -> (i32, i32) {
    %c0_i32 = arith.constant 0 : i32
    %c0_i32_0 = arith.constant 0 : i32
    %c0_i32_1 = arith.constant 0 : i32
    return %c0_i32, %c0_i32_0 : i32, i32
  }
  func.func @transform_4(%arg0: i32) -> (i32, i32) {
    %c0_i32 = arith.constant 0 : i32
    %c0_i32_0 = arith.constant 0 : i32
    %c0_i32_1 = arith.constant 0 : i32
    return %c0_i32, %c0_i32_0 : i32, i32
  }
  func.func @transform_5(%arg0: i32) -> (i32, i32) {
    %c0_i32 = arith.constant 0 : i32
    %c0_i32_0 = arith.constant 0 : i32
    %c0_i32_1 = arith.constant 0 : i32
    return %c0_i32, %c0_i32_0 : i32, i32
  }
  func.func @transform_6(%arg0: i32) -> (i32, i32) {
    %c0_i32 = arith.constant 0 : i32
    %c0_i32_0 = arith.constant 0 : i32
    %c0_i32_1 = arith.constant 0 : i32
    return %c0_i32, %c0_i32_0 : i32, i32
  }
  func.func @transform_7(%arg0: i32) -> (i32, i32) {
    %c0_i32 = arith.constant 0 : i32
    %c0_i32_0 = arith.constant 0 : i32
    %c0_i32_1 = arith.constant 0 : i32
    return %c0_i32, %c0_i32_0 : i32, i32
  }
  func.func @transform_8(%arg0: i32) -> (i32, i32) {
    %c0_i32 = arith.constant 0 : i32
    %c0_i32_0 = arith.constant 0 : i32
    %c0_i32_1 = arith.constant 0 : i32
    return %c0_i32, %c0_i32_0 : i32, i32
  }
  func.func @transform_9(%arg0: i32) -> (i32, i32) {
    %c0_i32 = arith.constant 0 : i32
    %c0_i32_0 = arith.constant 0 : i32
    %c0_i32_1 = arith.constant 0 : i32
    return %c0_i32, %c0_i32_0 : i32, i32
  }
  func.func @transform_10(%arg0: i32) -> (i32, i32) {
    %c0_i32 = arith.constant 0 : i32
    %c0_i32_0 = arith.constant 0 : i32
    %c0_i32_1 = arith.constant 0 : i32
    return %c0_i32, %c0_i32_0 : i32, i32
  }
  func.func @transform_11(%arg0: i32) -> (i32, i32) {
    %c0_i32 = arith.constant 0 : i32
    %c0_i32_0 = arith.constant 0 : i32
    %c0_i32_1 = arith.constant 0 : i32
    return %c0_i32, %c0_i32_0 : i32, i32
  }
  func.func @transform_12(%arg0: i32) -> (i32, i32) {
    %c0_i32 = arith.constant 0 : i32
    %c0_i32_0 = arith.constant 0 : i32
    %c0_i32_1 = arith.constant 0 : i32
    return %c0_i32, %c0_i32_0 : i32, i32
  }
  func.func @transform_13(%arg0: i32) -> (i32, i32) {
    %c0_i32 = arith.constant 0 : i32
    %c0_i32_0 = arith.constant 0 : i32
    %c0_i32_1 = arith.constant 0 : i32
    return %c0_i32, %c0_i32_0 : i32, i32
  }
  func.func @transform_14(%arg0: i32) -> (i32, i32) {
    %c0_i32 = arith.constant 0 : i32
    %c0_i32_0 = arith.constant 0 : i32
    %c0_i32_1 = arith.constant 0 : i32
    return %c0_i32, %c0_i32_0 : i32, i32
  }
  func.func @transform_15(%arg0: i32) -> (i32, i32) {
    %c0_i32 = arith.constant 0 : i32
    %c0_i32_0 = arith.constant 0 : i32
    return %arg0, %c0_i32 : i32, i32
  }
}

</mosaic_0001>

<llo_original>
// kernel: tpu_custom_call.1
$region0: #{tpu_custom_call.1}
  #allocation0 [shape = 'u32[]', space=smem, size = 0x4, offset = 0x4, fixed_abs, tag = 'smem constant byte address 0x4 - core index']
  #allocation1 [shape = 'u32[144,128]{1,0:T(1,128)}', space=vmem, size = 0x12000, scoped, tag = 'internal scratch']
  %s0 = inlined_call_operand.hbm [shape: bf16[16,16,32], index: 0, kind: input, shape index: {}]
  %s1 = inlined_call_operand.vmem [shape: bf16[32,32], index: 1, kind: input, shape index: {}]
  %s2 = inlined_call_operand.vmem [shape: f32[1,32], index: 2, kind: input, shape index: {}]
  %s3 = inlined_call_operand.vmem [shape: bf16[32,32], index: 3, kind: input, shape index: {}]
  %s4 = inlined_call_operand.vmem [shape: f32[1,32], index: 4, kind: input, shape index: {}]
  %s5 = inlined_call_operand.vmem [shape: bf16[64,32], index: 5, kind: input, shape index: {}]
  %s6 = inlined_call_operand.vmem [shape: f32[1,32], index: 6, kind: input, shape index: {}]
  %s7 = inlined_call_operand.vmem [shape: bf16[32,32], index: 7, kind: input, shape index: {}]
  %s8 = inlined_call_operand.vmem [shape: f32[1,32], index: 8, kind: input, shape index: {}]
  %s9 = inlined_call_operand.vmem [shape: bf16[64,32], index: 9, kind: input, shape index: {}]
  %s10 = inlined_call_operand.vmem [shape: f32[1,32], index: 10, kind: input, shape index: {}]
  %s11 = inlined_call_operand.vmem [shape: bf16[32,32], index: 11, kind: input, shape index: {}]
  %s12 = inlined_call_operand.vmem [shape: f32[1,32], index: 12, kind: input, shape index: {}]
  %s13 = inlined_call_operand.vmem [shape: bf16[32,128], index: 13, kind: input, shape index: {}]
  %s14 = inlined_call_operand.vmem [shape: f32[1,128], index: 14, kind: input, shape index: {}]
  %s15 = inlined_call_operand.hbm [shape: f32[16,128], index: 15, kind: output, shape index: {}]
  %s16 = sld [smem:[#allocation0]]
  $region74: #{tpu_custom_call.1} parent=0
    _
  %s18 = ssub.s32 1, %s16
  %s19 = scalar_select 0, %s18, %s16
  $region1: #{tpu_custom_call.1} parent=0
    #allocation2 [shape = 'u8[65536]{0}', space=vmem, size = 0x10000, scoped, tag = 'input window, operand 0, single buffered']
    #allocation3 [shape = 's32[1]{0}', space=sflag, size = 0x4, scoped, tag = 'scoped memory for tpu_custom_call.1']
    #allocation4 [shape = 's32[1]{0}', space=sflag, size = 0x4, scoped, tag = 'scoped memory for tpu_custom_call.1']
    #allocation5 [shape = 'u8[8192]{0}', space=vmem, size = 0x2000, scoped, tag = 'output window, operand 0, single buffered']
    %20 = vsyncpa [#allocation3], 0
    %21 = vsyncpa [#allocation4], 0
    // Predicated region
    $region2: #{tpu_custom_call.1} parent=1 // pred_check
      _
    $region3: #{tpu_custom_call.1} parent=1 // pred_check_branch
      %23 = sbr.rel (0) target = $region5
    $region4: #{tpu_custom_call.1} parent=1 // pred_region
      %s25 = ssub.s32 2048, 2048
      %26 = vsyncadd [#allocation3], %s25
      %s27 = sshll.u32 [#allocation2], 4
      %s28 = int_to_ptr.vmem [resolvable:$true] %s27
      %33 = dma.hbm_to_vmem [thread:$0]  %s0, 2048, %s28, [#allocation3], 64, 64, 4
    $region5: #{tpu_custom_call.1} parent=1 // pred_fallthru
      _
    // Predicated region
    $region6: #{tpu_custom_call.1} parent=1 // pred_check
      _
    $region7: #{tpu_custom_call.1} parent=1 // pred_check_branch
      %35 = sbr.rel (0) target = $region9
    $region8: #{tpu_custom_call.1} parent=1 // pred_region
      _
    $region9: #{tpu_custom_call.1} parent=1 // pred_fallthru
      _
    // Predicated region
    $region10: #{tpu_custom_call.1} parent=1 // pred_check
      _
    $region11: #{tpu_custom_call.1} parent=1 // pred_check_branch
      %37 = sbr.rel (0) target = $region13
    $region12: #{tpu_custom_call.1} parent=1 // pred_region
      _
    $region13: #{tpu_custom_call.1} parent=1 // pred_fallthru
      _
    // Predicated region
    $region14: #{tpu_custom_call.1} parent=1 // pred_check
      _
    $region15: #{tpu_custom_call.1} parent=1 // pred_check_branch
      %39 = sbr.rel (0) target = $region17
    $region16: #{tpu_custom_call.1} parent=1 // pred_region
      _
    $region17: #{tpu_custom_call.1} parent=1 // pred_fallthru
      _
    // Predicated region
    $region18: #{tpu_custom_call.1} parent=1 // pred_check
      _
    $region19: #{tpu_custom_call.1} parent=1 // pred_check_branch
      %41 = sbr.rel (0) target = $region21
    $region20: #{tpu_custom_call.1} parent=1 // pred_region
      _
    $region21: #{tpu_custom_call.1} parent=1 // pred_fallthru
      _
    // Predicated region
    $region22: #{tpu_custom_call.1} parent=1 // pred_check
      _
    $region23: #{tpu_custom_call.1} parent=1 // pred_check_branch
      %43 = sbr.rel (0) target = $region25
    $region24: #{tpu_custom_call.1} parent=1 // pred_region
      _
    $region25: #{tpu_custom_call.1} parent=1 // pred_fallthru
      _
    // Predicated region
    $region26: #{tpu_custom_call.1} parent=1 // pred_check
      _
    $region27: #{tpu_custom_call.1} parent=1 // pred_check_branch
      %45 = sbr.rel (0) target = $region29
    $region28: #{tpu_custom_call.1} parent=1 // pred_region
      _
    $region29: #{tpu_custom_call.1} parent=1 // pred_fallthru
      _
    // Predicated region
    $region30: #{tpu_custom_call.1} parent=1 // pred_check
      _
    $region31: #{tpu_custom_call.1} parent=1 // pred_check_branch
      %47 = sbr.rel (0) target = $region33
    $region32: #{tpu_custom_call.1} parent=1 // pred_region
      _
    $region33: #{tpu_custom_call.1} parent=1 // pred_fallthru
      _
    // Predicated region
    $region34: #{tpu_custom_call.1} parent=1 // pred_check
      _
    $region35: #{tpu_custom_call.1} parent=1 // pred_check_branch
      %49 = sbr.rel (0) target = $region37
    $region36: #{tpu_custom_call.1} parent=1 // pred_region
      _
    $region37: #{tpu_custom_call.1} parent=1 // pred_fallthru
      _
    // Predicated region
    $region38: #{tpu_custom_call.1} parent=1 // pred_check
      _
    $region39: #{tpu_custom_call.1} parent=1 // pred_check_branch
      %51 = sbr.rel (0) target = $region41
    $region40: #{tpu_custom_call.1} parent=1 // pred_region
      _
    $region41: #{tpu_custom_call.1} parent=1 // pred_fallthru
      _
    // Predicated region
    $region42: #{tpu_custom_call.1} parent=1 // pred_check
      _
    $region43: #{tpu_custom_call.1} parent=1 // pred_check_branch
      %53 = sbr.rel (0) target = $region45
    $region44: #{tpu_custom_call.1} parent=1 // pred_region
      _
    $region45: #{tpu_custom_call.1} parent=1 // pred_fallthru
      _
    // Predicated region
    $region46: #{tpu_custom_call.1} parent=1 // pred_check
      _
    $region47: #{tpu_custom_call.1} parent=1 // pred_check_branch
      %55 = sbr.rel (0) target = $region49
    $region48: #{tpu_custom_call.1} parent=1 // pred_region
      _
    $region49: #{tpu_custom_call.1} parent=1 // pred_fallthru
      _
    // Predicated region
    $region50: #{tpu_custom_call.1} parent=1 // pred_check
      _
    $region51: #{tpu_custom_call.1} parent=1 // pred_check_branch
      %57 = sbr.rel (0) target = $region53
    $region52: #{tpu_custom_call.1} parent=1 // pred_region
      _
    $region53: #{tpu_custom_call.1} parent=1 // pred_fallthru
      _
    // Predicated region
    $region54: #{tpu_custom_call.1} parent=1 // pred_check
      _
    $region55: #{tpu_custom_call.1} parent=1 // pred_check_branch
      %59 = sbr.rel (0) target = $region57
    $region56: #{tpu_custom_call.1} parent=1 // pred_region
      _
    $region57: #{tpu_custom_call.1} parent=1 // pred_fallthru
      _
    // Predicated region
    $region58: #{tpu_custom_call.1} parent=1 // pred_check
      _
    $region59: #{tpu_custom_call.1} parent=1 // pred_check_branch
      %61 = sbr.rel (0) target = $region61
    $region60: #{tpu_custom_call.1} parent=1 // pred_region
      _
    $region61: #{tpu_custom_call.1} parent=1 // pred_fallthru
      _
    // Predicated region
    $region62: #{tpu_custom_call.1} parent=1 // pred_check
      _
    $region63: #{tpu_custom_call.1} parent=1 // pred_check_branch
      %63 = sbr.rel (0) target = $region65
    $region64: #{tpu_custom_call.1} parent=1 // pred_region
      %64 = dma.done [#allocation3], 2048
    $region65: #{tpu_custom_call.1} parent=1 // pred_fallthru
      _
    %v66 = vld [vmem:[#allocation2] sm:$0xf]
    %v67 = vld [vmem:[#allocation2 + $0x4] sm:$0xf]
    %v68 = vld [vmem:[#allocation2 + $0x8] sm:$0xf]
    %v69 = vld [vmem:[#allocation2 + $0xc] sm:$0xf]
    %v70 = vld [vmem:[#allocation2 + $0x10] sm:$0xf]
    %v71 = vld [vmem:[#allocation2 + $0x14] sm:$0xf]
    %v72 = vld [vmem:[#allocation2 + $0x18] sm:$0xf]
    %v73 = vld [vmem:[#allocation2 + $0x1c] sm:$0xf]
    %v74 = vld [vmem:[#allocation2 + $0x20] sm:$0xf]
    %v75 = vld [vmem:[#allocation2 + $0x24] sm:$0xf]
    %v76 = vld [vmem:[#allocation2 + $0x28] sm:$0xf]
    %v77 = vld [vmem:[#allocation2 + $0x2c] sm:$0xf]
    %v78 = vld [vmem:[#allocation2 + $0x30] sm:$0xf]
    %v79 = vld [vmem:[#allocation2 + $0x34] sm:$0xf]
    %v80 = vld [vmem:[#allocation2 + $0x38] sm:$0xf]
    %v81 = vld [vmem:[#allocation2 + $0x3c] sm:$0xf]
    %v82 = vld [vmem:[#allocation2 + $0x40] sm:$0xf]
    %v83 = vld [vmem:[#allocation2 + $0x44] sm:$0xf]
    %v84 = vld [vmem:[#allocation2 + $0x48] sm:$0xf]
    %v85 = vld [vmem:[#allocation2 + $0x4c] sm:$0xf]
    %v86 = vld [vmem:[#allocation2 + $0x50] sm:$0xf]
    %v87 = vld [vmem:[#allocation2 + $0x54] sm:$0xf]
    %v88 = vld [vmem:[#allocation2 + $0x58] sm:$0xf]
    %v89 = vld [vmem:[#allocation2 + $0x5c] sm:$0xf]
    %v90 = vld [vmem:[#allocation2 + $0x60] sm:$0xf]
    %v91 = vld [vmem:[#allocation2 + $0x64] sm:$0xf]
    %v92 = vld [vmem:[#allocation2 + $0x68] sm:$0xf]
    %v93 = vld [vmem:[#allocation2 + $0x6c] sm:$0xf]
    %v94 = vld [vmem:[#allocation2 + $0x70] sm:$0xf]
    %v95 = vld [vmem:[#allocation2 + $0x74] sm:$0xf]
    %v96 = vld [vmem:[#allocation2 + $0x78] sm:$0xf]
    %v97 = vld [vmem:[#allocation2 + $0x7c] sm:$0xf]
    %v98 = vld [vmem:[%s1] sm:$0xf]
    %v99 = vld [vmem:[%s1 + $0x4] sm:$0xf]
    %v100 = vld [vmem:[%s1 + $0x8] sm:$0xf]
    %v101 = vld [vmem:[%s1 + $0xc] sm:$0xf]
    %v102 = vld [vmem:[%s2] sm:$0x1]
    %v104 = vlaneseq
    %v105 = vshrl.u32 %v104, 7
    %v106 = vsub.s32 0, %v105
    %v107 = vrot.slane %v102, %v106
    %v141 = vunpack.c.l.b16 %v66
    %v142 = vunpack.c.l.b16 %v67
    %v143 = vunpack.c.l.b16 %v68
    %v144 = vunpack.c.l.b16 %v69
    %v145 = vunpack.c.l.b16 %v70
    %v146 = vunpack.c.l.b16 %v71
    %v147 = vunpack.c.l.b16 %v72
    %v148 = vunpack.c.l.b16 %v73
    %v149 = vunpack.c.l.b16 %v74
    %v150 = vunpack.c.l.b16 %v75
    %v151 = vunpack.c.l.b16 %v76
    %v152 = vunpack.c.l.b16 %v77
    %v153 = vunpack.c.l.b16 %v78
    %v154 = vunpack.c.l.b16 %v79
    %v155 = vunpack.c.l.b16 %v80
    %v156 = vunpack.c.l.b16 %v81
    %v157 = vunpack.c.l.b16 %v82
    %v158 = vunpack.c.l.b16 %v83
    %v159 = vunpack.c.l.b16 %v84
    %v160 = vunpack.c.l.b16 %v85
    %v161 = vunpack.c.l.b16 %v86
    %v162 = vunpack.c.l.b16 %v87
    %v163 = vunpack.c.l.b16 %v88
    %v164 = vunpack.c.l.b16 %v89
    %v165 = vunpack.c.l.b16 %v90
    %v166 = vunpack.c.l.b16 %v91
    %v167 = vunpack.c.l.b16 %v92
    %v168 = vunpack.c.l.b16 %v93
    %v169 = vunpack.c.l.b16 %v94
    %v170 = vunpack.c.l.b16 %v95
    %v171 = vunpack.c.l.b16 %v96
    %v172 = vunpack.c.l.b16 %v97
    %v173 = vpack.c.b16 %v142, %v141
    %v174 = vpack.c.b16 %v144, %v143
    %v175 = vpack.c.b16 %v146, %v145
    %v176 = vpack.c.b16 %v148, %v147
    %v177 = vpack.c.b16 %v150, %v149
    %v178 = vpack.c.b16 %v152, %v151
    %v179 = vpack.c.b16 %v154, %v153
    %v180 = vpack.c.b16 %v156, %v155
    %v181 = vpack.c.b16 %v158, %v157
    %v182 = vpack.c.b16 %v160, %v159
    %v183 = vpack.c.b16 %v162, %v161
    %v184 = vpack.c.b16 %v164, %v163
    %v185 = vpack.c.b16 %v166, %v165
    %v186 = vpack.c.b16 %v168, %v167
    %v187 = vpack.c.b16 %v170, %v169
    %v188 = vpack.c.b16 %v172, %v171
    %v193 = vunpack.c.l.b16 %v98
    %v194 = vunpack.c.l.b16 %v99
    %v195 = vunpack.c.l.b16 %v100
    %v196 = vunpack.c.l.b16 %v101
    %v197 = vpack.c.b16 %v194, %v193
    %v198 = vpack.c.b16 %v196, %v195
    %vm201 = vcmask 261120
    %v203 = vsel %vm201, %v173, 0
    %v206 = vsel %vm201, %v174, 0
    %v209 = vsel %vm201, %v175, 0
    %v212 = vsel %vm201, %v176, 0
    %v215 = vsel %vm201, %v177, 0
    %v218 = vsel %vm201, %v178, 0
    %v221 = vsel %vm201, %v179, 0
    %v224 = vsel %vm201, %v180, 0
    %v227 = vsel %vm201, %v181, 0
    %v230 = vsel %vm201, %v182, 0
    %v233 = vsel %vm201, %v183, 0
    %v236 = vsel %vm201, %v184, 0
    %v239 = vsel %vm201, %v185, 0
    %v242 = vsel %vm201, %v186, 0
    %v245 = vsel %vm201, %v187, 0
    %v248 = vsel %vm201, %v188, 0
    %250 = vmatprep.subr.bf16.mxu0 0
    %251 = vmatpush1.bf16.msra.mxu0 %v197
    %252 = vmatprep.subr.bf16.mxu0 0
    %253 = vmatpush1.bf16.msra.mxu0 %v198
    %254 = vmatprep.subr.bf16.mxu0 0
    %255 = vmatpush1.bf16.msra.mxu0 0
    %256 = vmatprep.subr.bf16.mxu0 0
    %257 = vmatpush1.bf16.msra.mxu0 0
    %258 = vmatprep.subr.bf16.mxu0 0
    %259 = vmatpush1.bf16.msra.mxu0 0
    %260 = vmatprep.subr.bf16.mxu0 0
    %261 = vmatpush1.bf16.msra.mxu0 0
    %262 = vmatprep.subr.bf16.mxu0 0
    %263 = vmatpush1.bf16.msra.mxu0 0
    %264 = vmatprep.subr.bf16.mxu0 0
    %265 = vmatpush1.bf16.msra.mxu0 0
    %266 = vmatprep.subr.bf16.mxu0 0
    %267 = vmatpush1.bf16.msra.mxu0 0
    %268 = vmatprep.subr.bf16.mxu0 0
    %269 = vmatpush1.bf16.msra.mxu0 0
    %270 = vmatprep.subr.bf16.mxu0 0
    %271 = vmatpush1.bf16.msra.mxu0 0
    %272 = vmatprep.subr.bf16.mxu0 0
    %273 = vmatpush1.bf16.msra.mxu0 0
    %274 = vmatprep.subr.bf16.mxu0 0
    %275 = vmatpush1.bf16.msra.mxu0 0
    %276 = vmatprep.subr.bf16.mxu0 0
    %277 = vmatpush1.bf16.msra.mxu0 0
    %278 = vmatprep.subr.bf16.mxu0 0
    %279 = vmatpush1.bf16.msra.mxu0 0
    %280 = vmatprep.subr.bf16.mxu0 0
    %281 = vmatpush1.bf16.msra.mxu0 0
    %282 = vmatprep.mubr.bf16.mxu0 0
    %283 = vmatmul.mubr.bf16.gmra.mrb[0].mxu0 %v203
    %v284 = vpop.f32.mrb[0].mxu0
    %v285 = vadd.f32 %v107, %v284
    %v286 = vpop.f32.mrb[0].mxu0
    %v287 = vpop.f32.mrb[0].mxu0
    %v288 = vadd.f32 %v107, %v287
    %v289 = vpop.f32.mrb[0].mxu0
    %290 = vmatprep.mubr.bf16.mxu0 0
    %291 = vmatmul.mubr.bf16.gmra.mrb[0].mxu0 %v206
    %v292 = vpop.f32.mrb[0].mxu0
    %v293 = vadd.f32 %v107, %v292
    %v294 = vpop.f32.mrb[0].mxu0
    %v295 = vpop.f32.mrb[0].mxu0
    %v296 = vadd.f32 %v107, %v295
    %v297 = vpop.f32.mrb[0].mxu0
    %298 = vmatprep.mubr.bf16.mxu0 0
    %299 = vmatmul.mubr.bf16.gmra.mrb[0].mxu0 %v209
    %v300 = vpop.f32.mrb[0].mxu0
    %v301 = vadd.f32 %v107, %v300
    %v302 = vpop.f32.mrb[0].mxu0
    %v303 = vpop.f32.mrb[0].mxu0
    %v304 = vadd.f32 %v107, %v303
    %v305 = vpop.f32.mrb[0].mxu0
    %306 = vmatprep.mubr.bf16.mxu0 0
    %307 = vmatmul.mubr.bf16.gmra.mrb[0].mxu0 %v212
    %v308 = vpop.f32.mrb[0].mxu0
    %v309 = vadd.f32 %v107, %v308
    %v310 = vpop.f32.mrb[0].mxu0
    %v311 = vpop.f32.mrb[0].mxu0
    %v312 = vadd.f32 %v107, %v311
    %v313 = vpop.f32.mrb[0].mxu0
    %314 = vmatprep.mubr.bf16.mxu0 0
    %315 = vmatmul.mubr.bf16.gmra.mrb[0].mxu0 %v215
    %v316 = vpop.f32.mrb[0].mxu0
    %v317 = vadd.f32 %v107, %v316
    %v318 = vpop.f32.mrb[0].mxu0
    %v319 = vpop.f32.mrb[0].mxu0
    %v320 = vadd.f32 %v107, %v319
    %v321 = vpop.f32.mrb[0].mxu0
    %322 = vmatprep.mubr.bf16.mxu0 0
    %323 = vmatmul.mubr.bf16.gmra.mrb[0].mxu0 %v218
    %v324 = vpop.f32.mrb[0].mxu0
    %v325 = vadd.f32 %v107, %v324
    %v326 = vpop.f32.mrb[0].mxu0
    %v327 = vpop.f32.mrb[0].mxu0
    %v328 = vadd.f32 %v107, %v327
    %v329 = vpop.f32.mrb[0].mxu0
    %330 = vmatprep.mubr.bf16.mxu0 0
    %331 = vmatmul.mubr.bf16.gmra.mrb[0].mxu0 %v221
    %v332 = vpop.f32.mrb[0].mxu0
    %v333 = vadd.f32 %v107, %v332
    %v334 = vpop.f32.mrb[0].mxu0
    %v335 = vpop.f32.mrb[0].mxu0
    %v336 = vadd.f32 %v107, %v335
    %v337 = vpop.f32.mrb[0].mxu0
    %338 = vmatprep.mubr.bf16.mxu0 0
    %339 = vmatmul.mubr.bf16.gmra.mrb[0].mxu0 %v224
    %v340 = vpop.f32.mrb[0].mxu0
    %v341 = vadd.f32 %v107, %v340
    %v342 = vpop.f32.mrb[0].mxu0
    %v343 = vpop.f32.mrb[0].mxu0
    %v344 = vadd.f32 %v107, %v343
    %v345 = vpop.f32.mrb[0].mxu0
    %346 = vmatprep.mubr.bf16.mxu0 0
    %347 = vmatmul.mubr.bf16.gmra.mrb[0].mxu0 %v227
    %v348 = vpop.f32.mrb[0].mxu0
    %v349 = vadd.f32 %v107, %v348
    %v350 = vpop.f32.mrb[0].mxu0
    %v351 = vpop.f32.mrb[0].mxu0
    %v352 = vadd.f32 %v107, %v351
    %v353 = vpop.f32.mrb[0].mxu0
    %354 = vmatprep.mubr.bf16.mxu0 0
    %355 = vmatmul.mubr.bf16.gmra.mrb[0].mxu0 %v230
    %v356 = vpop.f32.mrb[0].mxu0
    %v357 = vadd.f32 %v107, %v356
    %v358 = vpop.f32.mrb[0].mxu0
    %v359 = vpop.f32.mrb[0].mxu0
    %v360 = vadd.f32 %v107, %v359
    %v361 = vpop.f32.mrb[0].mxu0
    %362 = vmatprep.mubr.bf16.mxu0 0
    %363 = vmatmul.mubr.bf16.gmra.mrb[0].mxu0 %v233
    %v364 = vpop.f32.mrb[0].mxu0
    %v365 = vadd.f32 %v107, %v364
    %v366 = vpop.f32.mrb[0].mxu0
    %v367 = vpop.f32.mrb[0].mxu0
    %v368 = vadd.f32 %v107, %v367
    %v369 = vpop.f32.mrb[0].mxu0
    %370 = vmatprep.mubr.bf16.mxu0 0
    %371 = vmatmul.mubr.bf16.gmra.mrb[0].mxu0 %v236
    %v372 = vpop.f32.mrb[0].mxu0
    %v373 = vadd.f32 %v107, %v372
    %v374 = vpop.f32.mrb[0].mxu0
    %v375 = vpop.f32.mrb[0].mxu0
    %v376 = vadd.f32 %v107, %v375
    %v377 = vpop.f32.mrb[0].mxu0
    %378 = vmatprep.mubr.bf16.mxu0 0
    %379 = vmatmul.mubr.bf16.gmra.mrb[0].mxu0 %v239
    %v380 = vpop.f32.mrb[0].mxu0
    %v381 = vadd.f32 %v107, %v380
    %v382 = vpop.f32.mrb[0].mxu0
    %v383 = vpop.f32.mrb[0].mxu0
    %v384 = vadd.f32 %v107, %v383
    %v385 = vpop.f32.mrb[0].mxu0
    %386 = vmatprep.mubr.bf16.mxu0 0
    %387 = vmatmul.mubr.bf16.gmra.mrb[0].mxu0 %v242
    %v388 = vpop.f32.mrb[0].mxu0
    %v389 = vadd.f32 %v107, %v388
    %v390 = vpop.f32.mrb[0].mxu0
    %v391 = vpop.f32.mrb[0].mxu0
    %v392 = vadd.f32 %v107, %v391
    %v393 = vpop.f32.mrb[0].mxu0
    %394 = vmatprep.mubr.bf16.mxu0 0
    %395 = vmatmul.mubr.bf16.gmra.mrb[0].mxu0 %v245
    %v396 = vpop.f32.mrb[0].mxu0
    %v397 = vadd.f32 %v107, %v396
    %v398 = vpop.f32.mrb[0].mxu0
    %v399 = vpop.f32.mrb[0].mxu0
    %v400 = vadd.f32 %v107, %v399
    %v401 = vpop.f32.mrb[0].mxu0
    %402 = vmatprep.mubr.bf16.mxu0 0
    %403 = vmatmul.mubr.bf16.gmra.mrb[0].mxu0 %v248
    %v404 = vpop.f32.mrb[0].mxu0
    %v405 = vadd.f32 %v107, %v404
    %v406 = vpop.f32.mrb[0].mxu0
    %v407 = vpop.f32.mrb[0].mxu0
    %v408 = vadd.f32 %v107, %v407
    %v409 = vpop.f32.mrb[0].mxu0
    %410 = vdwg.mxu0
    %v411 = vmax.f32 %v285, 0.0
    %v412 = vmax.f32 %v288, 0.0
    %v413 = vmax.f32 %v293, 0.0
    %v414 = vmax.f32 %v296, 0.0
    %v415 = vmax.f32 %v301, 0.0
    %v416 = vmax.f32 %v304, 0.0
    %v417 = vmax.f32 %v309, 0.0
    %v418 = vmax.f32 %v312, 0.0
    %v419 = vmax.f32 %v317, 0.0
    %v420 = vmax.f32 %v320, 0.0
    %v421 = vmax.f32 %v325, 0.0
    %v422 = vmax.f32 %v328, 0.0
    %v423 = vmax.f32 %v333, 0.0
    %v424 = vmax.f32 %v336, 0.0
    %v425 = vmax.f32 %v341, 0.0
    %v426 = vmax.f32 %v344, 0.0
    %v427 = vmax.f32 %v349, 0.0
    %v428 = vmax.f32 %v352, 0.0
    %v429 = vmax.f32 %v357, 0.0
    %v430 = vmax.f32 %v360, 0.0
    %v431 = vmax.f32 %v365, 0.0
    %v432 = vmax.f32 %v368, 0.0
    %v433 = vmax.f32 %v373, 0.0
    %v434 = vmax.f32 %v376, 0.0
    %v435 = vmax.f32 %v381, 0.0
    %v436 = vmax.f32 %v384, 0.0
    %v437 = vmax.f32 %v389, 0.0
    %v438 = vmax.f32 %v392, 0.0
    %v439 = vmax.f32 %v397, 0.0
    %v440 = vmax.f32 %v400, 0.0
    %v441 = vmax.f32 %v405, 0.0
    %v442 = vmax.f32 %v408, 0.0
    %v443 = vpack.c.bf16 %v412, %v411
    %v444 = vpack.c.bf16 %v414, %v413
    %v445 = vpack.c.bf16 %v416, %v415
    %v446 = vpack.c.bf16 %v418, %v417
    %v447 = vpack.c.bf16 %v420, %v419
    %v448 = vpack.c.bf16 %v422, %v421
    %v449 = vpack.c.bf16 %v424, %v423
    %v450 = vpack.c.bf16 %v426, %v425
    %v451 = vpack.c.bf16 %v428, %v427
    %v452 = vpack.c.bf16 %v430, %v429
    %v453 = vpack.c.bf16 %v432, %v431
    %v454 = vpack.c.bf16 %v434, %v433
    %v455 = vpack.c.bf16 %v436, %v435
    %v456 = vpack.c.bf16 %v438, %v437
    %v457 = vpack.c.bf16 %v440, %v439
    %v458 = vpack.c.bf16 %v442, %v441
    %v459 = vld [vmem:[%s3] sm:$0xf]
    %v460 = vld [vmem:[%s3 + $0x4] sm:$0xf]
    %v461 = vld [vmem:[%s3 + $0x8] sm:$0xf]
    %v462 = vld [vmem:[%s3 + $0xc] sm:$0xf]
    %v463 = vld [vmem:[%s4] sm:$0x1]
    %v465 = vlaneseq
    %v466 = vshrl.u32 %v465, 7
    %v467 = vsub.s32 0, %v466
    %v468 = vrot.slane %v463, %v467
    %v474 = vunpack.c.l.b16 %v459
    %v475 = vunpack.c.l.b16 %v460
    %v476 = vunpack.c.l.b16 %v461
    %v477 = vunpack.c.l.b16 %v462
    %v478 = vpack.c.b16 %v475, %v474
    %v479 = vpack.c.b16 %v477, %v476
    %v483 = vsel %vm201, %v443, 0
    %v486 = vsel %vm201, %v444, 0
    %v489 = vsel %vm201, %v445, 0
    %v492 = vsel %vm201, %v446, 0
    %v495 = vsel %vm201, %v447, 0
    %v498 = vsel %vm201, %v448, 0
    %v501 = vsel %vm201, %v449, 0
    %v504 = vsel %vm201, %v450, 0
    %v507 = vsel %vm201, %v451, 0
    %v510 = vsel %vm201, %v452, 0
    %v513 = vsel %vm201, %v453, 0
    %v516 = vsel %vm201, %v454, 0
    %v519 = vsel %vm201, %v455, 0
    %v522 = vsel %vm201, %v456, 0
    %v525 = vsel %vm201, %v457, 0
    %v528 = vsel %vm201, %v458, 0
    %530 = vmatprep.subr.bf16.mxu0 0
    %531 = vmatpush1.bf16.msra.mxu0 %v478
    %532 = vmatprep.subr.bf16.mxu0 0
    %533 = vmatpush1.bf16.msra.mxu0 %v479
    %534 = vmatprep.subr.bf16.mxu0 0
    %535 = vmatpush1.bf16.msra.mxu0 0
    %536 = vmatprep.subr.bf16.mxu0 0
    %537 = vmatpush1.bf16.msra.mxu0 0
    %538 = vmatprep.subr.bf16.mxu0 0
    %539 = vmatpush1.bf16.msra.mxu0 0
    %540 = vmatprep.subr.bf16.mxu0 0
    %541 = vmatpush1.bf16.msra.mxu0 0
    %542 = vmatprep.subr.bf16.mxu0 0
    %543 = vmatpush1.bf16.msra.mxu0 0
    %544 = vmatprep.subr.bf16.mxu0 0
    %545 = vmatpush1.bf16.msra.mxu0 0
    %546 = vmatprep.subr.bf16.mxu0 0
    %547 = vmatpush1.bf16.msra.mxu0 0
    %548 = vmatprep.subr.bf16.mxu0 0
    %549 = vmatpush1.bf16.msra.mxu0 0
    %550 = vmatprep.subr.bf16.mxu0 0
    %551 = vmatpush1.bf16.msra.mxu0 0
    %552 = vmatprep.subr.bf16.mxu0 0
    %553 = vmatpush1.bf16.msra.mxu0 0
    %554 = vmatprep.subr.bf16.mxu0 0
    %555 = vmatpush1.bf16.msra.mxu0 0
    %556 = vmatprep.subr.bf16.mxu0 0
    %557 = vmatpush1.bf16.msra.mxu0 0
    %558 = vmatprep.subr.bf16.mxu0 0
    %559 = vmatpush1.bf16.msra.mxu0 0
    %560 = vmatprep.subr.bf16.mxu0 0
    %561 = vmatpush1.bf16.msra.mxu0 0
    %562 = vmatprep.mubr.bf16.mxu0 0
    %563 = vmatmul.mubr.bf16.gmra.mrb[0].mxu0 %v483
    %v564 = vpop.f32.mrb[0].mxu0
    %v565 = vadd.f32 %v468, %v564
    %v566 = vpop.f32.mrb[0].mxu0
    %v567 = vpop.f32.mrb[0].mxu0
    %v568 = vadd.f32 %v468, %v567
    %v569 = vpop.f32.mrb[0].mxu0
    %570 = vmatprep.mubr.bf16.mxu0 0
    %571 = vmatmul.mubr.bf16.gmra.mrb[0].mxu0 %v486
    %v572 = vpop.f32.mrb[0].mxu0
    %v573 = vadd.f32 %v468, %v572
    %v574 = vpop.f32.mrb[0].mxu0
    %v575 = vpop.f32.mrb[0].mxu0
    %v576 = vadd.f32 %v468, %v575
    %v577 = vpop.f32.mrb[0].mxu0
    %578 = vmatprep.mubr.bf16.mxu0 0
    %579 = vmatmul.mubr.bf16.gmra.mrb[0].mxu0 %v489
    %v580 = vpop.f32.mrb[0].mxu0
    %v581 = vadd.f32 %v468, %v580
    %v582 = vpop.f32.mrb[0].mxu0
    %v583 = vpop.f32.mrb[0].mxu0
    %v584 = vadd.f32 %v468, %v583
    %v585 = vpop.f32.mrb[0].mxu0
    %586 = vmatprep.mubr.bf16.mxu0 0
    %587 = vmatmul.mubr.bf16.gmra.mrb[0].mxu0 %v492
    %v588 = vpop.f32.mrb[0].mxu0
    %v589 = vadd.f32 %v468, %v588
    %v590 = vpop.f32.mrb[0].mxu0
    %v591 = vpop.f32.mrb[0].mxu0
    %v592 = vadd.f32 %v468, %v591
    %v593 = vpop.f32.mrb[0].mxu0
    %594 = vmatprep.mubr.bf16.mxu0 0
    %595 = vmatmul.mubr.bf16.gmra.mrb[0].mxu0 %v495
    %v596 = vpop.f32.mrb[0].mxu0
    %v597 = vadd.f32 %v468, %v596
    %v598 = vpop.f32.mrb[0].mxu0
    %v599 = vpop.f32.mrb[0].mxu0
    %v600 = vadd.f32 %v468, %v599
    %v601 = vpop.f32.mrb[0].mxu0
    %602 = vmatprep.mubr.bf16.mxu0 0
    %603 = vmatmul.mubr.bf16.gmra.mrb[0].mxu0 %v498
    %v604 = vpop.f32.mrb[0].mxu0
    %v605 = vadd.f32 %v468, %v604
    %v606 = vpop.f32.mrb[0].mxu0
    %v607 = vpop.f32.mrb[0].mxu0
    %v608 = vadd.f32 %v468, %v607
    %v609 = vpop.f32.mrb[0].mxu0
    %610 = vmatprep.mubr.bf16.mxu0 0
    %611 = vmatmul.mubr.bf16.gmra.mrb[0].mxu0 %v501
    %v612 = vpop.f32.mrb[0].mxu0
    %v613 = vadd.f32 %v468, %v612
    %v614 = vpop.f32.mrb[0].mxu0
    %v615 = vpop.f32.mrb[0].mxu0
    %v616 = vadd.f32 %v468, %v615
    %v617 = vpop.f32.mrb[0].mxu0
    %618 = vmatprep.mubr.bf16.mxu0 0
    %619 = vmatmul.mubr.bf16.gmra.mrb[0].mxu0 %v504
    %v620 = vpop.f32.mrb[0].mxu0
    %v621 = vadd.f32 %v468, %v620
    %v622 = vpop.f32.mrb[0].mxu0
    %v623 = vpop.f32.mrb[0].mxu0
    %v624 = vadd.f32 %v468, %v623
    %v625 = vpop.f32.mrb[0].mxu0
    %626 = vmatprep.mubr.bf16.mxu0 0
    %627 = vmatmul.mubr.bf16.gmra.mrb[0].mxu0 %v507
    %v628 = vpop.f32.mrb[0].mxu0
    %v629 = vadd.f32 %v468, %v628
    %v630 = vpop.f32.mrb[0].mxu0
    %v631 = vpop.f32.mrb[0].mxu0
    %v632 = vadd.f32 %v468, %v631
    %v633 = vpop.f32.mrb[0].mxu0
    %634 = vmatprep.mubr.bf16.mxu0 0
    %635 = vmatmul.mubr.bf16.gmra.mrb[0].mxu0 %v510
    %v636 = vpop.f32.mrb[0].mxu0
    %v637 = vadd.f32 %v468, %v636
    %v638 = vpop.f32.mrb[0].mxu0
    %v639 = vpop.f32.mrb[0].mxu0
    %v640 = vadd.f32 %v468, %v639
    %v641 = vpop.f32.mrb[0].mxu0
    %642 = vmatprep.mubr.bf16.mxu0 0
    %643 = vmatmul.mubr.bf16.gmra.mrb[0].mxu0 %v513
    %v644 = vpop.f32.mrb[0].mxu0
    %v645 = vadd.f32 %v468, %v644
    %v646 = vpop.f32.mrb[0].mxu0
    %v647 = vpop.f32.mrb[0].mxu0
    %v648 = vadd.f32 %v468, %v647
    %v649 = vpop.f32.mrb[0].mxu0
    %650 = vmatprep.mubr.bf16.mxu0 0
    %651 = vmatmul.mubr.bf16.gmra.mrb[0].mxu0 %v516
    %v652 = vpop.f32.mrb[0].mxu0
    %v653 = vadd.f32 %v468, %v652
    %v654 = vpop.f32.mrb[0].mxu0
    %v655 = vpop.f32.mrb[0].mxu0
    %v656 = vadd.f32 %v468, %v655
    %v657 = vpop.f32.mrb[0].mxu0
    %658 = vmatprep.mubr.bf16.mxu0 0
    %659 = vmatmul.mubr.bf16.gmra.mrb[0].mxu0 %v519
    %v660 = vpop.f32.mrb[0].mxu0
    %v661 = vadd.f32 %v468, %v660
    %v662 = vpop.f32.mrb[0].mxu0
    %v663 = vpop.f32.mrb[0].mxu0
    %v664 = vadd.f32 %v468, %v663
    %v665 = vpop.f32.mrb[0].mxu0
    %666 = vmatprep.mubr.bf16.mxu0 0
    %667 = vmatmul.mubr.bf16.gmra.mrb[0].mxu0 %v522
    %v668 = vpop.f32.mrb[0].mxu0
    %v669 = vadd.f32 %v468, %v668
    %v670 = vpop.f32.mrb[0].mxu0
    %v671 = vpop.f32.mrb[0].mxu0
    %v672 = vadd.f32 %v468, %v671
    %v673 = vpop.f32.mrb[0].mxu0
    %674 = vmatprep.mubr.bf16.mxu0 0
    %675 = vmatmul.mubr.bf16.gmra.mrb[0].mxu0 %v525
    %v676 = vpop.f32.mrb[0].mxu0
    %v677 = vadd.f32 %v468, %v676
    %v678 = vpop.f32.mrb[0].mxu0
    %v679 = vpop.f32.mrb[0].mxu0
    %v680 = vadd.f32 %v468, %v679
    %v681 = vpop.f32.mrb[0].mxu0
    %682 = vmatprep.mubr.bf16.mxu0 0
    %683 = vmatmul.mubr.bf16.gmra.mrb[0].mxu0 %v528
    %v684 = vpop.f32.mrb[0].mxu0
    %v685 = vadd.f32 %v468, %v684
    %v686 = vpop.f32.mrb[0].mxu0
    %v687 = vpop.f32.mrb[0].mxu0
    %v688 = vadd.f32 %v468, %v687
    %v689 = vpop.f32.mrb[0].mxu0
    %690 = vdwg.mxu0
    %v691 = vmax.f32 %v565, 0.0
    %v692 = vmax.f32 %v568, 0.0
    %v693 = vmax.f32 %v573, 0.0
    %v694 = vmax.f32 %v576, 0.0
    %v695 = vmax.f32 %v581, 0.0
    %v696 = vmax.f32 %v584, 0.0
    %v697 = vmax.f32 %v589, 0.0
    %v698 = vmax.f32 %v592, 0.0
    %v699 = vmax.f32 %v597, 0.0
    %v700 = vmax.f32 %v600, 0.0
    %v701 = vmax.f32 %v605, 0.0
    %v702 = vmax.f32 %v608, 0.0
    %v703 = vmax.f32 %v613, 0.0
    %v704 = vmax.f32 %v616, 0.0
    %v705 = vmax.f32 %v621, 0.0
    %v706 = vmax.f32 %v624, 0.0
    %v707 = vmax.f32 %v629, 0.0
    %v708 = vmax.f32 %v632, 0.0
    %v709 = vmax.f32 %v637, 0.0
    %v710 = vmax.f32 %v640, 0.0
    %v711 = vmax.f32 %v645, 0.0
    %v712 = vmax.f32 %v648, 0.0
    %v713 = vmax.f32 %v653, 0.0
    %v714 = vmax.f32 %v656, 0.0
    %v715 = vmax.f32 %v661, 0.0
    %v716 = vmax.f32 %v664, 0.0
    %v717 = vmax.f32 %v669, 0.0
    %v718 = vmax.f32 %v672, 0.0
    %v719 = vmax.f32 %v677, 0.0
    %v720 = vmax.f32 %v680, 0.0
    %v721 = vmax.f32 %v685, 0.0
    %v722 = vmax.f32 %v688, 0.0
    %v723 = vpack.c.bf16 %v692, %v691
    %v724 = vpack.c.bf16 %v694, %v693
    %v725 = vpack.c.bf16 %v696, %v695
    %v726 = vpack.c.bf16 %v698, %v697
    %v727 = vpack.c.bf16 %v700, %v699
    %v728 = vpack.c.bf16 %v702, %v701
    %v729 = vpack.c.bf16 %v704, %v703
    %v730 = vpack.c.bf16 %v706, %v705
    %v731 = vpack.c.bf16 %v708, %v707
    %v732 = vpack.c.bf16 %v710, %v709
    %v733 = vpack.c.bf16 %v712, %v711
    %v734 = vpack.c.bf16 %v714, %v713
    %v735 = vpack.c.bf16 %v716, %v715
    %v736 = vpack.c.bf16 %v718, %v717
    %v737 = vpack.c.bf16 %v720, %v719
    %v738 = vpack.c.bf16 %v722, %v721
    %v740 = vsel %vm201, %v723, 0
    %742 = vmatprep.subr.bf16.mxu0 0
    %743 = vmatpush1.bf16.xpose.msra.mxu0 %v740
    %744 = vmatprep.subr.bf16.mxu0 0
    %745 = vmatpush1.bf16.xpose.msra.mxu0 0
    %746 = vmatprep.subr.bf16.mxu0 0
    %747 = vmatpush1.bf16.xpose.msra.mxu0 0
    %748 = vmatprep.subr.bf16.mxu0 0
    %749 = vmatpush1.bf16.xpose.msra.mxu0 0
    %750 = vmatprep.subr.bf16.mxu0 0
    %751 = vmatpush1.bf16.xpose.msra.mxu0 0
    %752 = vmatprep.subr.bf16.mxu0 0
    %753 = vmatpush1.bf16.xpose.msra.mxu0 0
    %754 = vmatprep.subr.bf16.mxu0 0
    %755 = vmatpush1.bf16.xpose.msra.mxu0 0
    %756 = vmatprep.subr.bf16.mxu0 0
    %757 = vmatpush1.bf16.xpose.msra.mxu0 0
    %758 = vmatprep.subr.bf16.mxu0 0
    %759 = vmatpush1.bf16.xpose.msra.mxu0 0
    %760 = vmatprep.subr.bf16.mxu0 0
    %761 = vmatpush1.bf16.xpose.msra.mxu0 0
    %762 = vmatprep.subr.bf16.mxu0 0
    %763 = vmatpush1.bf16.xpose.msra.mxu0 0
    %764 = vmatprep.subr.bf16.mxu0 0
    %765 = vmatpush1.bf16.xpose.msra.mxu0 0
    %766 = vmatprep.subr.bf16.mxu0 0
    %767 = vmatpush1.bf16.xpose.msra.mxu0 0
    %768 = vmatprep.subr.bf16.mxu0 0
    %769 = vmatpush1.bf16.xpose.msra.mxu0 0
    %770 = vmatprep.subr.bf16.mxu0 0
    %771 = vmatpush1.bf16.xpose.msra.mxu0 0
    %772 = vmatprep.subr.bf16.mxu0 0
    %773 = vmatpush1.bf16.xpose.msra.mxu0 0
    %774 = vmatprep.mubr.bf16.mxu0 0
    %775 = vmatmul.mubr.bf16.gmra.mrb[0].mxu0 %v740
    %v776 = vpop.f32.mrb[0].mxu0
    %v777 = vadd.f32 0.0, %v776
    %v778 = vpop.f32.mrb[0].mxu0
    %v779 = vpop.f32.mrb[0].mxu0
    %v780 = vadd.f32 0.0, %v779
    %v781 = vpop.f32.mrb[0].mxu0
    %782 = vdwg.mxu0
    %v784 = vsel %vm201, %v724, 0
    %786 = vmatprep.subr.bf16.mxu0 0
    %787 = vmatpush1.bf16.xpose.msra.mxu0 %v784
    %788 = vmatprep.subr.bf16.mxu0 0
    %789 = vmatpush1.bf16.xpose.msra.mxu0 0
    %790 = vmatprep.subr.bf16.mxu0 0
    %791 = vmatpush1.bf16.xpose.msra.mxu0 0
    %792 = vmatprep.subr.bf16.mxu0 0
    %793 = vmatpush1.bf16.xpose.msra.mxu0 0
    %794 = vmatprep.subr.bf16.mxu0 0
    %795 = vmatpush1.bf16.xpose.msra.mxu0 0
    %796 = vmatprep.subr.bf16.mxu0 0
    %797 = vmatpush1.bf16.xpose.msra.mxu0 0
    %798 = vmatprep.subr.bf16.mxu0 0
    %799 = vmatpush1.bf16.xpose.msra.mxu0 0
    %800 = vmatprep.subr.bf16.mxu0 0
    %801 = vmatpush1.bf16.xpose.msra.mxu0 0
    %802 = vmatprep.subr.bf16.mxu0 0
    %803 = vmatpush1.bf16.xpose.msra.mxu0 0
    %804 = vmatprep.subr.bf16.mxu0 0
    %805 = vmatpush1.bf16.xpose.msra.mxu0 0
    %806 = vmatprep.subr.bf16.mxu0 0
    %807 = vmatpush1.bf16.xpose.msra.mxu0 0
    %808 = vmatprep.subr.bf16.mxu0 0
    %809 = vmatpush1.bf16.xpose.msra.mxu0 0
    %810 = vmatprep.subr.bf16.mxu0 0
    %811 = vmatpush1.bf16.xpose.msra.mxu0 0
    %812 = vmatprep.subr.bf16.mxu0 0
    %813 = vmatpush1.bf16.xpose.msra.mxu0 0
    %814 = vmatprep.subr.bf16.mxu0 0
    %815 = vmatpush1.bf16.xpose.msra.mxu0 0
    %816 = vmatprep.subr.bf16.mxu0 0
    %817 = vmatpush1.bf16.xpose.msra.mxu0 0
    %818 = vmatprep.mubr.bf16.mxu0 0
    %819 = vmatmul.mubr.bf16.gmra.mrb[0].mxu0 %v784
    %v820 = vpop.f32.mrb[0].mxu0
    %v821 = vadd.f32 0.0, %v820
    %v822 = vpop.f32.mrb[0].mxu0
    %v823 = vpop.f32.mrb[0].mxu0
    %v824 = vadd.f32 0.0, %v823
    %v825 = vpop.f32.mrb[0].mxu0
    %826 = vdwg.mxu0
    %v828 = vsel %vm201, %v725, 0
    %830 = vmatprep.subr.bf16.mxu0 0
    %831 = vmatpush1.bf16.xpose.msra.mxu0 %v828
    %832 = vmatprep.subr.bf16.mxu0 0
    %833 = vmatpush1.bf16.xpose.msra.mxu0 0
    %834 = vmatprep.subr.bf16.mxu0 0
    %835 = vmatpush1.bf16.xpose.msra.mxu0 0
    %836 = vmatprep.subr.bf16.mxu0 0
    %837 = vmatpush1.bf16.xpose.msra.mxu0 0
    %838 = vmatprep.subr.bf16.mxu0 0
    %839 = vmatpush1.bf16.xpose.msra.mxu0 0
    %840 = vmatprep.subr.bf16.mxu0 0
    %841 = vmatpush1.bf16.xpose.msra.mxu0 0
    %842 = vmatprep.subr.bf16.mxu0 0
    %843 = vmatpush1.bf16.xpose.msra.mxu0 0
    %844 = vmatprep.subr.bf16.mxu0 0
    %845 = vmatpush1.bf16.xpose.msra.mxu0 0
    %846 = vmatprep.subr.bf16.mxu0 0
    %847 = vmatpush1.bf16.xpose.msra.mxu0 0
    %848 = vmatprep.subr.bf16.mxu0 0
    %849 = vmatpush1.bf16.xpose.msra.mxu0 0
    %850 = vmatprep.subr.bf16.mxu0 0
    %851 = vmatpush1.bf16.xpose.msra.mxu0 0
    %852 = vmatprep.subr.bf16.mxu0 0
    %853 = vmatpush1.bf16.xpose.msra.mxu0 0
    %854 = vmatprep.subr.bf16.mxu0 0
    %855 = vmatpush1.bf16.xpose.msra.mxu0 0
    %856 = vmatprep.subr.bf16.mxu0 0
    %857 = vmatpush1.bf16.xpose.msra.mxu0 0
    %858 = vmatprep.subr.bf16.mxu0 0
    %859 = vmatpush1.bf16.xpose.msra.mxu0 0
    %860 = vmatprep.subr.bf16.mxu0 0
    %861 = vmatpush1.bf16.xpose.msra.mxu0 0
    %862 = vmatprep.mubr.bf16.mxu0 0
    %863 = vmatmul.mubr.bf16.gmra.mrb[0].mxu0 %v828
    %v864 = vpop.f32.mrb[0].mxu0
    %v865 = vadd.f32 0.0, %v864
    %v866 = vpop.f32.mrb[0].mxu0
    %v867 = vpop.f32.mrb[0].mxu0
    %v868 = vadd.f32 0.0, %v867
    %v869 = vpop.f32.mrb[0].mxu0
    %870 = vdwg.mxu0
    %v872 = vsel %vm201, %v726, 0
    %874 = vmatprep.subr.bf16.mxu0 0
    %875 = vmatpush1.bf16.xpose.msra.mxu0 %v872
    %876 = vmatprep.subr.bf16.mxu0 0
    %877 = vmatpush1.bf16.xpose.msra.mxu0 0
    %878 = vmatprep.subr.bf16.mxu0 0
    %879 = vmatpush1.bf16.xpose.msra.mxu0 0
    %880 = vmatprep.subr.bf16.mxu0 0
    %881 = vmatpush1.bf16.xpose.msra.mxu0 0
    %882 = vmatprep.subr.bf16.mxu0 0
    %883 = vmatpush1.bf16.xpose.msra.mxu0 0
    %884 = vmatprep.subr.bf16.mxu0 0
    %885 = vmatpush1.bf16.xpose.msra.mxu0 0
    %886 = vmatprep.subr.bf16.mxu0 0
    %887 = vmatpush1.bf16.xpose.msra.mxu0 0
    %888 = vmatprep.subr.bf16.mxu0 0
    %889 = vmatpush1.bf16.xpose.msra.mxu0 0
    %890 = vmatprep.subr.bf16.mxu0 0
    %891 = vmatpush1.bf16.xpose.msra.mxu0 0
    %892 = vmatprep.subr.bf16.mxu0 0
    %893 = vmatpush1.bf16.xpose.msra.mxu0 0
    %894 = vmatprep.subr.bf16.mxu0 0
    %895 = vmatpush1.bf16.xpose.msra.mxu0 0
    %896 = vmatprep.subr.bf16.mxu0 0
    %897 = vmatpush1.bf16.xpose.msra.mxu0 0
    %898 = vmatprep.subr.bf16.mxu0 0
    %899 = vmatpush1.bf16.xpose.msra.mxu0 0
    %900 = vmatprep.subr.bf16.mxu0 0
    %901 = vmatpush1.bf16.xpose.msra.mxu0 0
    %902 = vmatprep.subr.bf16.mxu0 0
    %903 = vmatpush1.bf16.xpose.msra.mxu0 0
    %904 = vmatprep.subr.bf16.mxu0 0
    %905 = vmatpush1.bf16.xpose.msra.mxu0 0
    %906 = vmatprep.mubr.bf16.mxu0 0
    %907 = vmatmul.mubr.bf16.gmra.mrb[0].mxu0 %v872
    %v908 = vpop.f32.mrb[0].mxu0
    %v909 = vadd.f32 0.0, %v908
    %v910 = vpop.f32.mrb[0].mxu0
    %v911 = vpop.f32.mrb[0].mxu0
    %v912 = vadd.f32 0.0, %v911
    %v913 = vpop.f32.mrb[0].mxu0
    %914 = vdwg.mxu0
    %v916 = vsel %vm201, %v727, 0
    %918 = vmatprep.subr.bf16.mxu0 0
    %919 = vmatpush1.bf16.xpose.msra.mxu0 %v916
    %920 = vmatprep.subr.bf16.mxu0 0
    %921 = vmatpush1.bf16.xpose.msra.mxu0 0
    %922 = vmatprep.subr.bf16.mxu0 0
    %923 = vmatpush1.bf16.xpose.msra.mxu0 0
    %924 = vmatprep.subr.bf16.mxu0 0
    %925 = vmatpush1.bf16.xpose.msra.mxu0 0
    %926 = vmatprep.subr.bf16.mxu0 0
    %927 = vmatpush1.bf16.xpose.msra.mxu0 0
    %928 = vmatprep.subr.bf16.mxu0 0
    %929 = vmatpush1.bf16.xpose.msra.mxu0 0
    %930 = vmatprep.subr.bf16.mxu0 0
    %931 = vmatpush1.bf16.xpose.msra.mxu0 0
    %932 = vmatprep.subr.bf16.mxu0 0
    %933 = vmatpush1.bf16.xpose.msra.mxu0 0
    %934 = vmatprep.subr.bf16.mxu0 0
    %935 = vmatpush1.bf16.xpose.msra.mxu0 0
    %936 = vmatprep.subr.bf16.mxu0 0
    %937 = vmatpush1.bf16.xpose.msra.mxu0 0
    %938 = vmatprep.subr.bf16.mxu0 0
    %939 = vmatpush1.bf16.xpose.msra.mxu0 0
    %940 = vmatprep.subr.bf16.mxu0 0
    %941 = vmatpush1.bf16.xpose.msra.mxu0 0
    %942 = vmatprep.subr.bf16.mxu0 0
    %943 = vmatpush1.bf16.xpose.msra.mxu0 0
    %944 = vmatprep.subr.bf16.mxu0 0
    %945 = vmatpush1.bf16.xpose.msra.mxu0 0
    %946 = vmatprep.subr.bf16.mxu0 0
    %947 = vmatpush1.bf16.xpose.msra.mxu0 0
    %948 = vmatprep.subr.bf16.mxu0 0
    %949 = vmatpush1.bf16.xpose.msra.mxu0 0
    %950 = vmatprep.mubr.bf16.mxu0 0
    %951 = vmatmul.mubr.bf16.gmra.mrb[0].mxu0 %v916
    %v952 = vpop.f32.mrb[0].mxu0
    %v953 = vadd.f32 0.0, %v952
    %v954 = vpop.f32.mrb[0].mxu0
    %v955 = vpop.f32.mrb[0].mxu0
    %v956 = vadd.f32 0.0, %v955
    %v957 = vpop.f32.mrb[0].mxu0
    %958 = vdwg.mxu0
    %v960 = vsel %vm201, %v728, 0
    %962 = vmatprep.subr.bf16.mxu0 0
    %963 = vmatpush1.bf16.xpose.msra.mxu0 %v960
    %964 = vmatprep.subr.bf16.mxu0 0
    %965 = vmatpush1.bf16.xpose.msra.mxu0 0
    %966 = vmatprep.subr.bf16.mxu0 0
    %967 = vmatpush1.bf16.xpose.msra.mxu0 0
    %968 = vmatprep.subr.bf16.mxu0 0
    %969 = vmatpush1.bf16.xpose.msra.mxu0 0
    %970 = vmatprep.subr.bf16.mxu0 0
    %971 = vmatpush1.bf16.xpose.msra.mxu0 0
    %972 = vmatprep.subr.bf16.mxu0 0
    %973 = vmatpush1.bf16.xpose.msra.mxu0 0
    %974 = vmatprep.subr.bf16.mxu0 0
    %975 = vmatpush1.bf16.xpose.msra.mxu0 0
    %976 = vmatprep.subr.bf16.mxu0 0
    %977 = vmatpush1.bf16.xpose.msra.mxu0 0
    %978 = vmatprep.subr.bf16.mxu0 0
    %979 = vmatpush1.bf16.xpose.msra.mxu0 0
    %980 = vmatprep.subr.bf16.mxu0 0
    %981 = vmatpush1.bf16.xpose.msra.mxu0 0
    %982 = vmatprep.subr.bf16.mxu0 0
    %983 = vmatpush1.bf16.xpose.msra.mxu0 0
    %984 = vmatprep.subr.bf16.mxu0 0
    %985 = vmatpush1.bf16.xpose.msra.mxu0 0
    %986 = vmatprep.subr.bf16.mxu0 0
    %987 = vmatpush1.bf16.xpose.msra.mxu0 0
    %988 = vmatprep.subr.bf16.mxu0 0
    %989 = vmatpush1.bf16.xpose.msra.mxu0 0
    %990 = vmatprep.subr.bf16.mxu0 0
    %991 = vmatpush1.bf16.xpose.msra.mxu0 0
    %992 = vmatprep.subr.bf16.mxu0 0
    %993 = vmatpush1.bf16.xpose.msra.mxu0 0
    %994 = vmatprep.mubr.bf16.mxu0 0
    %995 = vmatmul.mubr.bf16.gmra.mrb[0].mxu0 %v960
    %v996 = vpop.f32.mrb[0].mxu0
    %v997 = vadd.f32 0.0, %v996
    %v998 = vpop.f32.mrb[0].mxu0
    %v999 = vpop.f32.mrb[0].mxu0
    %v1000 = vadd.f32 0.0, %v999
    %v1001 = vpop.f32.mrb[0].mxu0
    %1002 = vdwg.mxu0
    %v1004 = vsel %vm201, %v729, 0
    %1006 = vmatprep.subr.bf16.mxu0 0
    %1007 = vmatpush1.bf16.xpose.msra.mxu0 %v1004
    %1008 = vmatprep.subr.bf16.mxu0 0
    %1009 = vmatpush1.bf16.xpose.msra.mxu0 0
    %1010 = vmatprep.subr.bf16.mxu0 0
    %1011 = vmatpush1.bf16.xpose.msra.mxu0 0
    %1012 = vmatprep.subr.bf16.mxu0 0
    %1013 = vmatpush1.bf16.xpose.msra.mxu0 0
    %1014 = vmatprep.subr.bf16.mxu0 0
    %1015 = vmatpush1.bf16.xpose.msra.mxu0 0
    %1016 = vmatprep.subr.bf16.mxu0 0
    %1017 = vmatpush1.bf16.xpose.msra.mxu0 0
    %1018 = vmatprep.subr.bf16.mxu0 0
    %1019 = vmatpush1.bf16.xpose.msra.mxu0 0
    %1020 = vmatprep.subr.bf16.mxu0 0
    %1021 = vmatpush1.bf16.xpose.msra.mxu0 0
    %1022 = vmatprep.subr.bf16.mxu0 0
    %1023 = vmatpush1.bf16.xpose.msra.mxu0 0
    %1024 = vmatprep.subr.bf16.mxu0 0
    %1025 = vmatpush1.bf16.xpose.msra.mxu0 0
    %1026 = vmatprep.subr.bf16.mxu0 0
    %1027 = vmatpush1.bf16.xpose.msra.mxu0 0
    %1028 = vmatprep.subr.bf16.mxu0 0
    %1029 = vmatpush1.bf16.xpose.msra.mxu0 0
    %1030 = vmatprep.subr.bf16.mxu0 0
    %1031 = vmatpush1.bf16.xpose.msra.mxu0 0
    %1032 = vmatprep.subr.bf16.mxu0 0
    %1033 = vmatpush1.bf16.xpose.msra.mxu0 0
    %1034 = vmatprep.subr.bf16.mxu0 0
    %1035 = vmatpush1.bf16.xpose.msra.mxu0 0
    %1036 = vmatprep.subr.bf16.mxu0 0
    %1037 = vmatpush1.bf16.xpose.msra.mxu0 0
    %1038 = vmatprep.mubr.bf16.mxu0 0
    %1039 = vmatmul.mubr.bf16.gmra.mrb[0].mxu0 %v1004
    %v1040 = vpop.f32.mrb[0].mxu0
    %v1041 = vadd.f32 0.0, %v1040
    %v1042 = vpop.f32.mrb[0].mxu0
    %v1043 = vpop.f32.mrb[0].mxu0
    %v1044 = vadd.f32 0.0, %v1043
    %v1045 = vpop.f32.mrb[0].mxu0
    %1046 = vdwg.mxu0
    %v1048 = vsel %vm201, %v730, 0
    %1050 = vmatprep.subr.bf16.mxu0 0
    %1051 = vmatpush1.bf16.xpose.msra.mxu0 %v1048
    %1052 = vmatprep.subr.bf16.mxu0 0
    %1053 = vmatpush1.bf16.xpose.msra.mxu0 0
    %1054 = vmatprep.subr.bf16.mxu0 0
    %1055 = vmatpush1.bf16.xpose.msra.mxu0 0
    %1056 = vmatprep.subr.bf16.mxu0 0
    %1057 = vmatpush1.bf16.xpose.msra.mxu0 0
    %1058 = vmatprep.subr.bf16.mxu0 0
    %1059 = vmatpush1.bf16.xpose.msra.mxu0 0
    %1060 = vmatprep.subr.bf16.mxu0 0
    %1061 = vmatpush1.bf16.xpose.msra.mxu0 0
    %1062 = vmatprep.subr.bf16.mxu0 0
    %1063 = vmatpush1.bf16.xpose.msra.mxu0 0
    %1064 = vmatprep.subr.bf16.mxu0 0
    %1065 = vmatpush1.bf16.xpose.msra.mxu0 0
    %1066 = vmatprep.subr.bf16.mxu0 0
    %1067 = vmatpush1.bf16.xpose.msra.mxu0 0
    %1068 = vmatprep.subr.bf16.mxu0 0
    %1069 = vmatpush1.bf16.xpose.msra.mxu0 0
    %1070 = vmatprep.subr.bf16.mxu0 0
    %1071 = vmatpush1.bf16.xpose.msra.mxu0 0
    %1072 = vmatprep.subr.bf16.mxu0 0
    %1073 = vmatpush1.bf16.xpose.msra.mxu0 0
    %1074 = vmatprep.subr.bf16.mxu0 0
    %1075 = vmatpush1.bf16.xpose.msra.mxu0 0
    %1076 = vmatprep.subr.bf16.mxu0 0
    %1077 = vmatpush1.bf16.xpose.msra.mxu0 0
    %1078 = vmatprep.subr.bf16.mxu0 0
    %1079 = vmatpush1.bf16.xpose.msra.mxu0 0
    %1080 = vmatprep.subr.bf16.mxu0 0
    %1081 = vmatpush1.bf16.xpose.msra.mxu0 0
    %1082 = vmatprep.mubr.bf16.mxu0 0
    %1083 = vmatmul.mubr.bf16.gmra.mrb[0].mxu0 %v1048
    %v1084 = vpop.f32.mrb[0].mxu0
    %v1085 = vadd.f32 0.0, %v1084
    %v1086 = vpop.f32.mrb[0].mxu0
    %v1087 = vpop.f32.mrb[0].mxu0
    %v1088 = vadd.f32 0.0, %v1087
    %v1089 = vpop.f32.mrb[0].mxu0
    %1090 = vdwg.mxu0
    %v1092 = vsel %vm201, %v731, 0
    %1094 = vmatprep.subr.bf16.mxu0 0
    %1095 = vmatpush1.bf16.xpose.msra.mxu0 %v1092
    %1096 = vmatprep.subr.bf16.mxu0 0
    %1097 = vmatpush1.bf16.xpose.msra.mxu0 0
    %1098 = vmatprep.subr.bf16.mxu0 0
    %1099 = vmatpush1.bf16.xpose.msra.mxu0 0
    %1100 = vmatprep.subr.bf16.mxu0 0
    %1101 = vmatpush1.bf16.xpose.msra.mxu0 0
    %1102 = vmatprep.subr.bf16.mxu0 0
    %1103 = vmatpush1.bf16.xpose.msra.mxu0 0
    %1104 = vmatprep.subr.bf16.mxu0 0
    %1105 = vmatpush1.bf16.xpose.msra.mxu0 0
    %1106 = vmatprep.subr.bf16.mxu0 0
    %1107 = vmatpush1.bf16.xpose.msra.mxu0 0
    %1108 = vmatprep.subr.bf16.mxu0 0
    %1109 = vmatpush1.bf16.xpose.msra.mxu0 0
    %1110 = vmatprep.subr.bf16.mxu0 0
    %1111 = vmatpush1.bf16.xpose.msra.mxu0 0
    %1112 = vmatprep.subr.bf16.mxu0 0
    %1113 = vmatpush1.bf16.xpose.msra.mxu0 0
    %1114 = vmatprep.subr.bf16.mxu0 0
    %1115 = vmatpush1.bf16.xpose.msra.mxu0 0
    %1116 = vmatprep.subr.bf16.mxu0 0
    %1117 = vmatpush1.bf16.xpose.msra.mxu0 0
    %1118 = vmatprep.subr.bf16.mxu0 0
    %1119 = vmatpush1.bf16.xpose.msra.mxu0 0
    %1120 = vmatprep.subr.bf16.mxu0 0
    %1121 = vmatpush1.bf16.xpose.msra.mxu0 0
    %1122 = vmatprep.subr.bf16.mxu0 0
    %1123 = vmatpush1.bf16.xpose.msra.mxu0 0
    %1124 = vmatprep.subr.bf16.mxu0 0
    %1125 = vmatpush1.bf16.xpose.msra.mxu0 0
    %1126 = vmatprep.mubr.bf16.mxu0 0
    %1127 = vmatmul.mubr.bf16.gmra.mrb[0].mxu0 %v1092
    %v1128 = vpop.f32.mrb[0].mxu0
    %v1129 = vadd.f32 0.0, %v1128
    %v1130 = vpop.f32.mrb[0].mxu0
    %v1131 = vpop.f32.mrb[0].mxu0
    %v1132 = vadd.f32 0.0, %v1131
    %v1133 = vpop.f32.mrb[0].mxu0
    %1134 = vdwg.mxu0
    %v1136 = vsel %vm201, %v732, 0
    %1138 = vmatprep.subr.bf16.mxu0 0
    %1139 = vmatpush1.bf16.xpose.msra.mxu0 %v1136
    %1140 = vmatprep.subr.bf16.mxu0 0
    %1141 = vmatpush1.bf16.xpose.msra.mxu0 0
    %1142 = vmatprep.subr.bf16.mxu0 0
    %1143 = vmatpush1.bf16.xpose.msra.mxu0 0
    %1144 = vmatprep.subr.bf16.mxu0 0
    %1145 = vmatpush1.bf16.xpose.msra.mxu0 0
    %1146 = vmatprep.subr.bf16.mxu0 0
    %1147 = vmatpush1.bf16.xpose.msra.mxu0 0
    %1148 = vmatprep.subr.bf16.mxu0 0
    %1149 = vmatpush1.bf16.xpose.msra.mxu0 0
    %1150 = vmatprep.subr.bf16.mxu0 0
    %1151 = vmatpush1.bf16.xpose.msra.mxu0 0
    %1152 = vmatprep.subr.bf16.mxu0 0
    %1153 = vmatpush1.bf16.xpose.msra.mxu0 0
    %1154 = vmatprep.subr.bf16.mxu0 0
    %1155 = vmatpush1.bf16.xpose.msra.mxu0 0
    %1156 = vmatprep.subr.bf16.mxu0 0
    %1157 = vmatpush1.bf16.xpose.msra.mxu0 0
    %1158 = vmatprep.subr.bf16.mxu0 0
    %1159 = vmatpush1.bf16.xpose.msra.mxu0 0
    %1160 = vmatprep.subr.bf16.mxu0 0
    %1161 = vmatpush1.bf16.xpose.msra.mxu0 0
    %1162 = vmatprep.subr.bf16.mxu0 0
    %1163 = vmatpush1.bf16.xpose.msra.mxu0 0
    %1164 = vmatprep.subr.bf16.mxu0 0
    %1165 = vmatpush1.bf16.xpose.msra.mxu0 0
    %1166 = vmatprep.subr.bf16.mxu0 0
    %1167 = vmatpush1.bf16.xpose.msra.mxu0 0
    %1168 = vmatprep.subr.bf16.mxu0 0
    %1169 = vmatpush1.bf16.xpose.msra.mxu0 0
    %1170 = vmatprep.mubr.bf16.mxu0 0
    %1171 = vmatmul.mubr.bf16.gmra.mrb[0].mxu0 %v1136
    %v1172 = vpop.f32.mrb[0].mxu0
    %v1173 = vadd.f32 0.0, %v1172
    %v1174 = vpop.f32.mrb[0].mxu0
    %v1175 = vpop.f32.mrb[0].mxu0
    %v1176 = vadd.f32 0.0, %v1175
    %v1177 = vpop.f32.mrb[0].mxu0
    %1178 = vdwg.mxu0
    %v1180 = vsel %vm201, %v733, 0
    %1182 = vmatprep.subr.bf16.mxu0 0
    %1183 = vmatpush1.bf16.xpose.msra.mxu0 %v1180
    %1184 = vmatprep.subr.bf16.mxu0 0
    %1185 = vmatpush1.bf16.xpose.msra.mxu0 0
    %1186 = vmatprep.subr.bf16.mxu0 0
    %1187 = vmatpush1.bf16.xpose.msra.mxu0 0
    %1188 = vmatprep.subr.bf16.mxu0 0
    %1189 = vmatpush1.bf16.xpose.msra.mxu0 0
    %1190 = vmatprep.subr.bf16.mxu0 0
    %1191 = vmatpush1.bf16.xpose.msra.mxu0 0
    %1192 = vmatprep.subr.bf16.mxu0 0
    %1193 = vmatpush1.bf16.xpose.msra.mxu0 0
    %1194 = vmatprep.subr.bf16.mxu0 0
    %1195 = vmatpush1.bf16.xpose.msra.mxu0 0
    %1196 = vmatprep.subr.bf16.mxu0 0
    %1197 = vmatpush1.bf16.xpose.msra.mxu0 0
    %1198 = vmatprep.subr.bf16.mxu0 0
    %1199 = vmatpush1.bf16.xpose.msra.mxu0 0
    %1200 = vmatprep.subr.bf16.mxu0 0
    %1201 = vmatpush1.bf16.xpose.msra.mxu0 0
    %1202 = vmatprep.subr.bf16.mxu0 0
    %1203 = vmatpush1.bf16.xpose.msra.mxu0 0
    %1204 = vmatprep.subr.bf16.mxu0 0
    %1205 = vmatpush1.bf16.xpose.msra.mxu0 0
    %1206 = vmatprep.subr.bf16.mxu0 0
    %1207 = vmatpush1.bf16.xpose.msra.mxu0 0
    %1208 = vmatprep.subr.bf16.mxu0 0
    %1209 = vmatpush1.bf16.xpose.msra.mxu0 0
    %1210 = vmatprep.subr.bf16.mxu0 0
    %1211 = vmatpush1.bf16.xpose.msra.mxu0 0
    %1212 = vmatprep.subr.bf16.mxu0 0
    %1213 = vmatpush1.bf16.xpose.msra.mxu0 0
    %1214 = vmatprep.mubr.bf16.mxu0 0
    %1215 = vmatmul.mubr.bf16.gmra.mrb[0].mxu0 %v1180
    %v1216 = vpop.f32.mrb[0].mxu0
    %v1217 = vadd.f32 0.0, %v1216
    %v1218 = vpop.f32.mrb[0].mxu0
    %v1219 = vpop.f32.mrb[0].mxu0
    %v1220 = vadd.f32 0.0, %v1219
    %v1221 = vpop.f32.mrb[0].mxu0
    %1222 = vdwg.mxu0
    %v1224 = vsel %vm201, %v734, 0
    %1226 = vmatprep.subr.bf16.mxu0 0
    %1227 = vmatpush1.bf16.xpose.msra.mxu0 %v1224
    %1228 = vmatprep.subr.bf16.mxu0 0
    %1229 = vmatpush1.bf16.xpose.msra.mxu0 0
    %1230 = vmatprep.subr.bf16.mxu0 0
    %1231 = vmatpush1.bf16.xpose.msra.mxu0 0
    %1232 = vmatprep.subr.bf16.mxu0 0
    %1233 = vmatpush1.bf16.xpose.msra.mxu0 0
    %1234 = vmatprep.subr.bf16.mxu0 0
    %1235 = vmatpush1.bf16.xpose.msra.mxu0 0
    %1236 = vmatprep.subr.bf16.mxu0 0
    %1237 = vmatpush1.bf16.xpose.msra.mxu0 0
    %1238 = vmatprep.subr.bf16.mxu0 0
    %1239 = vmatpush1.bf16.xpose.msra.mxu0 0
    %1240 = vmatprep.subr.bf16.mxu0 0
    %1241 = vmatpush1.bf16.xpose.msra.mxu0 0
    %1242 = vmatprep.subr.bf16.mxu0 0
    %1243 = vmatpush1.bf16.xpose.msra.mxu0 0
    %1244 = vmatprep.subr.bf16.mxu0 0
    %1245 = vmatpush1.bf16.xpose.msra.mxu0 0
    %1246 = vmatprep.subr.bf16.mxu0 0
    %1247 = vmatpush1.bf16.xpose.msra.mxu0 0
    %1248 = vmatprep.subr.bf16.mxu0 0
    %1249 = vmatpush1.bf16.xpose.msra.mxu0 0
    %1250 = vmatprep.subr.bf16.mxu0 0
    %1251 = vmatpush1.bf16.xpose.msra.mxu0 0
    %1252 = vmatprep.subr.bf16.mxu0 0
    %1253 = vmatpush1.bf16.xpose.msra.mxu0 0
    %1254 = vmatprep.subr.bf16.mxu0 0
    %1255 = vmatpush1.bf16.xpose.msra.mxu0 0
    %1256 = vmatprep.subr.bf16.mxu0 0
    %1257 = vmatpush1.bf16.xpose.msra.mxu0 0
    %1258 = vmatprep.mubr.bf16.mxu0 0
    %1259 = vmatmul.mubr.bf16.gmra.mrb[0].mxu0 %v1224
    %v1260 = vpop.f32.mrb[0].mxu0
    %v1261 = vadd.f32 0.0, %v1260
    %v1262 = vpop.f32.mrb[0].mxu0
    %v1263 = vpop.f32.mrb[0].mxu0
    %v1264 = vadd.f32 0.0, %v1263
    %v1265 = vpop.f32.mrb[0].mxu0
    %1266 = vdwg.mxu0
    %v1268 = vsel %vm201, %v735, 0
    %1270 = vmatprep.subr.bf16.mxu0 0
    %1271 = vmatpush1.bf16.xpose.msra.mxu0 %v1268
    %1272 = vmatprep.subr.bf16.mxu0 0
    %1273 = vmatpush1.bf16.xpose.msra.mxu0 0
    %1274 = vmatprep.subr.bf16.mxu0 0
    %1275 = vmatpush1.bf16.xpose.msra.mxu0 0
    %1276 = vmatprep.subr.bf16.mxu0 0
    %1277 = vmatpush1.bf16.xpose.msra.mxu0 0
    %1278 = vmatprep.subr.bf16.mxu0 0
    %1279 = vmatpush1.bf16.xpose.msra.mxu0 0
    %1280 = vmatprep.subr.bf16.mxu0 0
    %1281 = vmatpush1.bf16.xpose.msra.mxu0 0
    %1282 = vmatprep.subr.bf16.mxu0 0
    %1283 = vmatpush1.bf16.xpose.msra.mxu0 0
    %1284 = vmatprep.subr.bf16.mxu0 0
    %1285 = vmatpush1.bf16.xpose.msra.mxu0 0
    %1286 = vmatprep.subr.bf16.mxu0 0
    %1287 = vmatpush1.bf16.xpose.msra.mxu0 0
    %1288 = vmatprep.subr.bf16.mxu0 0
    %1289 = vmatpush1.bf16.xpose.msra.mxu0 0
    %1290 = vmatprep.subr.bf16.mxu0 0
    %1291 = vmatpush1.bf16.xpose.msra.mxu0 0
    %1292 = vmatprep.subr.bf16.mxu0 0
    %1293 = vmatpush1.bf16.xpose.msra.mxu0 0
    %1294 = vmatprep.subr.bf16.mxu0 0
    %1295 = vmatpush1.bf16.xpose.msra.mxu0 0
    %1296 = vmatprep.subr.bf16.mxu0 0
    %1297 = vmatpush1.bf16.xpose.msra.mxu0 0
    %1298 = vmatprep.subr.bf16.mxu0 0
    %1299 = vmatpush1.bf16.xpose.msra.mxu0 0
    %1300 = vmatprep.subr.bf16.mxu0 0
    %1301 = vmatpush1.bf16.xpose.msra.mxu0 0
    %1302 = vmatprep.mubr.bf16.mxu0 0
    %1303 = vmatmul.mubr.bf16.gmra.mrb[0].mxu0 %v1268
    %v1304 = vpop.f32.mrb[0].mxu0
    %v1305 = vadd.f32 0.0, %v1304
    %v1306 = vpop.f32.mrb[0].mxu0
    %v1307 = vpop.f32.mrb[0].mxu0
    %v1308 = vadd.f32 0.0, %v1307
    %v1309 = vpop.f32.mrb[0].mxu0
    %1310 = vdwg.mxu0
    %v1312 = vsel %vm201, %v736, 0
    %1314 = vmatprep.subr.bf16.mxu0 0
    %1315 = vmatpush1.bf16.xpose.msra.mxu0 %v1312
    %1316 = vmatprep.subr.bf16.mxu0 0
    %1317 = vmatpush1.bf16.xpose.msra.mxu0 0
    %1318 = vmatprep.subr.bf16.mxu0 0
    %1319 = vmatpush1.bf16.xpose.msra.mxu0 0
    %1320 = vmatprep.subr.bf16.mxu0 0
    %1321 = vmatpush1.bf16.xpose.msra.mxu0 0
    %1322 = vmatprep.subr.bf16.mxu0 0
    %1323 = vmatpush1.bf16.xpose.msra.mxu0 0
    %1324 = vmatprep.subr.bf16.mxu0 0
    %1325 = vmatpush1.bf16.xpose.msra.mxu0 0
    %1326 = vmatprep.subr.bf16.mxu0 0
    %1327 = vmatpush1.bf16.xpose.msra.mxu0 0
    %1328 = vmatprep.subr.bf16.mxu0 0
    %1329 = vmatpush1.bf16.xpose.msra.mxu0 0
    %1330 = vmatprep.subr.bf16.mxu0 0
    %1331 = vmatpush1.bf16.xpose.msra.mxu0 0
    %1332 = vmatprep.subr.bf16.mxu0 0
    %1333 = vmatpush1.bf16.xpose.msra.mxu0 0
    %1334 = vmatprep.subr.bf16.mxu0 0
    %1335 = vmatpush1.bf16.xpose.msra.mxu0 0
    %1336 = vmatprep.subr.bf16.mxu0 0
    %1337 = vmatpush1.bf16.xpose.msra.mxu0 0
    %1338 = vmatprep.subr.bf16.mxu0 0
    %1339 = vmatpush1.bf16.xpose.msra.mxu0 0
    %1340 = vmatprep.subr.bf16.mxu0 0
    %1341 = vmatpush1.bf16.xpose.msra.mxu0 0
    %1342 = vmatprep.subr.bf16.mxu0 0
    %1343 = vmatpush1.bf16.xpose.msra.mxu0 0
    %1344 = vmatprep.subr.bf16.mxu0 0
    %1345 = vmatpush1.bf16.xpose.msra.mxu0 0
    %1346 = vmatprep.mubr.bf16.mxu0 0
    %1347 = vmatmul.mubr.bf16.gmra.mrb[0].mxu0 %v1312
    %v1348 = vpop.f32.mrb[0].mxu0
    %v1349 = vadd.f32 0.0, %v1348
    %v1350 = vpop.f32.mrb[0].mxu0
    %v1351 = vpop.f32.mrb[0].mxu0
    %v1352 = vadd.f32 0.0, %v1351
    %v1353 = vpop.f32.mrb[0].mxu0
    %1354 = vdwg.mxu0
    %v1356 = vsel %vm201, %v737, 0
    %1358 = vmatprep.subr.bf16.mxu0 0
    %1359 = vmatpush1.bf16.xpose.msra.mxu0 %v1356
    %1360 = vmatprep.subr.bf16.mxu0 0
    %1361 = vmatpush1.bf16.xpose.msra.mxu0 0
    %1362 = vmatprep.subr.bf16.mxu0 0
    %1363 = vmatpush1.bf16.xpose.msra.mxu0 0
    %1364 = vmatprep.subr.bf16.mxu0 0
    %1365 = vmatpush1.bf16.xpose.msra.mxu0 0
    %1366 = vmatprep.subr.bf16.mxu0 0
    %1367 = vmatpush1.bf16.xpose.msra.mxu0 0
    %1368 = vmatprep.subr.bf16.mxu0 0
    %1369 = vmatpush1.bf16.xpose.msra.mxu0 0
    %1370 = vmatprep.subr.bf16.mxu0 0
    %1371 = vmatpush1.bf16.xpose.msra.mxu0 0
    %1372 = vmatprep.subr.bf16.mxu0 0
    %1373 = vmatpush1.bf16.xpose.msra.mxu0 0
    %1374 = vmatprep.subr.bf16.mxu0 0
    %1375 = vmatpush1.bf16.xpose.msra.mxu0 0
    %1376 = vmatprep.subr.bf16.mxu0 0
    %1377 = vmatpush1.bf16.xpose.msra.mxu0 0
    %1378 = vmatprep.subr.bf16.mxu0 0
    %1379 = vmatpush1.bf16.xpose.msra.mxu0 0
    %1380 = vmatprep.subr.bf16.mxu0 0
    %1381 = vmatpush1.bf16.xpose.msra.mxu0 0
    %1382 = vmatprep.subr.bf16.mxu0 0
    %1383 = vmatpush1.bf16.xpose.msra.mxu0 0
    %1384 = vmatprep.subr.bf16.mxu0 0
    %1385 = vmatpush1.bf16.xpose.msra.mxu0 0
    %1386 = vmatprep.subr.bf16.mxu0 0
    %1387 = vmatpush1.bf16.xpose.msra.mxu0 0
    %1388 = vmatprep.subr.bf16.mxu0 0
    %1389 = vmatpush1.bf16.xpose.msra.mxu0 0
    %1390 = vmatprep.mubr.bf16.mxu0 0
    %1391 = vmatmul.mubr.bf16.gmra.mrb[0].mxu0 %v1356
    %v1392 = vpop.f32.mrb[0].mxu0
    %v1393 = vadd.f32 0.0, %v1392
    %v1394 = vpop.f32.mrb[0].mxu0
    %v1395 = vpop.f32.mrb[0].mxu0
    %v1396 = vadd.f32 0.0, %v1395
    %v1397 = vpop.f32.mrb[0].mxu0
    %1398 = vdwg.mxu0
    %v1400 = vsel %vm201, %v738, 0
    %1402 = vmatprep.subr.bf16.mxu0 0
    %1403 = vmatpush1.bf16.xpose.msra.mxu0 %v1400
    %1404 = vmatprep.subr.bf16.mxu0 0
    %1405 = vmatpush1.bf16.xpose.msra.mxu0 0
    %1406 = vmatprep.subr.bf16.mxu0 0
    %1407 = vmatpush1.bf16.xpose.msra.mxu0 0
    %1408 = vmatprep.subr.bf16.mxu0 0
    %1409 = vmatpush1.bf16.xpose.msra.mxu0 0
    %1410 = vmatprep.subr.bf16.mxu0 0
    %1411 = vmatpush1.bf16.xpose.msra.mxu0 0
    %1412 = vmatprep.subr.bf16.mxu0 0
    %1413 = vmatpush1.bf16.xpose.msra.mxu0 0
    %1414 = vmatprep.subr.bf16.mxu0 0
    %1415 = vmatpush1.bf16.xpose.msra.mxu0 0
    %1416 = vmatprep.subr.bf16.mxu0 0
    %1417 = vmatpush1.bf16.xpose.msra.mxu0 0
    %1418 = vmatprep.subr.bf16.mxu0 0
    %1419 = vmatpush1.bf16.xpose.msra.mxu0 0
    %1420 = vmatprep.subr.bf16.mxu0 0
    %1421 = vmatpush1.bf16.xpose.msra.mxu0 0
    %1422 = vmatprep.subr.bf16.mxu0 0
    %1423 = vmatpush1.bf16.xpose.msra.mxu0 0
    %1424 = vmatprep.subr.bf16.mxu0 0
    %1425 = vmatpush1.bf16.xpose.msra.mxu0 0
    %1426 = vmatprep.subr.bf16.mxu0 0
    %1427 = vmatpush1.bf16.xpose.msra.mxu0 0
    %1428 = vmatprep.subr.bf16.mxu0 0
    %1429 = vmatpush1.bf16.xpose.msra.mxu0 0
    %1430 = vmatprep.subr.bf16.mxu0 0
    %1431 = vmatpush1.bf16.xpose.msra.mxu0 0
    %1432 = vmatprep.subr.bf16.mxu0 0
    %1433 = vmatpush1.bf16.xpose.msra.mxu0 0
    %1434 = vmatprep.mubr.bf16.mxu0 0
    %1435 = vmatmul.mubr.bf16.gmra.mrb[0].mxu0 %v1400
    %v1436 = vpop.f32.mrb[0].mxu0
    %v1437 = vadd.f32 0.0, %v1436
    %v1438 = vpop.f32.mrb[0].mxu0
    %v1439 = vpop.f32.mrb[0].mxu0
    %v1440 = vadd.f32 0.0, %v1439
    %v1441 = vpop.f32.mrb[0].mxu0
    %1442 = vdwg.mxu0
    %v1443 = vlaneseq
    %v1444 = vshrl.u32 %v1443, 7
    %v1445 = vadd.s32 %v1444, 8
    %v1446 = vlaneseq
    %v1447 = vand.u32 %v1446, 127
    %vm1448 = vcmp.lt.s32.totalorder %v1444, 8
    %vm1449 = vcmp.lt.s32.totalorder %v1445, 8
    %vm1450 = vcmp.lt.s32.totalorder %v1447, 8
    %vm1451 = vmxor %vm1448, %vm1450
    %vm1452 = vmxor %vm1449, %vm1450
    %v1453 = vsel %vm1451, 1, 0
    %v1454 = vsel %vm1452, 1, 0
    %vm1455 = vcmp.eq.s32.totalorder %v1453, 1
    %vm1456 = vcmp.eq.s32.totalorder %v1454, 1
    %v1457 = vsel %vm1455, %v777, -1e+30
    %v1458 = vsel %vm1456, %v780, -1e+30
    %v1459 = vsel %vm1455, %v821, -1e+30
    %v1460 = vsel %vm1456, %v824, -1e+30
    %v1461 = vsel %vm1455, %v865, -1e+30
    %v1462 = vsel %vm1456, %v868, -1e+30
    %v1463 = vsel %vm1455, %v909, -1e+30
    %v1464 = vsel %vm1456, %v912, -1e+30
    %v1465 = vsel %vm1455, %v953, -1e+30
    %v1466 = vsel %vm1456, %v956, -1e+30
    %v1467 = vsel %vm1455, %v997, -1e+30
    %v1468 = vsel %vm1456, %v1000, -1e+30
    %v1469 = vsel %vm1455, %v1041, -1e+30
    %v1470 = vsel %vm1456, %v1044, -1e+30
    %v1471 = vsel %vm1455, %v1085, -1e+30
    %v1472 = vsel %vm1456, %v1088, -1e+30
    %v1473 = vsel %vm1455, %v1129, -1e+30
    %v1474 = vsel %vm1456, %v1132, -1e+30
    %v1475 = vsel %vm1455, %v1173, -1e+30
    %v1476 = vsel %vm1456, %v1176, -1e+30
    %v1477 = vsel %vm1455, %v1217, -1e+30
    %v1478 = vsel %vm1456, %v1220, -1e+30
    %v1479 = vsel %vm1455, %v1261, -1e+30
    %v1480 = vsel %vm1456, %v1264, -1e+30
    %v1481 = vsel %vm1455, %v1305, -1e+30
    %v1482 = vsel %vm1456, %v1308, -1e+30
    %v1483 = vsel %vm1455, %v1349, -1e+30
    %v1484 = vsel %vm1456, %v1352, -1e+30
    %v1485 = vsel %vm1455, %v1393, -1e+30
    %v1486 = vsel %vm1456, %v1396, -1e+30
    %v1487 = vsel %vm1455, %v1437, -1e+30
    %v1488 = vsel %vm1456, %v1440, -1e+30
    %vm1489 = vcmask 130048
    %v1490 = vsel %vm1489, %v1457, -inf
    %1491 = vmax.xlane.f32.xlu0 %v1490
    %v1492 = vpop.xlane.xlu0 %1491
    %v1493 = vsel %vm1489, %v1458, -inf
    %1494 = vmax.xlane.f32.xlu0 %v1493
    %v1495 = vpop.xlane.xlu0 %1494
    %v1496 = vsel %vm1489, %v1459, -inf
    %1497 = vmax.xlane.f32.xlu0 %v1496
    %v1498 = vpop.xlane.xlu0 %1497
    %v1499 = vsel %vm1489, %v1460, -inf
    %1500 = vmax.xlane.f32.xlu0 %v1499
    %v1501 = vpop.xlane.xlu0 %1500
    %v1502 = vsel %vm1489, %v1461, -inf
    %1503 = vmax.xlane.f32.xlu0 %v1502
    %v1504 = vpop.xlane.xlu0 %1503
    %v1505 = vsel %vm1489, %v1462, -inf
    %1506 = vmax.xlane.f32.xlu0 %v1505
    %v1507 = vpop.xlane.xlu0 %1506
    %v1508 = vsel %vm1489, %v1463, -inf
    %1509 = vmax.xlane.f32.xlu0 %v1508
    %v1510 = vpop.xlane.xlu0 %1509
    %v1511 = vsel %vm1489, %v1464, -inf
    %1512 = vmax.xlane.f32.xlu0 %v1511
    %v1513 = vpop.xlane.xlu0 %1512
    %v1514 = vsel %vm1489, %v1465, -inf
    %1515 = vmax.xlane.f32.xlu0 %v1514
    %v1516 = vpop.xlane.xlu0 %1515
    %v1517 = vsel %vm1489, %v1466, -inf
    %1518 = vmax.xlane.f32.xlu0 %v1517
    %v1519 = vpop.xlane.xlu0 %1518
    %v1520 = vsel %vm1489, %v1467, -inf
    %1521 = vmax.xlane.f32.xlu0 %v1520
    %v1522 = vpop.xlane.xlu0 %1521
    %v1523 = vsel %vm1489, %v1468, -inf
    %1524 = vmax.xlane.f32.xlu0 %v1523
    %v1525 = vpop.xlane.xlu0 %1524
    %v1526 = vsel %vm1489, %v1469, -inf
    %1527 = vmax.xlane.f32.xlu0 %v1526
    %v1528 = vpop.xlane.xlu0 %1527
    %v1529 = vsel %vm1489, %v1470, -inf
    %1530 = vmax.xlane.f32.xlu0 %v1529
    %v1531 = vpop.xlane.xlu0 %1530
    %v1532 = vsel %vm1489, %v1471, -inf
    %1533 = vmax.xlane.f32.xlu0 %v1532
    %v1534 = vpop.xlane.xlu0 %1533
    %v1535 = vsel %vm1489, %v1472, -inf
    %1536 = vmax.xlane.f32.xlu0 %v1535
    %v1537 = vpop.xlane.xlu0 %1536
    %v1538 = vsel %vm1489, %v1473, -inf
    %1539 = vmax.xlane.f32.xlu0 %v1538
    %v1540 = vpop.xlane.xlu0 %1539
    %v1541 = vsel %vm1489, %v1474, -inf
    %1542 = vmax.xlane.f32.xlu0 %v1541
    %v1543 = vpop.xlane.xlu0 %1542
    %v1544 = vsel %vm1489, %v1475, -inf
    %1545 = vmax.xlane.f32.xlu0 %v1544
    %v1546 = vpop.xlane.xlu0 %1545
    %v1547 = vsel %vm1489, %v1476, -inf
    %1548 = vmax.xlane.f32.xlu0 %v1547
    %v1549 = vpop.xlane.xlu0 %1548
    %v1550 = vsel %vm1489, %v1477, -inf
    %1551 = vmax.xlane.f32.xlu0 %v1550
    %v1552 = vpop.xlane.xlu0 %1551
    %v1553 = vsel %vm1489, %v1478, -inf
    %1554 = vmax.xlane.f32.xlu0 %v1553
    %v1555 = vpop.xlane.xlu0 %1554
    %v1556 = vsel %vm1489, %v1479, -inf
    %1557 = vmax.xlane.f32.xlu0 %v1556
    %v1558 = vpop.xlane.xlu0 %1557
    %v1559 = vsel %vm1489, %v1480, -inf
    %1560 = vmax.xlane.f32.xlu0 %v1559
    %v1561 = vpop.xlane.xlu0 %1560
    %v1562 = vsel %vm1489, %v1481, -inf
    %1563 = vmax.xlane.f32.xlu0 %v1562
    %v1564 = vpop.xlane.xlu0 %1563
    %v1565 = vsel %vm1489, %v1482, -inf
    %1566 = vmax.xlane.f32.xlu0 %v1565
    %v1567 = vpop.xlane.xlu0 %1566
    %v1568 = vsel %vm1489, %v1483, -inf
    %1569 = vmax.xlane.f32.xlu0 %v1568
    %v1570 = vpop.xlane.xlu0 %1569
    %v1571 = vsel %vm1489, %v1484, -inf
    %1572 = vmax.xlane.f32.xlu0 %v1571
    %v1573 = vpop.xlane.xlu0 %1572
    %v1574 = vsel %vm1489, %v1485, -inf
    %1575 = vmax.xlane.f32.xlu0 %v1574
    %v1576 = vpop.xlane.xlu0 %1575
    %v1577 = vsel %vm1489, %v1486, -inf
    %1578 = vmax.xlane.f32.xlu0 %v1577
    %v1579 = vpop.xlane.xlu0 %1578
    %v1580 = vsel %vm1489, %v1487, -inf
    %1581 = vmax.xlane.f32.xlu0 %v1580
    %v1582 = vpop.xlane.xlu0 %1581
    %v1583 = vsel %vm1489, %v1488, -inf
    %1584 = vmax.xlane.f32.xlu0 %v1583
    %v1585 = vpop.xlane.xlu0 %1584
    %v1586 = vsub.f32 %v1457, %v1492
    %v1587 = vsub.f32 %v1458, %v1495
    %v1588 = vsub.f32 %v1459, %v1498
    %v1589 = vsub.f32 %v1460, %v1501
    %v1590 = vsub.f32 %v1461, %v1504
    %v1591 = vsub.f32 %v1462, %v1507
    %v1592 = vsub.f32 %v1463, %v1510
    %v1593 = vsub.f32 %v1464, %v1513
    %v1594 = vsub.f32 %v1465, %v1516
    %v1595 = vsub.f32 %v1466, %v1519
    %v1596 = vsub.f32 %v1467, %v1522
    %v1597 = vsub.f32 %v1468, %v1525
    %v1598 = vsub.f32 %v1469, %v1528
    %v1599 = vsub.f32 %v1470, %v1531
    %v1600 = vsub.f32 %v1471, %v1534
    %v1601 = vsub.f32 %v1472, %v1537
    %v1602 = vsub.f32 %v1473, %v1540
    %v1603 = vsub.f32 %v1474, %v1543
    %v1604 = vsub.f32 %v1475, %v1546
    %v1605 = vsub.f32 %v1476, %v1549
    %v1606 = vsub.f32 %v1477, %v1552
    %v1607 = vsub.f32 %v1478, %v1555
    %v1608 = vsub.f32 %v1479, %v1558
    %v1609 = vsub.f32 %v1480, %v1561
    %v1610 = vsub.f32 %v1481, %v1564
    %v1611 = vsub.f32 %v1482, %v1567
    %v1612 = vsub.f32 %v1483, %v1570
    %v1613 = vsub.f32 %v1484, %v1573
    %v1614 = vsub.f32 %v1485, %v1576
    %v1615 = vsub.f32 %v1486, %v1579
    %v1616 = vsub.f32 %v1487, %v1582
    %v1617 = vsub.f32 %v1488, %v1585
    %v1618 = vmul.f32 %v1586, 1.442695
    %v1619 = vpow.pop %v1618
    %v1620 = vmul.f32 %v1587, 1.442695
    %v1621 = vpow.pop %v1620
    %v1622 = vmul.f32 %v1588, 1.442695
    %v1623 = vpow.pop %v1622
    %v1624 = vmul.f32 %v1589, 1.442695
    %v1625 = vpow.pop %v1624
    %v1626 = vmul.f32 %v1590, 1.442695
    %v1627 = vpow.pop %v1626
    %v1628 = vmul.f32 %v1591, 1.442695
    %v1629 = vpow.pop %v1628
    %v1630 = vmul.f32 %v1592, 1.442695
    %v1631 = vpow.pop %v1630
    %v1632 = vmul.f32 %v1593, 1.442695
    %v1633 = vpow.pop %v1632
    %v1634 = vmul.f32 %v1594, 1.442695
    %v1635 = vpow.pop %v1634
    %v1636 = vmul.f32 %v1595, 1.442695
    %v1637 = vpow.pop %v1636
    %v1638 = vmul.f32 %v1596, 1.442695
    %v1639 = vpow.pop %v1638
    %v1640 = vmul.f32 %v1597, 1.442695
    %v1641 = vpow.pop %v1640
    %v1642 = vmul.f32 %v1598, 1.442695
    %v1643 = vpow.pop %v1642
    %v1644 = vmul.f32 %v1599, 1.442695
    %v1645 = vpow.pop %v1644
    %v1646 = vmul.f32 %v1600, 1.442695
    %v1647 = vpow.pop %v1646
    %v1648 = vmul.f32 %v1601, 1.442695
    %v1649 = vpow.pop %v1648
    %v1650 = vmul.f32 %v1602, 1.442695
    %v1651 = vpow.pop %v1650
    %v1652 = vmul.f32 %v1603, 1.442695
    %v1653 = vpow.pop %v1652
    %v1654 = vmul.f32 %v1604, 1.442695
    %v1655 = vpow.pop %v1654
    %v1656 = vmul.f32 %v1605, 1.442695
    %v1657 = vpow.pop %v1656
    %v1658 = vmul.f32 %v1606, 1.442695
    %v1659 = vpow.pop %v1658
    %v1660 = vmul.f32 %v1607, 1.442695
    %v1661 = vpow.pop %v1660
    %v1662 = vmul.f32 %v1608, 1.442695
    %v1663 = vpow.pop %v1662
    %v1664 = vmul.f32 %v1609, 1.442695
    %v1665 = vpow.pop %v1664
    %v1666 = vmul.f32 %v1610, 1.442695
    %v1667 = vpow.pop %v1666
    %v1668 = vmul.f32 %v1611, 1.442695
    %v1669 = vpow.pop %v1668
    %v1670 = vmul.f32 %v1612, 1.442695
    %v1671 = vpow.pop %v1670
    %v1672 = vmul.f32 %v1613, 1.442695
    %v1673 = vpow.pop %v1672
    %v1674 = vmul.f32 %v1614, 1.442695
    %v1675 = vpow.pop %v1674
    %v1676 = vmul.f32 %v1615, 1.442695
    %v1677 = vpow.pop %v1676
    %v1678 = vmul.f32 %v1616, 1.442695
    %v1679 = vpow.pop %v1678
    %v1680 = vmul.f32 %v1617, 1.442695
    %v1681 = vpow.pop %v1680
    %v1682 = vsel %vm1489, %v1619, 0.0
    %1683 = vadd.xlane.f32.xlu0 %v1682
    %v1684 = vpop.xlane.xlu0 %1683
    %v1685 = vsel %vm1489, %v1621, 0.0
    %1686 = vadd.xlane.f32.xlu0 %v1685
    %v1687 = vpop.xlane.xlu0 %1686
    %v1688 = vsel %vm1489, %v1623, 0.0
    %1689 = vadd.xlane.f32.xlu0 %v1688
    %v1690 = vpop.xlane.xlu0 %1689
    %v1691 = vsel %vm1489, %v1625, 0.0
    %1692 = vadd.xlane.f32.xlu0 %v1691
    %v1693 = vpop.xlane.xlu0 %1692
    %v1694 = vsel %vm1489, %v1627, 0.0
    %1695 = vadd.xlane.f32.xlu0 %v1694
    %v1696 = vpop.xlane.xlu0 %1695
    %v1697 = vsel %vm1489, %v1629, 0.0
    %1698 = vadd.xlane.f32.xlu0 %v1697
    %v1699 = vpop.xlane.xlu0 %1698
    %v1700 = vsel %vm1489, %v1631, 0.0
    %1701 = vadd.xlane.f32.xlu0 %v1700
    %v1702 = vpop.xlane.xlu0 %1701
    %v1703 = vsel %vm1489, %v1633, 0.0
    %1704 = vadd.xlane.f32.xlu0 %v1703
    %v1705 = vpop.xlane.xlu0 %1704
    %v1706 = vsel %vm1489, %v1635, 0.0
    %1707 = vadd.xlane.f32.xlu0 %v1706
    %v1708 = vpop.xlane.xlu0 %1707
    %v1709 = vsel %vm1489, %v1637, 0.0
    %1710 = vadd.xlane.f32.xlu0 %v1709
    %v1711 = vpop.xlane.xlu0 %1710
    %v1712 = vsel %vm1489, %v1639, 0.0
    %1713 = vadd.xlane.f32.xlu0 %v1712
    %v1714 = vpop.xlane.xlu0 %1713
    %v1715 = vsel %vm1489, %v1641, 0.0
    %1716 = vadd.xlane.f32.xlu0 %v1715
    %v1717 = vpop.xlane.xlu0 %1716
    %v1718 = vsel %vm1489, %v1643, 0.0
    %1719 = vadd.xlane.f32.xlu0 %v1718
    %v1720 = vpop.xlane.xlu0 %1719
    %v1721 = vsel %vm1489, %v1645, 0.0
    %1722 = vadd.xlane.f32.xlu0 %v1721
    %v1723 = vpop.xlane.xlu0 %1722
    %v1724 = vsel %vm1489, %v1647, 0.0
    %1725 = vadd.xlane.f32.xlu0 %v1724
    %v1726 = vpop.xlane.xlu0 %1725
    %v1727 = vsel %vm1489, %v1649, 0.0
    %1728 = vadd.xlane.f32.xlu0 %v1727
    %v1729 = vpop.xlane.xlu0 %1728
    %v1730 = vsel %vm1489, %v1651, 0.0
    %1731 = vadd.xlane.f32.xlu0 %v1730
    %v1732 = vpop.xlane.xlu0 %1731
    %v1733 = vsel %vm1489, %v1653, 0.0
    %1734 = vadd.xlane.f32.xlu0 %v1733
    %v1735 = vpop.xlane.xlu0 %1734
    %v1736 = vsel %vm1489, %v1655, 0.0
    %1737 = vadd.xlane.f32.xlu0 %v1736
    %v1738 = vpop.xlane.xlu0 %1737
    %v1739 = vsel %vm1489, %v1657, 0.0
    %1740 = vadd.xlane.f32.xlu0 %v1739
    %v1741 = vpop.xlane.xlu0 %1740
    %v1742 = vsel %vm1489, %v1659, 0.0
    %1743 = vadd.xlane.f32.xlu0 %v1742
    %v1744 = vpop.xlane.xlu0 %1743
    %v1745 = vsel %vm1489, %v1661, 0.0
    %1746 = vadd.xlane.f32.xlu0 %v1745
    %v1747 = vpop.xlane.xlu0 %1746
    %v1748 = vsel %vm1489, %v1663, 0.0
    %1749 = vadd.xlane.f32.xlu0 %v1748
    %v1750 = vpop.xlane.xlu0 %1749
    %v1751 = vsel %vm1489, %v1665, 0.0
    %1752 = vadd.xlane.f32.xlu0 %v1751
    %v1753 = vpop.xlane.xlu0 %1752
    %v1754 = vsel %vm1489, %v1667, 0.0
    %1755 = vadd.xlane.f32.xlu0 %v1754
    %v1756 = vpop.xlane.xlu0 %1755
    %v1757 = vsel %vm1489, %v1669, 0.0
    %1758 = vadd.xlane.f32.xlu0 %v1757
    %v1759 = vpop.xlane.xlu0 %1758
    %v1760 = vsel %vm1489, %v1671, 0.0
    %1761 = vadd.xlane.f32.xlu0 %v1760
    %v1762 = vpop.xlane.xlu0 %1761
    %v1763 = vsel %vm1489, %v1673, 0.0
    %1764 = vadd.xlane.f32.xlu0 %v1763
    %v1765 = vpop.xlane.xlu0 %1764
    %v1766 = vsel %vm1489, %v1675, 0.0
    %1767 = vadd.xlane.f32.xlu0 %v1766
    %v1768 = vpop.xlane.xlu0 %1767
    %v1769 = vsel %vm1489, %v1677, 0.0
    %1770 = vadd.xlane.f32.xlu0 %v1769
    %v1771 = vpop.xlane.xlu0 %1770
    %v1772 = vsel %vm1489, %v1679, 0.0
    %1773 = vadd.xlane.f32.xlu0 %v1772
    %v1774 = vpop.xlane.xlu0 %1773
    %v1775 = vsel %vm1489, %v1681, 0.0
    %1776 = vadd.xlane.f32.xlu0 %v1775
    %v1777 = vpop.xlane.xlu0 %1776
    %v1778 = vrcp.pop %v1684
    %v1779 = vrcp.pop %v1687
    %v1780 = vrcp.pop %v1690
    %v1781 = vrcp.pop %v1693
    %v1782 = vrcp.pop %v1696
    %v1783 = vrcp.pop %v1699
    %v1784 = vrcp.pop %v1702
    %v1785 = vrcp.pop %v1705
    %v1786 = vrcp.pop %v1708
    %v1787 = vrcp.pop %v1711
    %v1788 = vrcp.pop %v1714
    %v1789 = vrcp.pop %v1717
    %v1790 = vrcp.pop %v1720
    %v1791 = vrcp.pop %v1723
    %v1792 = vrcp.pop %v1726
    %v1793 = vrcp.pop %v1729
    %v1794 = vrcp.pop %v1732
    %v1795 = vrcp.pop %v1735
    %v1796 = vrcp.pop %v1738
    %v1797 = vrcp.pop %v1741
    %v1798 = vrcp.pop %v1744
    %v1799 = vrcp.pop %v1747
    %v1800 = vrcp.pop %v1750
    %v1801 = vrcp.pop %v1753
    %v1802 = vrcp.pop %v1756
    %v1803 = vrcp.pop %v1759
    %v1804 = vrcp.pop %v1762
    %v1805 = vrcp.pop %v1765
    %v1806 = vrcp.pop %v1768
    %v1807 = vrcp.pop %v1771
    %v1808 = vrcp.pop %v1774
    %v1809 = vrcp.pop %v1777
    %v1810 = vmul.f32 %v1619, %v1778
    %v1811 = vmul.f32 %v1621, %v1779
    %v1812 = vmul.f32 %v1623, %v1780
    %v1813 = vmul.f32 %v1625, %v1781
    %v1814 = vmul.f32 %v1627, %v1782
    %v1815 = vmul.f32 %v1629, %v1783
    %v1816 = vmul.f32 %v1631, %v1784
    %v1817 = vmul.f32 %v1633, %v1785
    %v1818 = vmul.f32 %v1635, %v1786
    %v1819 = vmul.f32 %v1637, %v1787
    %v1820 = vmul.f32 %v1639, %v1788
    %v1821 = vmul.f32 %v1641, %v1789
    %v1822 = vmul.f32 %v1643, %v1790
    %v1823 = vmul.f32 %v1645, %v1791
    %v1824 = vmul.f32 %v1647, %v1792
    %v1825 = vmul.f32 %v1649, %v1793
    %v1826 = vmul.f32 %v1651, %v1794
    %v1827 = vmul.f32 %v1653, %v1795
    %v1828 = vmul.f32 %v1655, %v1796
    %v1829 = vmul.f32 %v1657, %v1797
    %v1830 = vmul.f32 %v1659, %v1798
    %v1831 = vmul.f32 %v1661, %v1799
    %v1832 = vmul.f32 %v1663, %v1800
    %v1833 = vmul.f32 %v1665, %v1801
    %v1834 = vmul.f32 %v1667, %v1802
    %v1835 = vmul.f32 %v1669, %v1803
    %v1836 = vmul.f32 %v1671, %v1804
    %v1837 = vmul.f32 %v1673, %v1805
    %v1838 = vmul.f32 %v1675, %v1806
    %v1839 = vmul.f32 %v1677, %v1807
    %v1840 = vmul.f32 %v1679, %v1808
    %v1841 = vmul.f32 %v1681, %v1809
    %v1842 = vpack.c.bf16 %v1811, %v1810
    %v1843 = vpack.c.bf16 %v1813, %v1812
    %v1844 = vpack.c.bf16 %v1815, %v1814
    %v1845 = vpack.c.bf16 %v1817, %v1816
    %v1846 = vpack.c.bf16 %v1819, %v1818
    %v1847 = vpack.c.bf16 %v1821, %v1820
    %v1848 = vpack.c.bf16 %v1823, %v1822
    %v1849 = vpack.c.bf16 %v1825, %v1824
    %v1850 = vpack.c.bf16 %v1827, %v1826
    %v1851 = vpack.c.bf16 %v1829, %v1828
    %v1852 = vpack.c.bf16 %v1831, %v1830
    %v1853 = vpack.c.bf16 %v1833, %v1832
    %v1854 = vpack.c.bf16 %v1835, %v1834
    %v1855 = vpack.c.bf16 %v1837, %v1836
    %v1856 = vpack.c.bf16 %v1839, %v1838
    %v1857 = vpack.c.bf16 %v1841, %v1840
    %v1860 = vsel %vm1489, %v1842, 0
    %1862 = vmatprep.subr.bf16.mxu0 0
    %1863 = vmatpush1.bf16.msra.mxu0 %v173
    %1864 = vmatprep.subr.bf16.mxu0 0
    %1865 = vmatpush1.bf16.msra.mxu0 0
    %1866 = vmatprep.subr.bf16.mxu0 0
    %1867 = vmatpush1.bf16.msra.mxu0 0
    %1868 = vmatprep.subr.bf16.mxu0 0
    %1869 = vmatpush1.bf16.msra.mxu0 0
    %1870 = vmatprep.subr.bf16.mxu0 0
    %1871 = vmatpush1.bf16.msra.mxu0 0
    %1872 = vmatprep.subr.bf16.mxu0 0
    %1873 = vmatpush1.bf16.msra.mxu0 0
    %1874 = vmatprep.subr.bf16.mxu0 0
    %1875 = vmatpush1.bf16.msra.mxu0 0
    %1876 = vmatprep.subr.bf16.mxu0 0
    %1877 = vmatpush1.bf16.msra.mxu0 0
    %1878 = vmatprep.subr.bf16.mxu0 0
    %1879 = vmatpush1.bf16.msra.mxu0 0
    %1880 = vmatprep.subr.bf16.mxu0 0
    %1881 = vmatpush1.bf16.msra.mxu0 0
    %1882 = vmatprep.subr.bf16.mxu0 0
    %1883 = vmatpush1.bf16.msra.mxu0 0
    %1884 = vmatprep.subr.bf16.mxu0 0
    %1885 = vmatpush1.bf16.msra.mxu0 0
    %1886 = vmatprep.subr.bf16.mxu0 0
    %1887 = vmatpush1.bf16.msra.mxu0 0
    %1888 = vmatprep.subr.bf16.mxu0 0
    %1889 = vmatpush1.bf16.msra.mxu0 0
    %1890 = vmatprep.subr.bf16.mxu0 0
    %1891 = vmatpush1.bf16.msra.mxu0 0
    %1892 = vmatprep.subr.bf16.mxu0 0
    %1893 = vmatpush1.bf16.msra.mxu0 0
    %1894 = vmatprep.mubr.bf16.mxu0 0
    %1895 = vmatmul.mubr.bf16.gmra.mrb[0].mxu0 %v1860
    %v1896 = vpop.f32.mrb[0].mxu0
    %v1897 = vadd.f32 0.0, %v1896
    %v1898 = vpop.f32.mrb[0].mxu0
    %v1899 = vpop.f32.mrb[0].mxu0
    %v1900 = vadd.f32 0.0, %v1899
    %v1901 = vpop.f32.mrb[0].mxu0
    %1902 = vdwg.mxu0
    %v1905 = vsel %vm1489, %v1843, 0
    %1907 = vmatprep.subr.bf16.mxu0 0
    %1908 = vmatpush1.bf16.msra.mxu0 %v174
    %1909 = vmatprep.subr.bf16.mxu0 0
    %1910 = vmatpush1.bf16.msra.mxu0 0
    %1911 = vmatprep.subr.bf16.mxu0 0
    %1912 = vmatpush1.bf16.msra.mxu0 0
    %1913 = vmatprep.subr.bf16.mxu0 0
    %1914 = vmatpush1.bf16.msra.mxu0 0
    %1915 = vmatprep.subr.bf16.mxu0 0
    %1916 = vmatpush1.bf16.msra.mxu0 0
    %1917 = vmatprep.subr.bf16.mxu0 0
    %1918 = vmatpush1.bf16.msra.mxu0 0
    %1919 = vmatprep.subr.bf16.mxu0 0
    %1920 = vmatpush1.bf16.msra.mxu0 0
    %1921 = vmatprep.subr.bf16.mxu0 0
    %1922 = vmatpush1.bf16.msra.mxu0 0
    %1923 = vmatprep.subr.bf16.mxu0 0
    %1924 = vmatpush1.bf16.msra.mxu0 0
    %1925 = vmatprep.subr.bf16.mxu0 0
    %1926 = vmatpush1.bf16.msra.mxu0 0
    %1927 = vmatprep.subr.bf16.mxu0 0
    %1928 = vmatpush1.bf16.msra.mxu0 0
    %1929 = vmatprep.subr.bf16.mxu0 0
    %1930 = vmatpush1.bf16.msra.mxu0 0
    %1931 = vmatprep.subr.bf16.mxu0 0
    %1932 = vmatpush1.bf16.msra.mxu0 0
    %1933 = vmatprep.subr.bf16.mxu0 0
    %1934 = vmatpush1.bf16.msra.mxu0 0
    %1935 = vmatprep.subr.bf16.mxu0 0
    %1936 = vmatpush1.bf16.msra.mxu0 0
    %1937 = vmatprep.subr.bf16.mxu0 0
    %1938 = vmatpush1.bf16.msra.mxu0 0
    %1939 = vmatprep.mubr.bf16.mxu0 0
    %1940 = vmatmul.mubr.bf16.gmra.mrb[0].mxu0 %v1905
    %v1941 = vpop.f32.mrb[0].mxu0
    %v1942 = vadd.f32 0.0, %v1941
    %v1943 = vpop.f32.mrb[0].mxu0
    %v1944 = vpop.f32.mrb[0].mxu0
    %v1945 = vadd.f32 0.0, %v1944
    %v1946 = vpop.f32.mrb[0].mxu0
    %1947 = vdwg.mxu0
    %v1950 = vsel %vm1489, %v1844, 0
    %1952 = vmatprep.subr.bf16.mxu0 0
    %1953 = vmatpush1.bf16.msra.mxu0 %v175
    %1954 = vmatprep.subr.bf16.mxu0 0
    %1955 = vmatpush1.bf16.msra.mxu0 0
    %1956 = vmatprep.subr.bf16.mxu0 0
    %1957 = vmatpush1.bf16.msra.mxu0 0
    %1958 = vmatprep.subr.bf16.mxu0 0
    %1959 = vmatpush1.bf16.msra.mxu0 0
    %1960 = vmatprep.subr.bf16.mxu0 0
    %1961 = vmatpush1.bf16.msra.mxu0 0
    %1962 = vmatprep.subr.bf16.mxu0 0
    %1963 = vmatpush1.bf16.msra.mxu0 0
    %1964 = vmatprep.subr.bf16.mxu0 0
    %1965 = vmatpush1.bf16.msra.mxu0 0
    %1966 = vmatprep.subr.bf16.mxu0 0
    %1967 = vmatpush1.bf16.msra.mxu0 0
    %1968 = vmatprep.subr.bf16.mxu0 0
    %1969 = vmatpush1.bf16.msra.mxu0 0
    %1970 = vmatprep.subr.bf16.mxu0 0
    %1971 = vmatpush1.bf16.msra.mxu0 0
    %1972 = vmatprep.subr.bf16.mxu0 0
    %1973 = vmatpush1.bf16.msra.mxu0 0
    %1974 = vmatprep.subr.bf16.mxu0 0
    %1975 = vmatpush1.bf16.msra.mxu0 0
    %1976 = vmatprep.subr.bf16.mxu0 0
    %1977 = vmatpush1.bf16.msra.mxu0 0
    %1978 = vmatprep.subr.bf16.mxu0 0
    %1979 = vmatpush1.bf16.msra.mxu0 0
    %1980 = vmatprep.subr.bf16.mxu0 0
    %1981 = vmatpush1.bf16.msra.mxu0 0
    %1982 = vmatprep.subr.bf16.mxu0 0
    %1983 = vmatpush1.bf16.msra.mxu0 0
    %1984 = vmatprep.mubr.bf16.mxu0 0
    %1985 = vmatmul.mubr.bf16.gmra.mrb[0].mxu0 %v1950
    %v1986 = vpop.f32.mrb[0].mxu0
    %v1987 = vadd.f32 0.0, %v1986
    %v1988 = vpop.f32.mrb[0].mxu0
    %v1989 = vpop.f32.mrb[0].mxu0
    %v1990 = vadd.f32 0.0, %v1989
    %v1991 = vpop.f32.mrb[0].mxu0
    %1992 = vdwg.mxu0
    %v1995 = vsel %vm1489, %v1845, 0
    %1997 = vmatprep.subr.bf16.mxu0 0
    %1998 = vmatpush1.bf16.msra.mxu0 %v176
    %1999 = vmatprep.subr.bf16.mxu0 0
    %2000 = vmatpush1.bf16.msra.mxu0 0
    %2001 = vmatprep.subr.bf16.mxu0 0
    %2002 = vmatpush1.bf16.msra.mxu0 0
    %2003 = vmatprep.subr.bf16.mxu0 0
    %2004 = vmatpush1.bf16.msra.mxu0 0
    %2005 = vmatprep.subr.bf16.mxu0 0
    %2006 = vmatpush1.bf16.msra.mxu0 0
    %2007 = vmatprep.subr.bf16.mxu0 0
    %2008 = vmatpush1.bf16.msra.mxu0 0
    %2009 = vmatprep.subr.bf16.mxu0 0
    %2010 = vmatpush1.bf16.msra.mxu0 0
    %2011 = vmatprep.subr.bf16.mxu0 0
    %2012 = vmatpush1.bf16.msra.mxu0 0
    %2013 = vmatprep.subr.bf16.mxu0 0
    %2014 = vmatpush1.bf16.msra.mxu0 0
    %2015 = vmatprep.subr.bf16.mxu0 0
    %2016 = vmatpush1.bf16.msra.mxu0 0
    %2017 = vmatprep.subr.bf16.mxu0 0
    %2018 = vmatpush1.bf16.msra.mxu0 0
    %2019 = vmatprep.subr.bf16.mxu0 0
    %2020 = vmatpush1.bf16.msra.mxu0 0
    %2021 = vmatprep.subr.bf16.mxu0 0
    %2022 = vmatpush1.bf16.msra.mxu0 0
    %2023 = vmatprep.subr.bf16.mxu0 0
    %2024 = vmatpush1.bf16.msra.mxu0 0
    %2025 = vmatprep.subr.bf16.mxu0 0
    %2026 = vmatpush1.bf16.msra.mxu0 0
    %2027 = vmatprep.subr.bf16.mxu0 0
    %2028 = vmatpush1.bf16.msra.mxu0 0
    %2029 = vmatprep.mubr.bf16.mxu0 0
    %2030 = vmatmul.mubr.bf16.gmra.mrb[0].mxu0 %v1995
    %v2031 = vpop.f32.mrb[0].mxu0
    %v2032 = vadd.f32 0.0, %v2031
    %v2033 = vpop.f32.mrb[0].mxu0
    %v2034 = vpop.f32.mrb[0].mxu0
    %v2035 = vadd.f32 0.0, %v2034
    %v2036 = vpop.f32.mrb[0].mxu0
    %2037 = vdwg.mxu0
    %v2040 = vsel %vm1489, %v1846, 0
    %2042 = vmatprep.subr.bf16.mxu0 0
    %2043 = vmatpush1.bf16.msra.mxu0 %v177
    %2044 = vmatprep.subr.bf16.mxu0 0
    %2045 = vmatpush1.bf16.msra.mxu0 0
    %2046 = vmatprep.subr.bf16.mxu0 0
    %2047 = vmatpush1.bf16.msra.mxu0 0
    %2048 = vmatprep.subr.bf16.mxu0 0
    %2049 = vmatpush1.bf16.msra.mxu0 0
    %2050 = vmatprep.subr.bf16.mxu0 0
    %2051 = vmatpush1.bf16.msra.mxu0 0
    %2052 = vmatprep.subr.bf16.mxu0 0
    %2053 = vmatpush1.bf16.msra.mxu0 0
    %2054 = vmatprep.subr.bf16.mxu0 0
    %2055 = vmatpush1.bf16.msra.mxu0 0
    %2056 = vmatprep.subr.bf16.mxu0 0
    %2057 = vmatpush1.bf16.msra.mxu0 0
    %2058 = vmatprep.subr.bf16.mxu0 0
    %2059 = vmatpush1.bf16.msra.mxu0 0
    %2060 = vmatprep.subr.bf16.mxu0 0
    %2061 = vmatpush1.bf16.msra.mxu0 0
    %2062 = vmatprep.subr.bf16.mxu0 0
    %2063 = vmatpush1.bf16.msra.mxu0 0
    %2064 = vmatprep.subr.bf16.mxu0 0
    %2065 = vmatpush1.bf16.msra.mxu0 0
    %2066 = vmatprep.subr.bf16.mxu0 0
    %2067 = vmatpush1.bf16.msra.mxu0 0
    %2068 = vmatprep.subr.bf16.mxu0 0
    %2069 = vmatpush1.bf16.msra.mxu0 0
    %2070 = vmatprep.subr.bf16.mxu0 0
    %2071 = vmatpush1.bf16.msra.mxu0 0
    %2072 = vmatprep.subr.bf16.mxu0 0
    %2073 = vmatpush1.bf16.msra.mxu0 0
    %2074 = vmatprep.mubr.bf16.mxu0 0
    %2075 = vmatmul.mubr.bf16.gmra.mrb[0].mxu0 %v2040
    %v2076 = vpop.f32.mrb[0].mxu0
    %v2077 = vadd.f32 0.0, %v2076
    %v2078 = vpop.f32.mrb[0].mxu0
    %v2079 = vpop.f32.mrb[0].mxu0
    %v2080 = vadd.f32 0.0, %v2079
    %v2081 = vpop.f32.mrb[0].mxu0
    %2082 = vdwg.mxu0
    %v2085 = vsel %vm1489, %v1847, 0
    %2087 = vmatprep.subr.bf16.mxu0 0
    %2088 = vmatpush1.bf16.msra.mxu0 %v178
    %2089 = vmatprep.subr.bf16.mxu0 0
    %2090 = vmatpush1.bf16.msra.mxu0 0
    %2091 = vmatprep.subr.bf16.mxu0 0
    %2092 = vmatpush1.bf16.msra.mxu0 0
    %2093 = vmatprep.subr.bf16.mxu0 0
    %2094 = vmatpush1.bf16.msra.mxu0 0
    %2095 = vmatprep.subr.bf16.mxu0 0
    %2096 = vmatpush1.bf16.msra.mxu0 0
    %2097 = vmatprep.subr.bf16.mxu0 0
    %2098 = vmatpush1.bf16.msra.mxu0 0
    %2099 = vmatprep.subr.bf16.mxu0 0
    %2100 = vmatpush1.bf16.msra.mxu0 0
    %2101 = vmatprep.subr.bf16.mxu0 0
    %2102 = vmatpush1.bf16.msra.mxu0 0
    %2103 = vmatprep.subr.bf16.mxu0 0
    %2104 = vmatpush1.bf16.msra.mxu0 0
    %2105 = vmatprep.subr.bf16.mxu0 0
    %2106 = vmatpush1.bf16.msra.mxu0 0
    %2107 = vmatprep.subr.bf16.mxu0 0
    %2108 = vmatpush1.bf16.msra.mxu0 0
    %2109 = vmatprep.subr.bf16.mxu0 0
    %2110 = vmatpush1.bf16.msra.mxu0 0
    %2111 = vmatprep.subr.bf16.mxu0 0
    %2112 = vmatpush1.bf16.msra.mxu0 0
    %2113 = vmatprep.subr.bf16.mxu0 0
    %2114 = vmatpush1.bf16.msra.mxu0 0
    %2115 = vmatprep.subr.bf16.mxu0 0
    %2116 = vmatpush1.bf16.msra.mxu0 0
    %2117 = vmatprep.subr.bf16.mxu0 0
    %2118 = vmatpush1.bf16.msra.mxu0 0
    %2119 = vmatprep.mubr.bf16.mxu0 0
    %2120 = vmatmul.mubr.bf16.gmra.mrb[0].mxu0 %v2085
    %v2121 = vpop.f32.mrb[0].mxu0
    %v2122 = vadd.f32 0.0, %v2121
    %v2123 = vpop.f32.mrb[0].mxu0
    %v2124 = vpop.f32.mrb[0].mxu0
    %v2125 = vadd.f32 0.0, %v2124
    %v2126 = vpop.f32.mrb[0].mxu0
    %2127 = vdwg.mxu0
    %v2130 = vsel %vm1489, %v1848, 0
    %2132 = vmatprep.subr.bf16.mxu0 0
    %2133 = vmatpush1.bf16.msra.mxu0 %v179
    %2134 = vmatprep.subr.bf16.mxu0 0
    %2135 = vmatpush1.bf16.msra.mxu0 0
    %2136 = vmatprep.subr.bf16.mxu0 0
    %2137 = vmatpush1.bf16.msra.mxu0 0
    %2138 = vmatprep.subr.bf16.mxu0 0
    %2139 = vmatpush1.bf16.msra.mxu0 0
    %2140 = vmatprep.subr.bf16.mxu0 0
    %2141 = vmatpush1.bf16.msra.mxu0 0
    %2142 = vmatprep.subr.bf16.mxu0 0
    %2143 = vmatpush1.bf16.msra.mxu0 0
    %2144 = vmatprep.subr.bf16.mxu0 0
    %2145 = vmatpush1.bf16.msra.mxu0 0
    %2146 = vmatprep.subr.bf16.mxu0 0
    %2147 = vmatpush1.bf16.msra.mxu0 0
    %2148 = vmatprep.subr.bf16.mxu0 0
    %2149 = vmatpush1.bf16.msra.mxu0 0
    %2150 = vmatprep.subr.bf16.mxu0 0
    %2151 = vmatpush1.bf16.msra.mxu0 0
    %2152 = vmatprep.subr.bf16.mxu0 0
    %2153 = vmatpush1.bf16.msra.mxu0 0
    %2154 = vmatprep.subr.bf16.mxu0 0
    %2155 = vmatpush1.bf16.msra.mxu0 0
    %2156 = vmatprep.subr.bf16.mxu0 0
    %2157 = vmatpush1.bf16.msra.mxu0 0
    %2158 = vmatprep.subr.bf16.mxu0 0
    %2159 = vmatpush1.bf16.msra.mxu0 0
    %2160 = vmatprep.subr.bf16.mxu0 0
    %2161 = vmatpush1.bf16.msra.mxu0 0
    %2162 = vmatprep.subr.bf16.mxu0 0
    %2163 = vmatpush1.bf16.msra.mxu0 0
    %2164 = vmatprep.mubr.bf16.mxu0 0
    %2165 = vmatmul.mubr.bf16.gmra.mrb[0].mxu0 %v2130
    %v2166 = vpop.f32.mrb[0].mxu0
    %v2167 = vadd.f32 0.0, %v2166
    %v2168 = vpop.f32.mrb[0].mxu0
    %v2169 = vpop.f32.mrb[0].mxu0
    %v2170 = vadd.f32 0.0, %v2169
    %v2171 = vpop.f32.mrb[0].mxu0
    %2172 = vdwg.mxu0
    %v2175 = vsel %vm1489, %v1849, 0
    %2177 = vmatprep.subr.bf16.mxu0 0
    %2178 = vmatpush1.bf16.msra.mxu0 %v180
    %2179 = vmatprep.subr.bf16.mxu0 0
    %2180 = vmatpush1.bf16.msra.mxu0 0
    %2181 = vmatprep.subr.bf16.mxu0 0
    %2182 = vmatpush1.bf16.msra.mxu0 0
    %2183 = vmatprep.subr.bf16.mxu0 0
    %2184 = vmatpush1.bf16.msra.mxu0 0
    %2185 = vmatprep.subr.bf16.mxu0 0
    %2186 = vmatpush1.bf16.msra.mxu0 0
    %2187 = vmatprep.subr.bf16.mxu0 0
    %2188 = vmatpush1.bf16.msra.mxu0 0
    %2189 = vmatprep.subr.bf16.mxu0 0
    %2190 = vmatpush1.bf16.msra.mxu0 0
    %2191 = vmatprep.subr.bf16.mxu0 0
    %2192 = vmatpush1.bf16.msra.mxu0 0
    %2193 = vmatprep.subr.bf16.mxu0 0
    %2194 = vmatpush1.bf16.msra.mxu0 0
    %2195 = vmatprep.subr.bf16.mxu0 0
    %2196 = vmatpush1.bf16.msra.mxu0 0
    %2197 = vmatprep.subr.bf16.mxu0 0
    %2198 = vmatpush1.bf16.msra.mxu0 0
    %2199 = vmatprep.subr.bf16.mxu0 0
    %2200 = vmatpush1.bf16.msra.mxu0 0
    %2201 = vmatprep.subr.bf16.mxu0 0
    %2202 = vmatpush1.bf16.msra.mxu0 0
    %2203 = vmatprep.subr.bf16.mxu0 0
    %2204 = vmatpush1.bf16.msra.mxu0 0
    %2205 = vmatprep.subr.bf16.mxu0 0
    %2206 = vmatpush1.bf16.msra.mxu0 0
    %2207 = vmatprep.subr.bf16.mxu0 0
    %2208 = vmatpush1.bf16.msra.mxu0 0
    %2209 = vmatprep.mubr.bf16.mxu0 0
    %2210 = vmatmul.mubr.bf16.gmra.mrb[0].mxu0 %v2175
    %v2211 = vpop.f32.mrb[0].mxu0
    %v2212 = vadd.f32 0.0, %v2211
    %v2213 = vpop.f32.mrb[0].mxu0
    %v2214 = vpop.f32.mrb[0].mxu0
    %v2215 = vadd.f32 0.0, %v2214
    %v2216 = vpop.f32.mrb[0].mxu0
    %2217 = vdwg.mxu0
    %v2220 = vsel %vm1489, %v1850, 0
    %2222 = vmatprep.subr.bf16.mxu0 0
    %2223 = vmatpush1.bf16.msra.mxu0 %v181
    %2224 = vmatprep.subr.bf16.mxu0 0
    %2225 = vmatpush1.bf16.msra.mxu0 0
    %2226 = vmatprep.subr.bf16.mxu0 0
    %2227 = vmatpush1.bf16.msra.mxu0 0
    %2228 = vmatprep.subr.bf16.mxu0 0
    %2229 = vmatpush1.bf16.msra.mxu0 0
    %2230 = vmatprep.subr.bf16.mxu0 0
    %2231 = vmatpush1.bf16.msra.mxu0 0
    %2232 = vmatprep.subr.bf16.mxu0 0
    %2233 = vmatpush1.bf16.msra.mxu0 0
    %2234 = vmatprep.subr.bf16.mxu0 0
    %2235 = vmatpush1.bf16.msra.mxu0 0
    %2236 = vmatprep.subr.bf16.mxu0 0
    %2237 = vmatpush1.bf16.msra.mxu0 0
    %2238 = vmatprep.subr.bf16.mxu0 0
    %2239 = vmatpush1.bf16.msra.mxu0 0
    %2240 = vmatprep.subr.bf16.mxu0 0
    %2241 = vmatpush1.bf16.msra.mxu0 0
    %2242 = vmatprep.subr.bf16.mxu0 0
    %2243 = vmatpush1.bf16.msra.mxu0 0
    %2244 = vmatprep.subr.bf16.mxu0 0
    %2245 = vmatpush1.bf16.msra.mxu0 0
    %2246 = vmatprep.subr.bf16.mxu0 0
    %2247 = vmatpush1.bf16.msra.mxu0 0
    %2248 = vmatprep.subr.bf16.mxu0 0
    %2249 = vmatpush1.bf16.msra.mxu0 0
    %2250 = vmatprep.subr.bf16.mxu0 0
    %2251 = vmatpush1.bf16.msra.mxu0 0
    %2252 = vmatprep.subr.bf16.mxu0 0
    %2253 = vmatpush1.bf16.msra.mxu0 0
    %2254 = vmatprep.mubr.bf16.mxu0 0
    %2255 = vmatmul.mubr.bf16.gmra.mrb[0].mxu0 %v2220
    %v2256 = vpop.f32.mrb[0].mxu0
    %v2257 = vadd.f32 0.0, %v2256
    %v2258 = vpop.f32.mrb[0].mxu0
    %v2259 = vpop.f32.mrb[0].mxu0
    %v2260 = vadd.f32 0.0, %v2259
    %v2261 = vpop.f32.mrb[0].mxu0
    %2262 = vdwg.mxu0
    %v2265 = vsel %vm1489, %v1851, 0
    %2267 = vmatprep.subr.bf16.mxu0 0
    %2268 = vmatpush1.bf16.msra.mxu0 %v182
    %2269 = vmatprep.subr.bf16.mxu0 0
    %2270 = vmatpush1.bf16.msra.mxu0 0
    %2271 = vmatprep.subr.bf16.mxu0 0
    %2272 = vmatpush1.bf16.msra.mxu0 0
    %2273 = vmatprep.subr.bf16.mxu0 0
    %2274 = vmatpush1.bf16.msra.mxu0 0
    %2275 = vmatprep.subr.bf16.mxu0 0
    %2276 = vmatpush1.bf16.msra.mxu0 0
    %2277 = vmatprep.subr.bf16.mxu0 0
    %2278 = vmatpush1.bf16.msra.mxu0 0
    %2279 = vmatprep.subr.bf16.mxu0 0
    %2280 = vmatpush1.bf16.msra.mxu0 0
    %2281 = vmatprep.subr.bf16.mxu0 0
    %2282 = vmatpush1.bf16.msra.mxu0 0
    %2283 = vmatprep.subr.bf16.mxu0 0
    %2284 = vmatpush1.bf16.msra.mxu0 0
    %2285 = vmatprep.subr.bf16.mxu0 0
    %2286 = vmatpush1.bf16.msra.mxu0 0
    %2287 = vmatprep.subr.bf16.mxu0 0
    %2288 = vmatpush1.bf16.msra.mxu0 0
    %2289 = vmatprep.subr.bf16.mxu0 0
    %2290 = vmatpush1.bf16.msra.mxu0 0
    %2291 = vmatprep.subr.bf16.mxu0 0
    %2292 = vmatpush1.bf16.msra.mxu0 0
    %2293 = vmatprep.subr.bf16.mxu0 0
    %2294 = vmatpush1.bf16.msra.mxu0 0
    %2295 = vmatprep.subr.bf16.mxu0 0
    %2296 = vmatpush1.bf16.msra.mxu0 0
    %2297 = vmatprep.subr.bf16.mxu0 0
    %2298 = vmatpush1.bf16.msra.mxu0 0
    %2299 = vmatprep.mubr.bf16.mxu0 0
    %2300 = vmatmul.mubr.bf16.gmra.mrb[0].mxu0 %v2265
    %v2301 = vpop.f32.mrb[0].mxu0
    %v2302 = vadd.f32 0.0, %v2301
    %v2303 = vpop.f32.mrb[0].mxu0
    %v2304 = vpop.f32.mrb[0].mxu0
    %v2305 = vadd.f32 0.0, %v2304
    %v2306 = vpop.f32.mrb[0].mxu0
    %2307 = vdwg.mxu0
    %v2310 = vsel %vm1489, %v1852, 0
    %2312 = vmatprep.subr.bf16.mxu0 0
    %2313 = vmatpush1.bf16.msra.mxu0 %v183
    %2314 = vmatprep.subr.bf16.mxu0 0
    %2315 = vmatpush1.bf16.msra.mxu0 0
    %2316 = vmatprep.subr.bf16.mxu0 0
    %2317 = vmatpush1.bf16.msra.mxu0 0
    %2318 = vmatprep.subr.bf16.mxu0 0
    %2319 = vmatpush1.bf16.msra.mxu0 0
    %2320 = vmatprep.subr.bf16.mxu0 0
    %2321 = vmatpush1.bf16.msra.mxu0 0
    %2322 = vmatprep.subr.bf16.mxu0 0
    %2323 = vmatpush1.bf16.msra.mxu0 0
    %2324 = vmatprep.subr.bf16.mxu0 0
    %2325 = vmatpush1.bf16.msra.mxu0 0
    %2326 = vmatprep.subr.bf16.mxu0 0
    %2327 = vmatpush1.bf16.msra.mxu0 0
    %2328 = vmatprep.subr.bf16.mxu0 0
    %2329 = vmatpush1.bf16.msra.mxu0 0
    %2330 = vmatprep.subr.bf16.mxu0 0
    %2331 = vmatpush1.bf16.msra.mxu0 0
    %2332 = vmatprep.subr.bf16.mxu0 0
    %2333 = vmatpush1.bf16.msra.mxu0 0
    %2334 = vmatprep.subr.bf16.mxu0 0
    %2335 = vmatpush1.bf16.msra.mxu0 0
    %2336 = vmatprep.subr.bf16.mxu0 0
    %2337 = vmatpush1.bf16.msra.mxu0 0
    %2338 = vmatprep.subr.bf16.mxu0 0
    %2339 = vmatpush1.bf16.msra.mxu0 0
    %2340 = vmatprep.subr.bf16.mxu0 0
    %2341 = vmatpush1.bf16.msra.mxu0 0
    %2342 = vmatprep.subr.bf16.mxu0 0
    %2343 = vmatpush1.bf16.msra.mxu0 0
    %2344 = vmatprep.mubr.bf16.mxu0 0
    %2345 = vmatmul.mubr.bf16.gmra.mrb[0].mxu0 %v2310
    %v2346 = vpop.f32.mrb[0].mxu0
    %v2347 = vadd.f32 0.0, %v2346
    %v2348 = vpop.f32.mrb[0].mxu0
    %v2349 = vpop.f32.mrb[0].mxu0
    %v2350 = vadd.f32 0.0, %v2349
    %v2351 = vpop.f32.mrb[0].mxu0
    %2352 = vdwg.mxu0
    %v2355 = vsel %vm1489, %v1853, 0
    %2357 = vmatprep.subr.bf16.mxu0 0
    %2358 = vmatpush1.bf16.msra.mxu0 %v184
    %2359 = vmatprep.subr.bf16.mxu0 0
    %2360 = vmatpush1.bf16.msra.mxu0 0
    %2361 = vmatprep.subr.bf16.mxu0 0
    %2362 = vmatpush1.bf16.msra.mxu0 0
    %2363 = vmatprep.subr.bf16.mxu0 0
    %2364 = vmatpush1.bf16.msra.mxu0 0
    %2365 = vmatprep.subr.bf16.mxu0 0
    %2366 = vmatpush1.bf16.msra.mxu0 0
    %2367 = vmatprep.subr.bf16.mxu0 0
    %2368 = vmatpush1.bf16.msra.mxu0 0
    %2369 = vmatprep.subr.bf16.mxu0 0
    %2370 = vmatpush1.bf16.msra.mxu0 0
    %2371 = vmatprep.subr.bf16.mxu0 0
    %2372 = vmatpush1.bf16.msra.mxu0 0
    %2373 = vmatprep.subr.bf16.mxu0 0
    %2374 = vmatpush1.bf16.msra.mxu0 0
    %2375 = vmatprep.subr.bf16.mxu0 0
    %2376 = vmatpush1.bf16.msra.mxu0 0
    %2377 = vmatprep.subr.bf16.mxu0 0
    %2378 = vmatpush1.bf16.msra.mxu0 0
    %2379 = vmatprep.subr.bf16.mxu0 0
    %2380 = vmatpush1.bf16.msra.mxu0 0
    %2381 = vmatprep.subr.bf16.mxu0 0
    %2382 = vmatpush1.bf16.msra.mxu0 0
    %2383 = vmatprep.subr.bf16.mxu0 0
    %2384 = vmatpush1.bf16.msra.mxu0 0
    %2385 = vmatprep.subr.bf16.mxu0 0
    %2386 = vmatpush1.bf16.msra.mxu0 0
    %2387 = vmatprep.subr.bf16.mxu0 0
    %2388 = vmatpush1.bf16.msra.mxu0 0
    %2389 = vmatprep.mubr.bf16.mxu0 0
    %2390 = vmatmul.mubr.bf16.gmra.mrb[0].mxu0 %v2355
    %v2391 = vpop.f32.mrb[0].mxu0
    %v2392 = vadd.f32 0.0, %v2391
    %v2393 = vpop.f32.mrb[0].mxu0
    %v2394 = vpop.f32.mrb[0].mxu0
    %v2395 = vadd.f32 0.0, %v2394
    %v2396 = vpop.f32.mrb[0].mxu0
    %2397 = vdwg.mxu0
    %v2400 = vsel %vm1489, %v1854, 0
    %2402 = vmatprep.subr.bf16.mxu0 0
    %2403 = vmatpush1.bf16.msra.mxu0 %v185
    %2404 = vmatprep.subr.bf16.mxu0 0
    %2405 = vmatpush1.bf16.msra.mxu0 0
    %2406 = vmatprep.subr.bf16.mxu0 0
    %2407 = vmatpush1.bf16.msra.mxu0 0
    %2408 = vmatprep.subr.bf16.mxu0 0
    %2409 = vmatpush1.bf16.msra.mxu0 0
    %2410 = vmatprep.subr.bf16.mxu0 0
    %2411 = vmatpush1.bf16.msra.mxu0 0
    %2412 = vmatprep.subr.bf16.mxu0 0
    %2413 = vmatpush1.bf16.msra.mxu0 0
    %2414 = vmatprep.subr.bf16.mxu0 0
    %2415 = vmatpush1.bf16.msra.mxu0 0
    %2416 = vmatprep.subr.bf16.mxu0 0
    %2417 = vmatpush1.bf16.msra.mxu0 0
    %2418 = vmatprep.subr.bf16.mxu0 0
    %2419 = vmatpush1.bf16.msra.mxu0 0
    %2420 = vmatprep.subr.bf16.mxu0 0
    %2421 = vmatpush1.bf16.msra.mxu0 0
    %2422 = vmatprep.subr.bf16.mxu0 0
    %2423 = vmatpush1.bf16.msra.mxu0 0
    %2424 = vmatprep.subr.bf16.mxu0 0
    %2425 = vmatpush1.bf16.msra.mxu0 0
    %2426 = vmatprep.subr.bf16.mxu0 0
    %2427 = vmatpush1.bf16.msra.mxu0 0
    %2428 = vmatprep.subr.bf16.mxu0 0
    %2429 = vmatpush1.bf16.msra.mxu0 0
    %2430 = vmatprep.subr.bf16.mxu0 0
    %2431 = vmatpush1.bf16.msra.mxu0 0
    %2432 = vmatprep.subr.bf16.mxu0 0
    %2433 = vmatpush1.bf16.msra.mxu0 0
    %2434 = vmatprep.mubr.bf16.mxu0 0
    %2435 = vmatmul.mubr.bf16.gmra.mrb[0].mxu0 %v2400
    %v2436 = vpop.f32.mrb[0].mxu0
    %v2437 = vadd.f32 0.0, %v2436
    %v2438 = vpop.f32.mrb[0].mxu0
    %v2439 = vpop.f32.mrb[0].mxu0
    %v2440 = vadd.f32 0.0, %v2439
    %v2441 = vpop.f32.mrb[0].mxu0
    %2442 = vdwg.mxu0
    %v2445 = vsel %vm1489, %v1855, 0
    %2447 = vmatprep.subr.bf16.mxu0 0
    %2448 = vmatpush1.bf16.msra.mxu0 %v186
    %2449 = vmatprep.subr.bf16.mxu0 0
    %2450 = vmatpush1.bf16.msra.mxu0 0
    %2451 = vmatprep.subr.bf16.mxu0 0
    %2452 = vmatpush1.bf16.msra.mxu0 0
    %2453 = vmatprep.subr.bf16.mxu0 0
    %2454 = vmatpush1.bf16.msra.mxu0 0
    %2455 = vmatprep.subr.bf16.mxu0 0
    %2456 = vmatpush1.bf16.msra.mxu0 0
    %2457 = vmatprep.subr.bf16.mxu0 0
    %2458 = vmatpush1.bf16.msra.mxu0 0
    %2459 = vmatprep.subr.bf16.mxu0 0
    %2460 = vmatpush1.bf16.msra.mxu0 0
    %2461 = vmatprep.subr.bf16.mxu0 0
    %2462 = vmatpush1.bf16.msra.mxu0 0
    %2463 = vmatprep.subr.bf16.mxu0 0
    %2464 = vmatpush1.bf16.msra.mxu0 0
    %2465 = vmatprep.subr.bf16.mxu0 0
    %2466 = vmatpush1.bf16.msra.mxu0 0
    %2467 = vmatprep.subr.bf16.mxu0 0
    %2468 = vmatpush1.bf16.msra.mxu0 0
    %2469 = vmatprep.subr.bf16.mxu0 0
    %2470 = vmatpush1.bf16.msra.mxu0 0
    %2471 = vmatprep.subr.bf16.mxu0 0
    %2472 = vmatpush1.bf16.msra.mxu0 0
    %2473 = vmatprep.subr.bf16.mxu0 0
    %2474 = vmatpush1.bf16.msra.mxu0 0
    %2475 = vmatprep.subr.bf16.mxu0 0
    %2476 = vmatpush1.bf16.msra.mxu0 0
    %2477 = vmatprep.subr.bf16.mxu0 0
    %2478 = vmatpush1.bf16.msra.mxu0 0
    %2479 = vmatprep.mubr.bf16.mxu0 0
    %2480 = vmatmul.mubr.bf16.gmra.mrb[0].mxu0 %v2445
    %v2481 = vpop.f32.mrb[0].mxu0
    %v2482 = vadd.f32 0.0, %v2481
    %v2483 = vpop.f32.mrb[0].mxu0
    %v2484 = vpop.f32.mrb[0].mxu0
    %v2485 = vadd.f32 0.0, %v2484
    %v2486 = vpop.f32.mrb[0].mxu0
    %2487 = vdwg.mxu0
    %v2490 = vsel %vm1489, %v1856, 0
    %2492 = vmatprep.subr.bf16.mxu0 0
    %2493 = vmatpush1.bf16.msra.mxu0 %v187
    %2494 = vmatprep.subr.bf16.mxu0 0
    %2495 = vmatpush1.bf16.msra.mxu0 0
    %2496 = vmatprep.subr.bf16.mxu0 0
    %2497 = vmatpush1.bf16.msra.mxu0 0
    %2498 = vmatprep.subr.bf16.mxu0 0
    %2499 = vmatpush1.bf16.msra.mxu0 0
    %2500 = vmatprep.subr.bf16.mxu0 0
    %2501 = vmatpush1.bf16.msra.mxu0 0
    %2502 = vmatprep.subr.bf16.mxu0 0
    %2503 = vmatpush1.bf16.msra.mxu0 0
    %2504 = vmatprep.subr.bf16.mxu0 0
    %2505 = vmatpush1.bf16.msra.mxu0 0
    %2506 = vmatprep.subr.bf16.mxu0 0
    %2507 = vmatpush1.bf16.msra.mxu0 0
    %2508 = vmatprep.subr.bf16.mxu0 0
    %2509 = vmatpush1.bf16.msra.mxu0 0
    %2510 = vmatprep.subr.bf16.mxu0 0
    %2511 = vmatpush1.bf16.msra.mxu0 0
    %2512 = vmatprep.subr.bf16.mxu0 0
    %2513 = vmatpush1.bf16.msra.mxu0 0
    %2514 = vmatprep.subr.bf16.mxu0 0
    %2515 = vmatpush1.bf16.msra.mxu0 0
    %2516 = vmatprep.subr.bf16.mxu0 0
    %2517 = vmatpush1.bf16.msra.mxu0 0
    %2518 = vmatprep.subr.bf16.mxu0 0
    %2519 = vmatpush1.bf16.msra.mxu0 0
    %2520 = vmatprep.subr.bf16.mxu0 0
    %2521 = vmatpush1.bf16.msra.mxu0 0
    %2522 = vmatprep.subr.bf16.mxu0 0
    %2523 = vmatpush1.bf16.msra.mxu0 0
    %2524 = vmatprep.mubr.bf16.mxu0 0
    %2525 = vmatmul.mubr.bf16.gmra.mrb[0].mxu0 %v2490
    %v2526 = vpop.f32.mrb[0].mxu0
    %v2527 = vadd.f32 0.0, %v2526
    %v2528 = vpop.f32.mrb[0].mxu0
    %v2529 = vpop.f32.mrb[0].mxu0
    %v2530 = vadd.f32 0.0, %v2529
    %v2531 = vpop.f32.mrb[0].mxu0
    %2532 = vdwg.mxu0
    %v2535 = vsel %vm1489, %v1857, 0
    %2537 = vmatprep.subr.bf16.mxu0 0
    %2538 = vmatpush1.bf16.msra.mxu0 %v188
    %2539 = vmatprep.subr.bf16.mxu0 0
    %2540 = vmatpush1.bf16.msra.mxu0 0
    %2541 = vmatprep.subr.bf16.mxu0 0
    %2542 = vmatpush1.bf16.msra.mxu0 0
    %2543 = vmatprep.subr.bf16.mxu0 0
    %2544 = vmatpush1.bf16.msra.mxu0 0
    %2545 = vmatprep.subr.bf16.mxu0 0
    %2546 = vmatpush1.bf16.msra.mxu0 0
    %2547 = vmatprep.subr.bf16.mxu0 0
    %2548 = vmatpush1.bf16.msra.mxu0 0
    %2549 = vmatprep.subr.bf16.mxu0 0
    %2550 = vmatpush1.bf16.msra.mxu0 0
    %2551 = vmatprep.subr.bf16.mxu0 0
    %2552 = vmatpush1.bf16.msra.mxu0 0
    %2553 = vmatprep.subr.bf16.mxu0 0
    %2554 = vmatpush1.bf16.msra.mxu0 0
    %2555 = vmatprep.subr.bf16.mxu0 0
    %2556 = vmatpush1.bf16.msra.mxu0 0
    %2557 = vmatprep.subr.bf16.mxu0 0
    %2558 = vmatpush1.bf16.msra.mxu0 0
    %2559 = vmatprep.subr.bf16.mxu0 0
    %2560 = vmatpush1.bf16.msra.mxu0 0
    %2561 = vmatprep.subr.bf16.mxu0 0
    %2562 = vmatpush1.bf16.msra.mxu0 0
    %2563 = vmatprep.subr.bf16.mxu0 0
    %2564 = vmatpush1.bf16.msra.mxu0 0
    %2565 = vmatprep.subr.bf16.mxu0 0
    %2566 = vmatpush1.bf16.msra.mxu0 0
    %2567 = vmatprep.subr.bf16.mxu0 0
    %2568 = vmatpush1.bf16.msra.mxu0 0
    %2569 = vmatprep.mubr.bf16.mxu0 0
    %2570 = vmatmul.mubr.bf16.gmra.mrb[0].mxu0 %v2535
    %v2571 = vpop.f32.mrb[0].mxu0
    %v2572 = vadd.f32 0.0, %v2571
    %v2573 = vpop.f32.mrb[0].mxu0
    %v2574 = vpop.f32.mrb[0].mxu0
    %v2575 = vadd.f32 0.0, %v2574
    %v2576 = vpop.f32.mrb[0].mxu0
    %2577 = vdwg.mxu0
    %v2578 = vpack.c.bf16 %v1900, %v1897
    %v2579 = vpack.c.bf16 %v1945, %v1942
    %v2580 = vpack.c.bf16 %v1990, %v1987
    %v2581 = vpack.c.bf16 %v2035, %v2032
    %v2582 = vpack.c.bf16 %v2080, %v2077
    %v2583 = vpack.c.bf16 %v2125, %v2122
    %v2584 = vpack.c.bf16 %v2170, %v2167
    %v2585 = vpack.c.bf16 %v2215, %v2212
    %v2586 = vpack.c.bf16 %v2260, %v2257
    %v2587 = vpack.c.bf16 %v2305, %v2302
    %v2588 = vpack.c.bf16 %v2350, %v2347
    %v2589 = vpack.c.bf16 %v2395, %v2392
    %v2590 = vpack.c.bf16 %v2440, %v2437
    %v2591 = vpack.c.bf16 %v2485, %v2482
    %v2592 = vpack.c.bf16 %v2530, %v2527
    %v2593 = vpack.c.bf16 %v2575, %v2572
    %2610 = vrot.lane.b32.xlu0 %v2578, 32
    %v2611 = vpop.permute.xlu0 %2610
    %2612 = vrot.lane.b32.xlu0 %v2579, 32
    %v2613 = vpop.permute.xlu0 %2612
    %2614 = vrot.lane.b32.xlu0 %v2580, 32
    %v2615 = vpop.permute.xlu0 %2614
    %2616 = vrot.lane.b32.xlu0 %v2581, 32
    %v2617 = vpop.permute.xlu0 %2616
    %2618 = vrot.lane.b32.xlu0 %v2582, 32
    %v2619 = vpop.permute.xlu0 %2618
    %2620 = vrot.lane.b32.xlu0 %v2583, 32
    %v2621 = vpop.permute.xlu0 %2620
    %2622 = vrot.lane.b32.xlu0 %v2584, 32
    %v2623 = vpop.permute.xlu0 %2622
    %2624 = vrot.lane.b32.xlu0 %v2585, 32
    %v2625 = vpop.permute.xlu0 %2624
    %2626 = vrot.lane.b32.xlu0 %v2586, 32
    %v2627 = vpop.permute.xlu0 %2626
    %2628 = vrot.lane.b32.xlu0 %v2587, 32
    %v2629 = vpop.permute.xlu0 %2628
    %2630 = vrot.lane.b32.xlu0 %v2588, 32
    %v2631 = vpop.permute.xlu0 %2630
    %2632 = vrot.lane.b32.xlu0 %v2589, 32
    %v2633 = vpop.permute.xlu0 %2632
    %2634 = vrot.lane.b32.xlu0 %v2590, 32
    %v2635 = vpop.permute.xlu0 %2634
    %2636 = vrot.lane.b32.xlu0 %v2591, 32
    %v2637 = vpop.permute.xlu0 %2636
    %2638 = vrot.lane.b32.xlu0 %v2592, 32
    %v2639 = vpop.permute.xlu0 %2638
    %2640 = vrot.lane.b32.xlu0 %v2593, 32
    %v2641 = vpop.permute.xlu0 %2640
    %v2643 = vsel %vm201, %v173, %v2611
    %v2645 = vsel %vm201, %v174, %v2613
    %v2647 = vsel %vm201, %v175, %v2615
    %v2649 = vsel %vm201, %v176, %v2617
    %v2651 = vsel %vm201, %v177, %v2619
    %v2653 = vsel %vm201, %v178, %v2621
    %v2655 = vsel %vm201, %v179, %v2623
    %v2657 = vsel %vm201, %v180, %v2625
    %v2659 = vsel %vm201, %v181, %v2627
    %v2661 = vsel %vm201, %v182, %v2629
    %v2663 = vsel %vm201, %v183, %v2631
    %v2665 = vsel %vm201, %v184, %v2633
    %v2667 = vsel %vm201, %v185, %v2635
    %v2669 = vsel %vm201, %v186, %v2637
    %v2671 = vsel %vm201, %v187, %v2639
    %v2673 = vsel %vm201, %v188, %v2641
    %v2674 = vld [vmem:[%s5] sm:$0xf]
    %v2675 = vld [vmem:[%s5 + $0x4] sm:$0xf]
    %v2676 = vld [vmem:[%s5 + $0x8] sm:$0xf]
    %v2677 = vld [vmem:[%s5 + $0xc] sm:$0xf]
    %v2678 = vld [vmem:[%s5 + $0x10] sm:$0xf]
    %v2679 = vld [vmem:[%s5 + $0x14] sm:$0xf]
    %v2680 = vld [vmem:[%s5 + $0x18] sm:$0xf]
    %v2681 = vld [vmem:[%s5 + $0x1c] sm:$0xf]
    %v2682 = vld [vmem:[%s6] sm:$0x1]
    %v2684 = vlaneseq
    %v2685 = vshrl.u32 %v2684, 7
    %v2686 = vsub.s32 0, %v2685
    %v2687 = vrot.slane %v2682, %v2686
    %v2697 = vunpack.c.l.b16 %v2674
    %v2698 = vunpack.c.l.b16 %v2675
    %v2699 = vunpack.c.l.b16 %v2676
    %v2700 = vunpack.c.l.b16 %v2677
    %v2701 = vunpack.c.l.b16 %v2678
    %v2702 = vunpack.c.l.b16 %v2679
    %v2703 = vunpack.c.l.b16 %v2680
    %v2704 = vunpack.c.l.b16 %v2681
    %v2705 = vpack.c.b16 %v2698, %v2697
    %v2706 = vpack.c.b16 %v2700, %v2699
    %v2707 = vpack.c.b16 %v2702, %v2701
    %v2708 = vpack.c.b16 %v2704, %v2703
    %vm2713 = vcmask 523264
    %v2714 = vsel %vm2713, %v2643, 0
    %v2716 = vsel %vm2713, %v2645, 0
    %v2718 = vsel %vm2713, %v2647, 0
    %v2720 = vsel %vm2713, %v2649, 0
    %v2722 = vsel %vm2713, %v2651, 0
    %v2724 = vsel %vm2713, %v2653, 0
    %v2726 = vsel %vm2713, %v2655, 0
    %v2728 = vsel %vm2713, %v2657, 0
    %v2730 = vsel %vm2713, %v2659, 0
    %v2732 = vsel %vm2713, %v2661, 0
    %v2734 = vsel %vm2713, %v2663, 0
    %v2736 = vsel %vm2713, %v2665, 0
    %v2738 = vsel %vm2713, %v2667, 0
    %v2740 = vsel %vm2713, %v2669, 0
    %v2742 = vsel %vm2713, %v2671, 0
    %v2744 = vsel %vm2713, %v2673, 0
    %2746 = vmatprep.subr.bf16.mxu0 0
    %2747 = vmatpush1.bf16.msra.mxu0 %v2705
    %2748 = vmatprep.subr.bf16.mxu0 0
    %2749 = vmatpush1.bf16.msra.mxu0 %v2706
    %2750 = vmatprep.subr.bf16.mxu0 0
    %2751 = vmatpush1.bf16.msra.mxu0 %v2707
    %2752 = vmatprep.subr.bf16.mxu0 0
    %2753 = vmatpush1.bf16.msra.mxu0 %v2708
    %2754 = vmatprep.subr.bf16.mxu0 0
    %2755 = vmatpush1.bf16.msra.mxu0 0
    %2756 = vmatprep.subr.bf16.mxu0 0
    %2757 = vmatpush1.bf16.msra.mxu0 0
    %2758 = vmatprep.subr.bf16.mxu0 0
    %2759 = vmatpush1.bf16.msra.mxu0 0
    %2760 = vmatprep.subr.bf16.mxu0 0
    %2761 = vmatpush1.bf16.msra.mxu0 0
    %2762 = vmatprep.subr.bf16.mxu0 0
    %2763 = vmatpush1.bf16.msra.mxu0 0
    %2764 = vmatprep.subr.bf16.mxu0 0
    %2765 = vmatpush1.bf16.msra.mxu0 0
    %2766 = vmatprep.subr.bf16.mxu0 0
    %2767 = vmatpush1.bf16.msra.mxu0 0
    %2768 = vmatprep.subr.bf16.mxu0 0
    %2769 = vmatpush1.bf16.msra.mxu0 0
    %2770 = vmatprep.subr.bf16.mxu0 0
    %2771 = vmatpush1.bf16.msra.mxu0 0
    %2772 = vmatprep.subr.bf16.mxu0 0
    %2773 = vmatpush1.bf16.msra.mxu0 0
    %2774 = vmatprep.subr.bf16.mxu0 0
    %2775 = vmatpush1.bf16.msra.mxu0 0
    %2776 = vmatprep.subr.bf16.mxu0 0
    %2777 = vmatpush1.bf16.msra.mxu0 0
    %2778 = vmatprep.mubr.bf16.mxu0 0
    %2779 = vmatmul.mubr.bf16.gmra.mrb[0].mxu0 %v2714
    %v2780 = vpop.f32.mrb[0].mxu0
    %v2781 = vadd.f32 %v2687, %v2780
    %v2782 = vpop.f32.mrb[0].mxu0
    %v2783 = vpop.f32.mrb[0].mxu0
    %v2784 = vadd.f32 %v2687, %v2783
    %v2785 = vpop.f32.mrb[0].mxu0
    %2786 = vmatprep.mubr.bf16.mxu0 0
    %2787 = vmatmul.mubr.bf16.gmra.mrb[0].mxu0 %v2716
    %v2788 = vpop.f32.mrb[0].mxu0
    %v2789 = vadd.f32 %v2687, %v2788
    %v2790 = vpop.f32.mrb[0].mxu0
    %v2791 = vpop.f32.mrb[0].mxu0
    %v2792 = vadd.f32 %v2687, %v2791
    %v2793 = vpop.f32.mrb[0].mxu0
    %2794 = vmatprep.mubr.bf16.mxu0 0
    %2795 = vmatmul.mubr.bf16.gmra.mrb[0].mxu0 %v2718
    %v2796 = vpop.f32.mrb[0].mxu0
    %v2797 = vadd.f32 %v2687, %v2796
    %v2798 = vpop.f32.mrb[0].mxu0
    %v2799 = vpop.f32.mrb[0].mxu0
    %v2800 = vadd.f32 %v2687, %v2799
    %v2801 = vpop.f32.mrb[0].mxu0
    %2802 = vmatprep.mubr.bf16.mxu0 0
    %2803 = vmatmul.mubr.bf16.gmra.mrb[0].mxu0 %v2720
    %v2804 = vpop.f32.mrb[0].mxu0
    %v2805 = vadd.f32 %v2687, %v2804
    %v2806 = vpop.f32.mrb[0].mxu0
    %v2807 = vpop.f32.mrb[0].mxu0
    %v2808 = vadd.f32 %v2687, %v2807
    %v2809 = vpop.f32.mrb[0].mxu0
    %2810 = vmatprep.mubr.bf16.mxu0 0
    %2811 = vmatmul.mubr.bf16.gmra.mrb[0].mxu0 %v2722
    %v2812 = vpop.f32.mrb[0].mxu0
    %v2813 = vadd.f32 %v2687, %v2812
    %v2814 = vpop.f32.mrb[0].mxu0
    %v2815 = vpop.f32.mrb[0].mxu0
    %v2816 = vadd.f32 %v2687, %v2815
    %v2817 = vpop.f32.mrb[0].mxu0
    %2818 = vmatprep.mubr.bf16.mxu0 0
    %2819 = vmatmul.mubr.bf16.gmra.mrb[0].mxu0 %v2724
    %v2820 = vpop.f32.mrb[0].mxu0
    %v2821 = vadd.f32 %v2687, %v2820
    %v2822 = vpop.f32.mrb[0].mxu0
    %v2823 = vpop.f32.mrb[0].mxu0
    %v2824 = vadd.f32 %v2687, %v2823
    %v2825 = vpop.f32.mrb[0].mxu0
    %2826 = vmatprep.mubr.bf16.mxu0 0
    %2827 = vmatmul.mubr.bf16.gmra.mrb[0].mxu0 %v2726
    %v2828 = vpop.f32.mrb[0].mxu0
    %v2829 = vadd.f32 %v2687, %v2828
    %v2830 = vpop.f32.mrb[0].mxu0
    %v2831 = vpop.f32.mrb[0].mxu0
    %v2832 = vadd.f32 %v2687, %v2831
    %v2833 = vpop.f32.mrb[0].mxu0
    %2834 = vmatprep.mubr.bf16.mxu0 0
    %2835 = vmatmul.mubr.bf16.gmra.mrb[0].mxu0 %v2728
    %v2836 = vpop.f32.mrb[0].mxu0
    %v2837 = vadd.f32 %v2687, %v2836
    %v2838 = vpop.f32.mrb[0].mxu0
    %v2839 = vpop.f32.mrb[0].mxu0
    %v2840 = vadd.f32 %v2687, %v2839
    %v2841 = vpop.f32.mrb[0].mxu0
    %2842 = vmatprep.mubr.bf16.mxu0 0
    %2843 = vmatmul.mubr.bf16.gmra.mrb[0].mxu0 %v2730
    %v2844 = vpop.f32.mrb[0].mxu0
    %v2845 = vadd.f32 %v2687, %v2844
    %v2846 = vpop.f32.mrb[0].mxu0
    %v2847 = vpop.f32.mrb[0].mxu0
    %v2848 = vadd.f32 %v2687, %v2847
    %v2849 = vpop.f32.mrb[0].mxu0
    %2850 = vmatprep.mubr.bf16.mxu0 0
    %2851 = vmatmul.mubr.bf16.gmra.mrb[0].mxu0 %v2732
    %v2852 = vpop.f32.mrb[0].mxu0
    %v2853 = vadd.f32 %v2687, %v2852
    %v2854 = vpop.f32.mrb[0].mxu0
    %v2855 = vpop.f32.mrb[0].mxu0
    %v2856 = vadd.f32 %v2687, %v2855
    %v2857 = vpop.f32.mrb[0].mxu0
    %2858 = vmatprep.mubr.bf16.mxu0 0
    %2859 = vmatmul.mubr.bf16.gmra.mrb[0].mxu0 %v2734
    %v2860 = vpop.f32.mrb[0].mxu0
    %v2861 = vadd.f32 %v2687, %v2860
    %v2862 = vpop.f32.mrb[0].mxu0
    %v2863 = vpop.f32.mrb[0].mxu0
    %v2864 = vadd.f32 %v2687, %v2863
    %v2865 = vpop.f32.mrb[0].mxu0
    %2866 = vmatprep.mubr.bf16.mxu0 0
    %2867 = vmatmul.mubr.bf16.gmra.mrb[0].mxu0 %v2736
    %v2868 = vpop.f32.mrb[0].mxu0
    %v2869 = vadd.f32 %v2687, %v2868
    %v2870 = vpop.f32.mrb[0].mxu0
    %v2871 = vpop.f32.mrb[0].mxu0
    %v2872 = vadd.f32 %v2687, %v2871
    %v2873 = vpop.f32.mrb[0].mxu0
    %2874 = vmatprep.mubr.bf16.mxu0 0
    %2875 = vmatmul.mubr.bf16.gmra.mrb[0].mxu0 %v2738
    %v2876 = vpop.f32.mrb[0].mxu0
    %v2877 = vadd.f32 %v2687, %v2876
    %v2878 = vpop.f32.mrb[0].mxu0
    %v2879 = vpop.f32.mrb[0].mxu0
    %v2880 = vadd.f32 %v2687, %v2879
    %v2881 = vpop.f32.mrb[0].mxu0
    %2882 = vmatprep.mubr.bf16.mxu0 0
    %2883 = vmatmul.mubr.bf16.gmra.mrb[0].mxu0 %v2740
    %v2884 = vpop.f32.mrb[0].mxu0
    %v2885 = vadd.f32 %v2687, %v2884
    %v2886 = vpop.f32.mrb[0].mxu0
    %v2887 = vpop.f32.mrb[0].mxu0
    %v2888 = vadd.f32 %v2687, %v2887
    %v2889 = vpop.f32.mrb[0].mxu0
    %2890 = vmatprep.mubr.bf16.mxu0 0
    %2891 = vmatmul.mubr.bf16.gmra.mrb[0].mxu0 %v2742
    %v2892 = vpop.f32.mrb[0].mxu0
    %v2893 = vadd.f32 %v2687, %v2892
    %v2894 = vpop.f32.mrb[0].mxu0
    %v2895 = vpop.f32.mrb[0].mxu0
    %v2896 = vadd.f32 %v2687, %v2895
    %v2897 = vpop.f32.mrb[0].mxu0
    %2898 = vmatprep.mubr.bf16.mxu0 0
    %2899 = vmatmul.mubr.bf16.gmra.mrb[0].mxu0 %v2744
    %v2900 = vpop.f32.mrb[0].mxu0
    %v2901 = vadd.f32 %v2687, %v2900
    %v2902 = vpop.f32.mrb[0].mxu0
    %v2903 = vpop.f32.mrb[0].mxu0
    %v2904 = vadd.f32 %v2687, %v2903
    %v2905 = vpop.f32.mrb[0].mxu0
    %2906 = vdwg.mxu0
    %v2907 = vmax.f32 %v2781, 0.0
    %v2908 = vmax.f32 %v2784, 0.0
    %v2909 = vmax.f32 %v2789, 0.0
    %v2910 = vmax.f32 %v2792, 0.0
    %v2911 = vmax.f32 %v2797, 0.0
    %v2912 = vmax.f32 %v2800, 0.0
    %v2913 = vmax.f32 %v2805, 0.0
    %v2914 = vmax.f32 %v2808, 0.0
    %v2915 = vmax.f32 %v2813, 0.0
    %v2916 = vmax.f32 %v2816, 0.0
    %v2917 = vmax.f32 %v2821, 0.0
    %v2918 = vmax.f32 %v2824, 0.0
    %v2919 = vmax.f32 %v2829, 0.0
    %v2920 = vmax.f32 %v2832, 0.0
    %v2921 = vmax.f32 %v2837, 0.0
    %v2922 = vmax.f32 %v2840, 0.0
    %v2923 = vmax.f32 %v2845, 0.0
    %v2924 = vmax.f32 %v2848, 0.0
    %v2925 = vmax.f32 %v2853, 0.0
    %v2926 = vmax.f32 %v2856, 0.0
    %v2927 = vmax.f32 %v2861, 0.0
    %v2928 = vmax.f32 %v2864, 0.0
    %v2929 = vmax.f32 %v2869, 0.0
    %v2930 = vmax.f32 %v2872, 0.0
    %v2931 = vmax.f32 %v2877, 0.0
    %v2932 = vmax.f32 %v2880, 0.0
    %v2933 = vmax.f32 %v2885, 0.0
    %v2934 = vmax.f32 %v2888, 0.0
    %v2935 = vmax.f32 %v2893, 0.0
    %v2936 = vmax.f32 %v2896, 0.0
    %v2937 = vmax.f32 %v2901, 0.0
    %v2938 = vmax.f32 %v2904, 0.0
    %v2939 = vpack.c.bf16 %v2908, %v2907
    %v2940 = vpack.c.bf16 %v2910, %v2909
    %v2941 = vpack.c.bf16 %v2912, %v2911
    %v2942 = vpack.c.bf16 %v2914, %v2913
    %v2943 = vpack.c.bf16 %v2916, %v2915
    %v2944 = vpack.c.bf16 %v2918, %v2917
    %v2945 = vpack.c.bf16 %v2920, %v2919
    %v2946 = vpack.c.bf16 %v2922, %v2921
    %v2947 = vpack.c.bf16 %v2924, %v2923
    %v2948 = vpack.c.bf16 %v2926, %v2925
    %v2949 = vpack.c.bf16 %v2928, %v2927
    %v2950 = vpack.c.bf16 %v2930, %v2929
    %v2951 = vpack.c.bf16 %v2932, %v2931
    %v2952 = vpack.c.bf16 %v2934, %v2933
    %v2953 = vpack.c.bf16 %v2936, %v2935
    %v2954 = vpack.c.bf16 %v2938, %v2937
    %v2955 = vld [vmem:[%s7] sm:$0xf]
    %v2956 = vld [vmem:[%s7 + $0x4] sm:$0xf]
    %v2957 = vld [vmem:[%s7 + $0x8] sm:$0xf]
    %v2958 = vld [vmem:[%s7 + $0xc] sm:$0xf]
    %v2959 = vld [vmem:[%s8] sm:$0x1]
    %v2961 = vlaneseq
    %v2962 = vshrl.u32 %v2961, 7
    %v2963 = vsub.s32 0, %v2962
    %v2964 = vrot.slane %v2959, %v2963
    %v2970 = vunpack.c.l.b16 %v2955
    %v2971 = vunpack.c.l.b16 %v2956
    %v2972 = vunpack.c.l.b16 %v2957
    %v2973 = vunpack.c.l.b16 %v2958
    %v2974 = vpack.c.b16 %v2971, %v2970
    %v2975 = vpack.c.b16 %v2973, %v2972
    %v2979 = vsel %vm201, %v2939, 0
    %v2982 = vsel %vm201, %v2940, 0
    %v2985 = vsel %vm201, %v2941, 0
    %v2988 = vsel %vm201, %v2942, 0
    %v2991 = vsel %vm201, %v2943, 0
    %v2994 = vsel %vm201, %v2944, 0
    %v2997 = vsel %vm201, %v2945, 0
    %v3000 = vsel %vm201, %v2946, 0
    %v3003 = vsel %vm201, %v2947, 0
    %v3006 = vsel %vm201, %v2948, 0
    %v3009 = vsel %vm201, %v2949, 0
    %v3012 = vsel %vm201, %v2950, 0
    %v3015 = vsel %vm201, %v2951, 0
    %v3018 = vsel %vm201, %v2952, 0
    %v3021 = vsel %vm201, %v2953, 0
    %v3024 = vsel %vm201, %v2954, 0
    %3026 = vmatprep.subr.bf16.mxu0 0
    %3027 = vmatpush1.bf16.msra.mxu0 %v2974
    %3028 = vmatprep.subr.bf16.mxu0 0
    %3029 = vmatpush1.bf16.msra.mxu0 %v2975
    %3030 = vmatprep.subr.bf16.mxu0 0
    %3031 = vmatpush1.bf16.msra.mxu0 0
    %3032 = vmatprep.subr.bf16.mxu0 0
    %3033 = vmatpush1.bf16.msra.mxu0 0
    %3034 = vmatprep.subr.bf16.mxu0 0
    %3035 = vmatpush1.bf16.msra.mxu0 0
    %3036 = vmatprep.subr.bf16.mxu0 0
    %3037 = vmatpush1.bf16.msra.mxu0 0
    %3038 = vmatprep.subr.bf16.mxu0 0
    %3039 = vmatpush1.bf16.msra.mxu0 0
    %3040 = vmatprep.subr.bf16.mxu0 0
    %3041 = vmatpush1.bf16.msra.mxu0 0
    %3042 = vmatprep.subr.bf16.mxu0 0
    %3043 = vmatpush1.bf16.msra.mxu0 0
    %3044 = vmatprep.subr.bf16.mxu0 0
    %3045 = vmatpush1.bf16.msra.mxu0 0
    %3046 = vmatprep.subr.bf16.mxu0 0
    %3047 = vmatpush1.bf16.msra.mxu0 0
    %3048 = vmatprep.subr.bf16.mxu0 0
    %3049 = vmatpush1.bf16.msra.mxu0 0
    %3050 = vmatprep.subr.bf16.mxu0 0
    %3051 = vmatpush1.bf16.msra.mxu0 0
    %3052 = vmatprep.subr.bf16.mxu0 0
    %3053 = vmatpush1.bf16.msra.mxu0 0
    %3054 = vmatprep.subr.bf16.mxu0 0
    %3055 = vmatpush1.bf16.msra.mxu0 0
    %3056 = vmatprep.subr.bf16.mxu0 0
    %3057 = vmatpush1.bf16.msra.mxu0 0
    %3058 = vmatprep.mubr.bf16.mxu0 0
    %3059 = vmatmul.mubr.bf16.gmra.mrb[0].mxu0 %v2979
    %v3060 = vpop.f32.mrb[0].mxu0
    %v3061 = vadd.f32 %v2964, %v3060
    %v3062 = vpop.f32.mrb[0].mxu0
    %v3063 = vpop.f32.mrb[0].mxu0
    %v3064 = vadd.f32 %v2964, %v3063
    %v3065 = vpop.f32.mrb[0].mxu0
    %3066 = vmatprep.mubr.bf16.mxu0 0
    %3067 = vmatmul.mubr.bf16.gmra.mrb[0].mxu0 %v2982
    %v3068 = vpop.f32.mrb[0].mxu0
    %v3069 = vadd.f32 %v2964, %v3068
    %v3070 = vpop.f32.mrb[0].mxu0
    %v3071 = vpop.f32.mrb[0].mxu0
    %v3072 = vadd.f32 %v2964, %v3071
    %v3073 = vpop.f32.mrb[0].mxu0
    %3074 = vmatprep.mubr.bf16.mxu0 0
    %3075 = vmatmul.mubr.bf16.gmra.mrb[0].mxu0 %v2985
    %v3076 = vpop.f32.mrb[0].mxu0
    %v3077 = vadd.f32 %v2964, %v3076
    %v3078 = vpop.f32.mrb[0].mxu0
    %v3079 = vpop.f32.mrb[0].mxu0
    %v3080 = vadd.f32 %v2964, %v3079
    %v3081 = vpop.f32.mrb[0].mxu0
    %3082 = vmatprep.mubr.bf16.mxu0 0
    %3083 = vmatmul.mubr.bf16.gmra.mrb[0].mxu0 %v2988
    %v3084 = vpop.f32.mrb[0].mxu0
    %v3085 = vadd.f32 %v2964, %v3084
    %v3086 = vpop.f32.mrb[0].mxu0
    %v3087 = vpop.f32.mrb[0].mxu0
    %v3088 = vadd.f32 %v2964, %v3087
    %v3089 = vpop.f32.mrb[0].mxu0
    %3090 = vmatprep.mubr.bf16.mxu0 0
    %3091 = vmatmul.mubr.bf16.gmra.mrb[0].mxu0 %v2991
    %v3092 = vpop.f32.mrb[0].mxu0
    %v3093 = vadd.f32 %v2964, %v3092
    %v3094 = vpop.f32.mrb[0].mxu0
    %v3095 = vpop.f32.mrb[0].mxu0
    %v3096 = vadd.f32 %v2964, %v3095
    %v3097 = vpop.f32.mrb[0].mxu0
    %3098 = vmatprep.mubr.bf16.mxu0 0
    %3099 = vmatmul.mubr.bf16.gmra.mrb[0].mxu0 %v2994
    %v3100 = vpop.f32.mrb[0].mxu0
    %v3101 = vadd.f32 %v2964, %v3100
    %v3102 = vpop.f32.mrb[0].mxu0
    %v3103 = vpop.f32.mrb[0].mxu0
    %v3104 = vadd.f32 %v2964, %v3103
    %v3105 = vpop.f32.mrb[0].mxu0
    %3106 = vmatprep.mubr.bf16.mxu0 0
    %3107 = vmatmul.mubr.bf16.gmra.mrb[0].mxu0 %v2997
    %v3108 = vpop.f32.mrb[0].mxu0
    %v3109 = vadd.f32 %v2964, %v3108
    %v3110 = vpop.f32.mrb[0].mxu0
    %v3111 = vpop.f32.mrb[0].mxu0
    %v3112 = vadd.f32 %v2964, %v3111
    %v3113 = vpop.f32.mrb[0].mxu0
    %3114 = vmatprep.mubr.bf16.mxu0 0
    %3115 = vmatmul.mubr.bf16.gmra.mrb[0].mxu0 %v3000
    %v3116 = vpop.f32.mrb[0].mxu0
    %v3117 = vadd.f32 %v2964, %v3116
    %v3118 = vpop.f32.mrb[0].mxu0
    %v3119 = vpop.f32.mrb[0].mxu0
    %v3120 = vadd.f32 %v2964, %v3119
    %v3121 = vpop.f32.mrb[0].mxu0
    %3122 = vmatprep.mubr.bf16.mxu0 0
    %3123 = vmatmul.mubr.bf16.gmra.mrb[0].mxu0 %v3003
    %v3124 = vpop.f32.mrb[0].mxu0
    %v3125 = vadd.f32 %v2964, %v3124
    %v3126 = vpop.f32.mrb[0].mxu0
    %v3127 = vpop.f32.mrb[0].mxu0
    %v3128 = vadd.f32 %v2964, %v3127
    %v3129 = vpop.f32.mrb[0].mxu0
    %3130 = vmatprep.mubr.bf16.mxu0 0
    %3131 = vmatmul.mubr.bf16.gmra.mrb[0].mxu0 %v3006
    %v3132 = vpop.f32.mrb[0].mxu0
    %v3133 = vadd.f32 %v2964, %v3132
    %v3134 = vpop.f32.mrb[0].mxu0
    %v3135 = vpop.f32.mrb[0].mxu0
    %v3136 = vadd.f32 %v2964, %v3135
    %v3137 = vpop.f32.mrb[0].mxu0
    %3138 = vmatprep.mubr.bf16.mxu0 0
    %3139 = vmatmul.mubr.bf16.gmra.mrb[0].mxu0 %v3009
    %v3140 = vpop.f32.mrb[0].mxu0
    %v3141 = vadd.f32 %v2964, %v3140
    %v3142 = vpop.f32.mrb[0].mxu0
    %v3143 = vpop.f32.mrb[0].mxu0
    %v3144 = vadd.f32 %v2964, %v3143
    %v3145 = vpop.f32.mrb[0].mxu0
    %3146 = vmatprep.mubr.bf16.mxu0 0
    %3147 = vmatmul.mubr.bf16.gmra.mrb[0].mxu0 %v3012
    %v3148 = vpop.f32.mrb[0].mxu0
    %v3149 = vadd.f32 %v2964, %v3148
    %v3150 = vpop.f32.mrb[0].mxu0
    %v3151 = vpop.f32.mrb[0].mxu0
    %v3152 = vadd.f32 %v2964, %v3151
    %v3153 = vpop.f32.mrb[0].mxu0
    %3154 = vmatprep.mubr.bf16.mxu0 0
    %3155 = vmatmul.mubr.bf16.gmra.mrb[0].mxu0 %v3015
    %v3156 = vpop.f32.mrb[0].mxu0
    %v3157 = vadd.f32 %v2964, %v3156
    %v3158 = vpop.f32.mrb[0].mxu0
    %v3159 = vpop.f32.mrb[0].mxu0
    %v3160 = vadd.f32 %v2964, %v3159
    %v3161 = vpop.f32.mrb[0].mxu0
    %3162 = vmatprep.mubr.bf16.mxu0 0
    %3163 = vmatmul.mubr.bf16.gmra.mrb[0].mxu0 %v3018
    %v3164 = vpop.f32.mrb[0].mxu0
    %v3165 = vadd.f32 %v2964, %v3164
    %v3166 = vpop.f32.mrb[0].mxu0
    %v3167 = vpop.f32.mrb[0].mxu0
    %v3168 = vadd.f32 %v2964, %v3167
    %v3169 = vpop.f32.mrb[0].mxu0
    %3170 = vmatprep.mubr.bf16.mxu0 0
    %3171 = vmatmul.mubr.bf16.gmra.mrb[0].mxu0 %v3021
    %v3172 = vpop.f32.mrb[0].mxu0
    %v3173 = vadd.f32 %v2964, %v3172
    %v3174 = vpop.f32.mrb[0].mxu0
    %v3175 = vpop.f32.mrb[0].mxu0
    %v3176 = vadd.f32 %v2964, %v3175
    %v3177 = vpop.f32.mrb[0].mxu0
    %3178 = vmatprep.mubr.bf16.mxu0 0
    %3179 = vmatmul.mubr.bf16.gmra.mrb[0].mxu0 %v3024
    %v3180 = vpop.f32.mrb[0].mxu0
    %v3181 = vadd.f32 %v2964, %v3180
    %v3182 = vpop.f32.mrb[0].mxu0
    %v3183 = vpop.f32.mrb[0].mxu0
    %v3184 = vadd.f32 %v2964, %v3183
    %v3185 = vpop.f32.mrb[0].mxu0
    %3186 = vdwg.mxu0
    %v3187 = vmax.f32 %v3061, 0.0
    %v3188 = vmax.f32 %v3064, 0.0
    %v3189 = vmax.f32 %v3069, 0.0
    %v3190 = vmax.f32 %v3072, 0.0
    %v3191 = vmax.f32 %v3077, 0.0
    %v3192 = vmax.f32 %v3080, 0.0
    %v3193 = vmax.f32 %v3085, 0.0
    %v3194 = vmax.f32 %v3088, 0.0
    %v3195 = vmax.f32 %v3093, 0.0
    %v3196 = vmax.f32 %v3096, 0.0
    %v3197 = vmax.f32 %v3101, 0.0
    %v3198 = vmax.f32 %v3104, 0.0
    %v3199 = vmax.f32 %v3109, 0.0
    %v3200 = vmax.f32 %v3112, 0.0
    %v3201 = vmax.f32 %v3117, 0.0
    %v3202 = vmax.f32 %v3120, 0.0
    %v3203 = vmax.f32 %v3125, 0.0
    %v3204 = vmax.f32 %v3128, 0.0
    %v3205 = vmax.f32 %v3133, 0.0
    %v3206 = vmax.f32 %v3136, 0.0
    %v3207 = vmax.f32 %v3141, 0.0
    %v3208 = vmax.f32 %v3144, 0.0
    %v3209 = vmax.f32 %v3149, 0.0
    %v3210 = vmax.f32 %v3152, 0.0
    %v3211 = vmax.f32 %v3157, 0.0
    %v3212 = vmax.f32 %v3160, 0.0
    %v3213 = vmax.f32 %v3165, 0.0
    %v3214 = vmax.f32 %v3168, 0.0
    %v3215 = vmax.f32 %v3173, 0.0
    %v3216 = vmax.f32 %v3176, 0.0
    %v3217 = vmax.f32 %v3181, 0.0
    %v3218 = vmax.f32 %v3184, 0.0
    %v3219 = vsel %vm201, %v3187, 0.0
    %v3220 = vrot.slane %v3219, 4
    %v3221 = vadd.f32 %v3219, %v3220
    %v3222 = vrot.slane %v3221, 2
    %v3223 = vadd.f32 %v3221, %v3222
    %v3224 = vrot.slane %v3223, 1
    %v3225 = vadd.f32 %v3223, %v3224
    %v3226 = vsel %vm201, %v3189, 0.0
    %v3227 = vrot.slane %v3226, 4
    %v3228 = vadd.f32 %v3226, %v3227
    %v3229 = vrot.slane %v3228, 2
    %v3230 = vadd.f32 %v3228, %v3229
    %v3231 = vrot.slane %v3230, 1
    %v3232 = vadd.f32 %v3230, %v3231
    %v3233 = vsel %vm201, %v3191, 0.0
    %v3234 = vrot.slane %v3233, 4
    %v3235 = vadd.f32 %v3233, %v3234
    %v3236 = vrot.slane %v3235, 2
    %v3237 = vadd.f32 %v3235, %v3236
    %v3238 = vrot.slane %v3237, 1
    %v3239 = vadd.f32 %v3237, %v3238
    %v3240 = vsel %vm201, %v3193, 0.0
    %v3241 = vrot.slane %v3240, 4
    %v3242 = vadd.f32 %v3240, %v3241
    %v3243 = vrot.slane %v3242, 2
    %v3244 = vadd.f32 %v3242, %v3243
    %v3245 = vrot.slane %v3244, 1
    %v3246 = vadd.f32 %v3244, %v3245
    %v3247 = vsel %vm201, %v3195, 0.0
    %v3248 = vrot.slane %v3247, 4
    %v3249 = vadd.f32 %v3247, %v3248
    %v3250 = vrot.slane %v3249, 2
    %v3251 = vadd.f32 %v3249, %v3250
    %v3252 = vrot.slane %v3251, 1
    %v3253 = vadd.f32 %v3251, %v3252
    %v3254 = vsel %vm201, %v3197, 0.0
    %v3255 = vrot.slane %v3254, 4
    %v3256 = vadd.f32 %v3254, %v3255
    %v3257 = vrot.slane %v3256, 2
    %v3258 = vadd.f32 %v3256, %v3257
    %v3259 = vrot.slane %v3258, 1
    %v3260 = vadd.f32 %v3258, %v3259
    %v3261 = vsel %vm201, %v3199, 0.0
    %v3262 = vrot.slane %v3261, 4
    %v3263 = vadd.f32 %v3261, %v3262
    %v3264 = vrot.slane %v3263, 2
    %v3265 = vadd.f32 %v3263, %v3264
    %v3266 = vrot.slane %v3265, 1
    %v3267 = vadd.f32 %v3265, %v3266
    %v3268 = vsel %vm201, %v3201, 0.0
    %v3269 = vrot.slane %v3268, 4
    %v3270 = vadd.f32 %v3268, %v3269
    %v3271 = vrot.slane %v3270, 2
    %v3272 = vadd.f32 %v3270, %v3271
    %v3273 = vrot.slane %v3272, 1
    %v3274 = vadd.f32 %v3272, %v3273
    %v3275 = vsel %vm201, %v3203, 0.0
    %v3276 = vrot.slane %v3275, 4
    %v3277 = vadd.f32 %v3275, %v3276
    %v3278 = vrot.slane %v3277, 2
    %v3279 = vadd.f32 %v3277, %v3278
    %v3280 = vrot.slane %v3279, 1
    %v3281 = vadd.f32 %v3279, %v3280
    %v3282 = vsel %vm201, %v3205, 0.0
    %v3283 = vrot.slane %v3282, 4
    %v3284 = vadd.f32 %v3282, %v3283
    %v3285 = vrot.slane %v3284, 2
    %v3286 = vadd.f32 %v3284, %v3285
    %v3287 = vrot.slane %v3286, 1
    %v3288 = vadd.f32 %v3286, %v3287
    %v3289 = vsel %vm201, %v3207, 0.0
    %v3290 = vrot.slane %v3289, 4
    %v3291 = vadd.f32 %v3289, %v3290
    %v3292 = vrot.slane %v3291, 2
    %v3293 = vadd.f32 %v3291, %v3292
    %v3294 = vrot.slane %v3293, 1
    %v3295 = vadd.f32 %v3293, %v3294
    %v3296 = vsel %vm201, %v3209, 0.0
    %v3297 = vrot.slane %v3296, 4
    %v3298 = vadd.f32 %v3296, %v3297
    %v3299 = vrot.slane %v3298, 2
    %v3300 = vadd.f32 %v3298, %v3299
    %v3301 = vrot.slane %v3300, 1
    %v3302 = vadd.f32 %v3300, %v3301
    %v3303 = vsel %vm201, %v3211, 0.0
    %v3304 = vrot.slane %v3303, 4
    %v3305 = vadd.f32 %v3303, %v3304
    %v3306 = vrot.slane %v3305, 2
    %v3307 = vadd.f32 %v3305, %v3306
    %v3308 = vrot.slane %v3307, 1
    %v3309 = vadd.f32 %v3307, %v3308
    %v3310 = vsel %vm201, %v3213, 0.0
    %v3311 = vrot.slane %v3310, 4
    %v3312 = vadd.f32 %v3310, %v3311
    %v3313 = vrot.slane %v3312, 2
    %v3314 = vadd.f32 %v3312, %v3313
    %v3315 = vrot.slane %v3314, 1
    %v3316 = vadd.f32 %v3314, %v3315
    %v3317 = vsel %vm201, %v3215, 0.0
    %v3318 = vrot.slane %v3317, 4
    %v3319 = vadd.f32 %v3317, %v3318
    %v3320 = vrot.slane %v3319, 2
    %v3321 = vadd.f32 %v3319, %v3320
    %v3322 = vrot.slane %v3321, 1
    %v3323 = vadd.f32 %v3321, %v3322
    %v3324 = vsel %vm201, %v3217, 0.0
    %v3325 = vrot.slane %v3324, 4
    %v3326 = vadd.f32 %v3324, %v3325
    %v3327 = vrot.slane %v3326, 2
    %v3328 = vadd.f32 %v3326, %v3327
    %v3329 = vrot.slane %v3328, 1
    %v3330 = vadd.f32 %v3328, %v3329
    %v3331 = vsel %vm201, %v3188, 0.0
    %v3332 = vrot.slane %v3331, 4
    %v3333 = vadd.f32 %v3331, %v3332
    %v3334 = vrot.slane %v3333, 2
    %v3335 = vadd.f32 %v3333, %v3334
    %v3336 = vrot.slane %v3335, 1
    %v3337 = vadd.f32 %v3335, %v3336
    %v3338 = vsel %vm201, %v3190, 0.0
    %v3339 = vrot.slane %v3338, 4
    %v3340 = vadd.f32 %v3338, %v3339
    %v3341 = vrot.slane %v3340, 2
    %v3342 = vadd.f32 %v3340, %v3341
    %v3343 = vrot.slane %v3342, 1
    %v3344 = vadd.f32 %v3342, %v3343
    %v3345 = vsel %vm201, %v3192, 0.0
    %v3346 = vrot.slane %v3345, 4
    %v3347 = vadd.f32 %v3345, %v3346
    %v3348 = vrot.slane %v3347, 2
    %v3349 = vadd.f32 %v3347, %v3348
    %v3350 = vrot.slane %v3349, 1
    %v3351 = vadd.f32 %v3349, %v3350
    %v3352 = vsel %vm201, %v3194, 0.0
    %v3353 = vrot.slane %v3352, 4
    %v3354 = vadd.f32 %v3352, %v3353
    %v3355 = vrot.slane %v3354, 2
    %v3356 = vadd.f32 %v3354, %v3355
    %v3357 = vrot.slane %v3356, 1
    %v3358 = vadd.f32 %v3356, %v3357
    %v3359 = vsel %vm201, %v3196, 0.0
    %v3360 = vrot.slane %v3359, 4
    %v3361 = vadd.f32 %v3359, %v3360
    %v3362 = vrot.slane %v3361, 2
    %v3363 = vadd.f32 %v3361, %v3362
    %v3364 = vrot.slane %v3363, 1
    %v3365 = vadd.f32 %v3363, %v3364
    %v3366 = vsel %vm201, %v3198, 0.0
    %v3367 = vrot.slane %v3366, 4
    %v3368 = vadd.f32 %v3366, %v3367
    %v3369 = vrot.slane %v3368, 2
    %v3370 = vadd.f32 %v3368, %v3369
    %v3371 = vrot.slane %v3370, 1
    %v3372 = vadd.f32 %v3370, %v3371
    %v3373 = vsel %vm201, %v3200, 0.0
    %v3374 = vrot.slane %v3373, 4
    %v3375 = vadd.f32 %v3373, %v3374
    %v3376 = vrot.slane %v3375, 2
    %v3377 = vadd.f32 %v3375, %v3376
    %v3378 = vrot.slane %v3377, 1
    %v3379 = vadd.f32 %v3377, %v3378
    %v3380 = vsel %vm201, %v3202, 0.0
    %v3381 = vrot.slane %v3380, 4
    %v3382 = vadd.f32 %v3380, %v3381
    %v3383 = vrot.slane %v3382, 2
    %v3384 = vadd.f32 %v3382, %v3383
    %v3385 = vrot.slane %v3384, 1
    %v3386 = vadd.f32 %v3384, %v3385
    %v3387 = vsel %vm201, %v3204, 0.0
    %v3388 = vrot.slane %v3387, 4
    %v3389 = vadd.f32 %v3387, %v3388
    %v3390 = vrot.slane %v3389, 2
    %v3391 = vadd.f32 %v3389, %v3390
    %v3392 = vrot.slane %v3391, 1
    %v3393 = vadd.f32 %v3391, %v3392
    %v3394 = vsel %vm201, %v3206, 0.0
    %v3395 = vrot.slane %v3394, 4
    %v3396 = vadd.f32 %v3394, %v3395
    %v3397 = vrot.slane %v3396, 2
    %v3398 = vadd.f32 %v3396, %v3397
    %v3399 = vrot.slane %v3398, 1
    %v3400 = vadd.f32 %v3398, %v3399
    %v3401 = vsel %vm201, %v3208, 0.0
    %v3402 = vrot.slane %v3401, 4
    %v3403 = vadd.f32 %v3401, %v3402
    %v3404 = vrot.slane %v3403, 2
    %v3405 = vadd.f32 %v3403, %v3404
    %v3406 = vrot.slane %v3405, 1
    %v3407 = vadd.f32 %v3405, %v3406
    %v3408 = vsel %vm201, %v3210, 0.0
    %v3409 = vrot.slane %v3408, 4
    %v3410 = vadd.f32 %v3408, %v3409
    %v3411 = vrot.slane %v3410, 2
    %v3412 = vadd.f32 %v3410, %v3411
    %v3413 = vrot.slane %v3412, 1
    %v3414 = vadd.f32 %v3412, %v3413
    %v3415 = vsel %vm201, %v3212, 0.0
    %v3416 = vrot.slane %v3415, 4
    %v3417 = vadd.f32 %v3415, %v3416
    %v3418 = vrot.slane %v3417, 2
    %v3419 = vadd.f32 %v3417, %v3418
    %v3420 = vrot.slane %v3419, 1
    %v3421 = vadd.f32 %v3419, %v3420
    %v3422 = vsel %vm201, %v3214, 0.0
    %v3423 = vrot.slane %v3422, 4
    %v3424 = vadd.f32 %v3422, %v3423
    %v3425 = vrot.slane %v3424, 2
    %v3426 = vadd.f32 %v3424, %v3425
    %v3427 = vrot.slane %v3426, 1
    %v3428 = vadd.f32 %v3426, %v3427
    %v3429 = vsel %vm201, %v3216, 0.0
    %v3430 = vrot.slane %v3429, 4
    %v3431 = vadd.f32 %v3429, %v3430
    %v3432 = vrot.slane %v3431, 2
    %v3433 = vadd.f32 %v3431, %v3432
    %v3434 = vrot.slane %v3433, 1
    %v3435 = vadd.f32 %v3433, %v3434
    %v3436 = vsel %vm201, %v3218, 0.0
    %v3437 = vrot.slane %v3436, 4
    %v3438 = vadd.f32 %v3436, %v3437
    %v3439 = vrot.slane %v3438, 2
    %v3440 = vadd.f32 %v3438, %v3439
    %v3441 = vrot.slane %v3440, 1
    %v3442 = vadd.f32 %v3440, %v3441
    %vm3459 = vcmask 1041409
    %v3460 = vsel %vm3459, %v3232, %v3225
    %vm3461 = vcmask 1042434
    %v3462 = vsel %vm3461, %v3239, %v3460
    %vm3463 = vcmask 1043459
    %v3464 = vsel %vm3463, %v3246, %v3462
    %vm3465 = vcmask 1044484
    %v3466 = vsel %vm3465, %v3253, %v3464
    %vm3467 = vcmask 1045509
    %v3468 = vsel %vm3467, %v3260, %v3466
    %vm3469 = vcmask 1046534
    %v3470 = vsel %vm3469, %v3267, %v3468
    %vm3471 = vcmask 1047559
    %v3472 = vsel %vm3471, %v3274, %v3470
    %v3473 = vsel %vm3459, %v3288, %v3281
    %v3474 = vsel %vm3461, %v3295, %v3473
    %v3475 = vsel %vm3463, %v3302, %v3474
    %v3476 = vsel %vm3465, %v3309, %v3475
    %v3477 = vsel %vm3467, %v3316, %v3476
    %v3478 = vsel %vm3469, %v3323, %v3477
    %v3479 = vsel %vm3471, %v3330, %v3478
    %v3498 = vsel %vm3459, %v3344, %v3337
    %v3499 = vsel %vm3461, %v3351, %v3498
    %v3500 = vsel %vm3463, %v3358, %v3499
    %v3501 = vsel %vm3465, %v3365, %v3500
    %v3502 = vsel %vm3467, %v3372, %v3501
    %v3503 = vsel %vm3469, %v3379, %v3502
    %v3504 = vsel %vm3471, %v3386, %v3503
    %v3505 = vsel %vm3459, %v3400, %v3393
    %v3506 = vsel %vm3461, %v3407, %v3505
    %v3507 = vsel %vm3463, %v3414, %v3506
    %v3508 = vsel %vm3465, %v3421, %v3507
    %v3509 = vsel %vm3467, %v3428, %v3508
    %v3510 = vsel %vm3469, %v3435, %v3509
    %v3511 = vsel %vm3471, %v3442, %v3510
    %3512 = vrot.lane.b32.xlu0 %v3504, 32
    %v3513 = vpop.permute.xlu0 %3512
    %3514 = vrot.lane.b32.xlu0 %v3511, 32
    %v3515 = vpop.permute.xlu0 %3514
    %v3518 = vsel %vm201, %v3472, %v3513
    %v3519 = vsel %vm201, %v3479, %v3515
    %v3520 = vpack.c.bf16 %v3519, %v3518
    %v3521 = vld [vmem:[%s9] sm:$0xf]
    %v3522 = vld [vmem:[%s9 + $0x4] sm:$0xf]
    %v3523 = vld [vmem:[%s9 + $0x8] sm:$0xf]
    %v3524 = vld [vmem:[%s9 + $0xc] sm:$0xf]
    %v3525 = vld [vmem:[%s9 + $0x10] sm:$0xf]
    %v3526 = vld [vmem:[%s9 + $0x14] sm:$0xf]
    %v3527 = vld [vmem:[%s9 + $0x18] sm:$0xf]
    %v3528 = vld [vmem:[%s9 + $0x1c] sm:$0xf]
    %v3529 = vld [vmem:[%s10] sm:$0x1]
    %v3531 = vlaneseq
    %v3532 = vshrl.u32 %v3531, 7
    %v3533 = vsub.s32 0, %v3532
    %v3534 = vrot.slane %v3529, %v3533
    %v3544 = vunpack.c.l.b16 %v3521
    %v3545 = vunpack.c.l.b16 %v3522
    %v3546 = vunpack.c.l.b16 %v3523
    %v3547 = vunpack.c.l.b16 %v3524
    %v3548 = vunpack.c.l.b16 %v3525
    %v3549 = vunpack.c.l.b16 %v3526
    %v3550 = vunpack.c.l.b16 %v3527
    %v3551 = vunpack.c.l.b16 %v3528
    %v3552 = vpack.c.b16 %v3545, %v3544
    %v3553 = vpack.c.b16 %v3547, %v3546
    %v3554 = vpack.c.b16 %v3549, %v3548
    %v3555 = vpack.c.b16 %v3551, %v3550
    %v3561 = vsel %vm2713, %v3520, 0
    %3563 = vmatprep.subr.bf16.mxu0 0
    %3564 = vmatpush1.bf16.msra.mxu0 %v3552
    %3565 = vmatprep.subr.bf16.mxu0 0
    %3566 = vmatpush1.bf16.msra.mxu0 %v3553
    %3567 = vmatprep.subr.bf16.mxu0 0
    %3568 = vmatpush1.bf16.msra.mxu0 %v3554
    %3569 = vmatprep.subr.bf16.mxu0 0
    %3570 = vmatpush1.bf16.msra.mxu0 %v3555
    %3571 = vmatprep.subr.bf16.mxu0 0
    %3572 = vmatpush1.bf16.msra.mxu0 0
    %3573 = vmatprep.subr.bf16.mxu0 0
    %3574 = vmatpush1.bf16.msra.mxu0 0
    %3575 = vmatprep.subr.bf16.mxu0 0
    %3576 = vmatpush1.bf16.msra.mxu0 0
    %3577 = vmatprep.subr.bf16.mxu0 0
    %3578 = vmatpush1.bf16.msra.mxu0 0
    %3579 = vmatprep.subr.bf16.mxu0 0
    %3580 = vmatpush1.bf16.msra.mxu0 0
    %3581 = vmatprep.subr.bf16.mxu0 0
    %3582 = vmatpush1.bf16.msra.mxu0 0
    %3583 = vmatprep.subr.bf16.mxu0 0
    %3584 = vmatpush1.bf16.msra.mxu0 0
    %3585 = vmatprep.subr.bf16.mxu0 0
    %3586 = vmatpush1.bf16.msra.mxu0 0
    %3587 = vmatprep.subr.bf16.mxu0 0
    %3588 = vmatpush1.bf16.msra.mxu0 0
    %3589 = vmatprep.subr.bf16.mxu0 0
    %3590 = vmatpush1.bf16.msra.mxu0 0
    %3591 = vmatprep.subr.bf16.mxu0 0
    %3592 = vmatpush1.bf16.msra.mxu0 0
    %3593 = vmatprep.subr.bf16.mxu0 0
    %3594 = vmatpush1.bf16.msra.mxu0 0
    %3595 = vmatprep.mubr.bf16.mxu0 0
    %3596 = vmatmul.mubr.bf16.gmra.mrb[0].mxu0 %v3561
    %v3597 = vpop.f32.mrb[0].mxu0
    %v3598 = vadd.f32 %v3534, %v3597
    %v3599 = vpop.f32.mrb[0].mxu0
    %v3600 = vpop.f32.mrb[0].mxu0
    %v3601 = vadd.f32 %v3534, %v3600
    %v3602 = vpop.f32.mrb[0].mxu0
    %3603 = vdwg.mxu0
    %v3604 = vmax.f32 %v3598, 0.0
    %v3605 = vmax.f32 %v3601, 0.0
    %v3606 = vpack.c.bf16 %v3605, %v3604
    %v3607 = vld [vmem:[%s11] sm:$0xf]
    %v3608 = vld [vmem:[%s11 + $0x4] sm:$0xf]
    %v3609 = vld [vmem:[%s11 + $0x8] sm:$0xf]
    %v3610 = vld [vmem:[%s11 + $0xc] sm:$0xf]
    %v3611 = vld [vmem:[%s12] sm:$0x1]
    %v3613 = vlaneseq
    %v3614 = vshrl.u32 %v3613, 7
    %v3615 = vsub.s32 0, %v3614
    %v3616 = vrot.slane %v3611, %v3615
    %v3622 = vunpack.c.l.b16 %v3607
    %v3623 = vunpack.c.l.b16 %v3608
    %v3624 = vunpack.c.l.b16 %v3609
    %v3625 = vunpack.c.l.b16 %v3610
    %v3626 = vpack.c.b16 %v3623, %v3622
    %v3627 = vpack.c.b16 %v3625, %v3624
    %v3631 = vsel %vm201, %v3606, 0
    %3633 = vmatprep.subr.bf16.mxu0 0
    %3634 = vmatpush1.bf16.msra.mxu0 %v3626
    %3635 = vmatprep.subr.bf16.mxu0 0
    %3636 = vmatpush1.bf16.msra.mxu0 %v3627
    %3637 = vmatprep.subr.bf16.mxu0 0
    %3638 = vmatpush1.bf16.msra.mxu0 0
    %3639 = vmatprep.subr.bf16.mxu0 0
    %3640 = vmatpush1.bf16.msra.mxu0 0
    %3641 = vmatprep.subr.bf16.mxu0 0
    %3642 = vmatpush1.bf16.msra.mxu0 0
    %3643 = vmatprep.subr.bf16.mxu0 0
    %3644 = vmatpush1.bf16.msra.mxu0 0
    %3645 = vmatprep.subr.bf16.mxu0 0
    %3646 = vmatpush1.bf16.msra.mxu0 0
    %3647 = vmatprep.subr.bf16.mxu0 0
    %3648 = vmatpush1.bf16.msra.mxu0 0
    %3649 = vmatprep.subr.bf16.mxu0 0
    %3650 = vmatpush1.bf16.msra.mxu0 0
    %3651 = vmatprep.subr.bf16.mxu0 0
    %3652 = vmatpush1.bf16.msra.mxu0 0
    %3653 = vmatprep.subr.bf16.mxu0 0
    %3654 = vmatpush1.bf16.msra.mxu0 0
    %3655 = vmatprep.subr.bf16.mxu0 0
    %3656 = vmatpush1.bf16.msra.mxu0 0
    %3657 = vmatprep.subr.bf16.mxu0 0
    %3658 = vmatpush1.bf16.msra.mxu0 0
    %3659 = vmatprep.subr.bf16.mxu0 0
    %3660 = vmatpush1.bf16.msra.mxu0 0
    %3661 = vmatprep.subr.bf16.mxu0 0
    %3662 = vmatpush1.bf16.msra.mxu0 0
    %3663 = vmatprep.subr.bf16.mxu0 0
    %3664 = vmatpush1.bf16.msra.mxu0 0
    %3665 = vmatprep.mubr.bf16.mxu0 0
    %3666 = vmatmul.mubr.bf16.gmra.mrb[0].mxu0 %v3631
    %v3667 = vpop.f32.mrb[0].mxu0
    %v3668 = vadd.f32 %v3616, %v3667
    %v3669 = vpop.f32.mrb[0].mxu0
    %v3670 = vpop.f32.mrb[0].mxu0
    %v3671 = vadd.f32 %v3616, %v3670
    %v3672 = vpop.f32.mrb[0].mxu0
    %3673 = vdwg.mxu0
    %v3674 = vmax.f32 %v3668, 0.0
    %v3675 = vmax.f32 %v3671, 0.0
    %v3676 = vpack.c.bf16 %v3675, %v3674
    %v3677 = vld [vmem:[%s13] sm:$0xf]
    %v3678 = vld [vmem:[%s13 + $0x4] sm:$0xf]
    %v3679 = vld [vmem:[%s13 + $0x8] sm:$0xf]
    %v3680 = vld [vmem:[%s13 + $0xc] sm:$0xf]
    %v3681 = vld [vmem:[%s14] sm:$0x1]
    %v3683 = vlaneseq
    %v3684 = vshrl.u32 %v3683, 7
    %v3685 = vsub.s32 0, %v3684
    %v3686 = vrot.slane %v3681, %v3685
    %v3692 = vunpack.c.l.b16 %v3677
    %v3693 = vunpack.c.l.b16 %v3678
    %v3694 = vunpack.c.l.b16 %v3679
    %v3695 = vunpack.c.l.b16 %v3680
    %v3696 = vpack.c.b16 %v3693, %v3692
    %v3697 = vpack.c.b16 %v3695, %v3694
    %v3701 = vsel %vm201, %v3676, 0
    %3703 = vmatprep.subr.bf16.mxu0 0
    %3704 = vmatpush1.bf16.msra.mxu0 %v3696
    %3705 = vmatprep.subr.bf16.mxu0 0
    %3706 = vmatpush1.bf16.msra.mxu0 %v3697
    %3707 = vmatprep.subr.bf16.mxu0 0
    %3708 = vmatpush1.bf16.msra.mxu0 0
    %3709 = vmatprep.subr.bf16.mxu0 0
    %3710 = vmatpush1.bf16.msra.mxu0 0
    %3711 = vmatprep.subr.bf16.mxu0 0
    %3712 = vmatpush1.bf16.msra.mxu0 0
    %3713 = vmatprep.subr.bf16.mxu0 0
    %3714 = vmatpush1.bf16.msra.mxu0 0
    %3715 = vmatprep.subr.bf16.mxu0 0
    %3716 = vmatpush1.bf16.msra.mxu0 0
    %3717 = vmatprep.subr.bf16.mxu0 0
    %3718 = vmatpush1.bf16.msra.mxu0 0
    %3719 = vmatprep.subr.bf16.mxu0 0
    %3720 = vmatpush1.bf16.msra.mxu0 0
    %3721 = vmatprep.subr.bf16.mxu0 0
    %3722 = vmatpush1.bf16.msra.mxu0 0
    %3723 = vmatprep.subr.bf16.mxu0 0
    %3724 = vmatpush1.bf16.msra.mxu0 0
    %3725 = vmatprep.subr.bf16.mxu0 0
    %3726 = vmatpush1.bf16.msra.mxu0 0
    %3727 = vmatprep.subr.bf16.mxu0 0
    %3728 = vmatpush1.bf16.msra.mxu0 0
    %3729 = vmatprep.subr.bf16.mxu0 0
    %3730 = vmatpush1.bf16.msra.mxu0 0
    %3731 = vmatprep.subr.bf16.mxu0 0
    %3732 = vmatpush1.bf16.msra.mxu0 0
    %3733 = vmatprep.subr.bf16.mxu0 0
    %3734 = vmatpush1.bf16.msra.mxu0 0
    %3735 = vmatprep.mubr.bf16.mxu0 0
    %3736 = vmatmul.mubr.bf16.gmra.mrb[0].mxu0 %v3701
    %v3737 = vpop.f32.mrb[0].mxu0
    %v3738 = vadd.f32 %v3686, %v3737
    %v3739 = vpop.f32.mrb[0].mxu0
    %v3740 = vpop.f32.mrb[0].mxu0
    %v3741 = vadd.f32 %v3686, %v3740
    %v3742 = vpop.f32.mrb[0].mxu0
    %3743 = vdwg.mxu0
    %vm3744 = vcmp.lt.s32.totalorder %v1447, 4
    %v3745 = vsel %vm3744, %v3738, -1e+30
    %v3746 = vsel %vm3744, %v3741, -1e+30
    %3747 = vmax.xlane.f32.xlu0 %v3745
    %v3748 = vpop.xlane.xlu0 %3747
    %3749 = vmax.xlane.f32.xlu0 %v3746
    %v3750 = vpop.xlane.xlu0 %3749
    %v3751 = vsub.f32 %v3745, %v3748
    %v3752 = vsub.f32 %v3746, %v3750
    %v3753 = vmul.f32 %v3751, 1.442695
    %v3754 = vpow.pop %v3753
    %v3755 = vmul.f32 %v3752, 1.442695
    %v3756 = vpow.pop %v3755
    %3757 = vadd.xlane.f32.xlu0 %v3754
    %v3758 = vpop.xlane.xlu0 %3757
    %3759 = vadd.xlane.f32.xlu0 %v3756
    %v3760 = vpop.xlane.xlu0 %3759
    %v3761 = vlog2.pop %v3758
    %v3762 = vmul.f32 %v3761, 0.6931472
    %v3763 = vlog2.pop %v3760
    %v3764 = vmul.f32 %v3763, 0.6931472
    %v3765 = vadd.f32 %v3762, %v3748
    %v3766 = vadd.f32 %v3764, %v3750
    %v3767 = vsub.f32 %v3745, %v3765
    %v3768 = vsub.f32 %v3746, %v3766
    %3769 = vst [vmem:[#allocation5] sm:$0xff] %v3767
    %3770 = vst [vmem:[#allocation5 + $0x8] sm:$0xff] %v3768
    // Predicated region
    $region66: #{tpu_custom_call.1} parent=1 // pred_check
      _
    $region67: #{tpu_custom_call.1} parent=1 // pred_check_branch
      %3772 = sbr.rel (0) target = $region69
    $region68: #{tpu_custom_call.1} parent=1 // pred_region
      %s3774 = ssub.s32 256, 256
      %3775 = vsyncadd [#allocation4], %s3774
      %s3776 = sshll.u32 [#allocation5], 4
      %s3777 = int_to_ptr.vmem [resolvable:$true] %s3776
      %3782 = dma.vmem_to_hbm [thread:$0]  %s3777, 256, %s15, [#allocation4], 128, 128, 8
    $region69: #{tpu_custom_call.1} parent=1 // pred_fallthru
      _
    // Predicated region
    $region70: #{tpu_custom_call.1} parent=1 // pred_check
      _
    $region71: #{tpu_custom_call.1} parent=1 // pred_check_branch
      %3784 = sbr.rel (0) target = $region73
    $region72: #{tpu_custom_call.1} parent=1 // pred_region
      %3785 = dma.done [#allocation4], 256
    $region73: #{tpu_custom_call.1} parent=1 // pred_fallthru
      _
    %3786 = vsyncpa [#allocation3], 1
    %3787 = vsyncpa [#allocation4], 1

</llo_original>
